<compile_context>
chip_gen: v6e
topology: v6e:2x2x1
jax: 0.10.0
libtpu: 0.0.40
codegen_flags: <defaults>
</compile_context>

<pallas_src>
import functools

import jax
import jax.numpy as jnp
from jax import lax
from jax.experimental import pallas as pl
from jax.experimental.pallas import tpu as pltpu  # noqa: F401  (no TPU scratch needed anymore)

_INV_SQRT2 = 0.7071067811865476
_BN_EPS = 1e-5
_LN_EPS = 1e-5


# ----------------------------------------------------------------------------
# In-kernel helpers (operate on values; everything stays in vregs)
# ----------------------------------------------------------------------------
def _gelu(x):
    # exact (erf-based) GELU, matching torch.nn.GELU default
    return 0.5 * x * (1.0 + lax.erf(x * _INV_SQRT2))


def _layernorm(x, gamma, beta, eps=_LN_EPS):
    mu = jnp.mean(x, axis=-1, keepdims=True)
    var = jnp.mean(jnp.square(x - mu), axis=-1, keepdims=True)
    return (x - mu) * lax.rsqrt(var + eps) * gamma + beta


def _batchnorm(x, gamma, beta, eps=_BN_EPS):
    # training-mode BatchNorm1d: per-column stats over all rows, biased variance
    mu = jnp.mean(x, axis=0, keepdims=True)
    var = jnp.mean(jnp.square(x - mu), axis=0, keepdims=True)
    return (x - mu) * lax.rsqrt(var + eps) * gamma + beta


# ----------------------------------------------------------------------------
# The single fused kernel
# ----------------------------------------------------------------------------
def _fused_forward_kernel(src_ref, pos_ref, proj_ref, qkvw_ref, ow_ref,
                          f1_ref, f2_ref, vec_ref, exp_ref, outw_ref,
                          out_ref, *, B, T, C, L, FF, n_head, n_layers,
                          D_IN, H1, H2):
    f32 = jnp.float32
    dh = C // n_head
    scale = 1.0 / float(dh) ** 0.5

    vec = vec_ref[...]                       # (8 + 8*n_layers, W) bias/gamma/beta slab

    def vrow(i, width):                      # one padded parameter row -> (1, width)
        return vec[i:i + 1, :width]

    # ---- projection MLP: D_IN -> H1 -> H2 -> C, exact erf-GELU after each ---
    proj = proj_ref[...]                     # (D_IN+H1+H2+3, C)
    r1, r2, r3 = D_IN, D_IN + H1, D_IN + H1 + H2
    x = src_ref[...]                         # (B*T, D_IN)
    x = _gelu(jnp.dot(x, proj[0:r1, :H1], preferred_element_type=f32)
              + proj[r3:r3 + 1, :H1])
    x = _gelu(jnp.dot(x, proj[r1:r2, :H2], preferred_element_type=f32)
              + proj[r3 + 1:r3 + 2, :H2])
    x = _gelu(jnp.dot(x, proj[r2:r3, :C], preferred_element_type=f32)
              + proj[r3 + 2:r3 + 3, :C])     # (B*T, C)

    # ---- bn1 -> + positional embedding -> bn2 -------------------------------
    x = _batchnorm(x, vrow(0, C), vrow(1, C))
    pe = pos_ref[...]                        # (T, C)   (T == M asserted outside)
    x = x + jnp.concatenate([pe] * B, axis=0)
    x = _batchnorm(x, vrow(2, C), vrow(3, C))

    # ---- post-LN TransformerEncoderLayer x n_layers (ReLU FFN, dropout=0) ---
    for l in range(n_layers):
        base = 8 + 8 * l
        # one fused QKV projection for all B*T rows: (B*T, C) @ (C, 3C)
        qkv = (jnp.dot(x, qkvw_ref[l], preferred_element_type=f32)
               + vrow(base + 0, 3 * C))                          # (B*T, 3C)

        per_batch = []
        for bi in range(B):
            qb = qkv[bi * T:(bi + 1) * T, :]                     # (T, 3C)
            heads = []
            for h in range(n_head):
                c0 = h * dh
                q = qb[:, c0:c0 + dh]                            # (T, dh)
                k = qb[:, C + c0:C + c0 + dh]
                v = qb[:, 2 * C + c0:2 * C + c0 + dh]
                # q @ k^T without materializing a transpose
                s = lax.dot_general(q, k, (((1,), (1,)), ((), ())),
                                    preferred_element_type=f32) * scale
                s = s - jnp.max(s, axis=-1, keepdims=True)
                p = jnp.exp(s)
                # EUP reciprocal (approx): ~1e-4 relative shift; approx=False restores exact
                p = p * pl.reciprocal(jnp.sum(p, axis=-1, keepdims=True), approx=True)
                heads.append(jnp.dot(p, v, preferred_element_type=f32))   # (T, dh)
            per_batch.append(jnp.concatenate(heads, axis=1))              # (T, C)
        attn_cat = jnp.concatenate(per_batch, axis=0)                     # (B*T, C)

        # single full-width output projection against out_proj.weight.T
        attn = (jnp.dot(attn_cat, ow_ref[l], preferred_element_type=f32)
                + vrow(base + 1, C))

        # residual + LayerNorm 1
        x = _layernorm(x + attn, vrow(base + 4, C), vrow(base + 5, C))
        # ReLU FFN + residual + LayerNorm 2
        h1 = jnp.maximum(jnp.dot(x, f1_ref[l], preferred_element_type=f32)
                         + vrow(base + 2, FF), 0.0)
        h2 = jnp.dot(h1, f2_ref[l], preferred_element_type=f32) + vrow(base + 3, C)
        x = _layernorm(x + h2, vrow(base + 6, C), vrow(base + 7, C))

    # ---- bn3 (per d_model channel over B*T rows) -----------------------------
    x = _batchnorm(x, vrow(4, C), vrow(5, C))

    # ---- expand_layer mixes the sequence axis, + GELU -------------------------
    #   y[b, c, l] = sum_t W_exp[l, t] * x[b, t, c] + b_exp[l]
    # computed as ONE (L,T)@(T,B*C) matmul on the lane-concatenated batches.
    exp_all = exp_ref[...]                   # (L, T+1): [W_exp | b_exp]
    w_exp = exp_all[:, :T]                   # (L, T)
    b_exp = exp_all[:, T:T + 1]              # (L, 1)
    x_cat = jnp.concatenate([x[bi * T:(bi + 1) * T, :] for bi in range(B)], axis=1)  # (T, B*C)
    z = _gelu(jnp.dot(w_exp, x_cat, preferred_element_type=f32) + b_exp)             # (L, B*C)
    y = jnp.concatenate([z[:, bi * C:(bi + 1) * C] for bi in range(B)], axis=0)      # (B*L, C)

    # ---- bn4 + out Linear(C, 2): the single HBM store of the kernel -----------
    y = _batchnorm(y, vrow(6, C), vrow(7, C))
    ow = outw_ref[...]                       # (C+1, 2): [o_w.T ; o_b]
    out_ref[...] = (jnp.dot(y, ow[:C, :], preferred_element_type=f32)
                    + ow[C:C + 1, :]).astype(out_ref.dtype)


# ----------------------------------------------------------------------------
# One-time parameter preparation: transpose / stack / pad weights into a few
# slabs — done ONCE, never inside the forward / kernel.
# ----------------------------------------------------------------------------
def prepare_params(params, n_head):
    f32 = jnp.float32
    C = params["p3_w"].shape[0]
    D_IN = params["p1_w"].shape[1]
    H1 = params["p1_w"].shape[0]
    H2 = params["p2_w"].shape[0]
    L, M = params["exp_w"].shape
    layers = params["layers"]
    n_layers = len(layers)
    FF = layers[0]["ff1_w"].shape[0]
    W = max(3 * C, FF, C)                    # width of the shared bias/γ/β slab

    def padw(a, width):
        a = jnp.asarray(a, f32)
        if a.ndim == 1:
            a = a.reshape(1, -1)
        if a.shape[1] < width:
            a = jnp.pad(a, ((0, 0), (0, width - a.shape[1])))
        return a

    # projection-MLP slab: rows [w1.T | w2.T | w3.T | b1 | b2 | b3], width C
    proj_slab = jnp.concatenate([
        padw(params["p1_w"].T, C), padw(params["p2_w"].T, C), padw(params["p3_w"].T, C),
        padw(params["p1_b"], C), padw(params["p2_b"], C), padw(params["p3_b"], C),
    ], axis=0)

    # per-layer stacked weight slabs (already transposed for x @ W)
    qkvw = jnp.stack([jnp.asarray(lp["in_w"], f32).T for lp in layers])   # (nL, C, 3C)
    ow = jnp.stack([jnp.asarray(lp["out_w"], f32).T for lp in layers])    # (nL, C, C)
    f1 = jnp.stack([jnp.asarray(lp["ff1_w"], f32).T for lp in layers])    # (nL, C, FF)
    f2 = jnp.stack([jnp.asarray(lp["ff2_w"], f32).T for lp in layers])    # (nL, FF, C)

    # shared bias / gamma / beta row-slab (rows indexed statically in-kernel)
    vrows = [padw(params[k], W) for k in
             ("bn1_g", "bn1_b", "bn2_g", "bn2_b", "bn3_g", "bn3_b", "bn4_g", "bn4_b")]
    for lp in layers:
        vrows += [padw(lp["in_b"], W), padw(lp["out_b"], W),
                  padw(lp["ff1_b"], W), padw(lp["ff2_b"], W),
                  padw(lp["ln1_g"], W), padw(lp["ln1_b"], W),
                  padw(lp["ln2_g"], W), padw(lp["ln2_b"], W)]
    vec_slab = jnp.concatenate(vrows, axis=0)                            # (8+8*nL, W)

    exp_slab = jnp.concatenate([jnp.asarray(params["exp_w"], f32),
                                jnp.asarray(params["exp_b"], f32).reshape(-1, 1)], axis=1)
    out_slab = jnp.concatenate([jnp.asarray(params["o_w"], f32).T,
                                jnp.asarray(params["o_b"], f32).reshape(1, -1)], axis=0)

    pos_emb = jnp.asarray(params["pos_emb"], f32)                        # (M, C)

    operands = (pos_emb, proj_slab, qkvw, ow, f1, f2, vec_slab, exp_slab, out_slab)
    cfg = dict(C=C, L=L, M=M, FF=FF, n_layers=n_layers, D_IN=D_IN, H1=H1, H2=H2)
    return operands, cfg


# ----------------------------------------------------------------------------
# Forward wrapper: one grid-less pallas_call, everything VMEM-resident
# ----------------------------------------------------------------------------
def transformer_forward(src, prep, n_head):
    operands, cfg = prep
    B, T, d_in = src.shape
    # expand_layer is Linear(M, out_length) applied to the sequence axis
    assert T == cfg["M"], "sequence length must equal M"
    assert d_in == cfg["D_IN"]
    C, L = cfg["C"], cfg["L"]

    kernel = functools.partial(
        _fused_forward_kernel,
        B=B, T=T, C=C, L=L, FF=cfg["FF"], n_head=n_head,
        n_layers=cfg["n_layers"], D_IN=cfg["D_IN"], H1=cfg["H1"], H2=cfg["H2"])

    out = pl.pallas_call(
        kernel,
        out_shape=jax.ShapeDtypeStruct((B * L, 2), jnp.float32),
        # default BlockSpecs: every operand is a single whole-array VMEM block
        # (total <1 MiB); no grid, no scratch.
    )(src.reshape(B * T, d_in).astype(jnp.float32), *operands)
    return out.reshape(B, L, 2)


# ----------------------------------------------------------------------------
# Deterministic parameter initialization (synthetic weights, PyTorch layouts)
# ----------------------------------------------------------------------------
def init_params(key, d_model, n_head, ff, n_layers, m, out_length):
    keys = iter(jax.random.split(key, 16 + 8 * n_layers))

    def w(shape, scale=0.1):
        return scale * jax.random.normal(next(keys), shape, jnp.float32)

    def zeros(n):
        return jnp.zeros((n,), jnp.float32)

    def ones(n):
        return jnp.ones((n,), jnp.float32)

    layers = []
    for _ in range(n_layers):
        layers.append(dict(
            in_w=w((3 * d_model, d_model)), in_b=zeros(3 * d_model),
            out_w=w((d_model, d_model)), out_b=zeros(d_model),
            ff1_w=w((ff, d_model)), ff1_b=zeros(ff),
            ff2_w=w((d_model, ff)), ff2_b=zeros(d_model),
            ln1_g=ones(d_model), ln1_b=zeros(d_model),
            ln2_g=ones(d_model), ln2_b=zeros(d_model),
        ))

    return dict(
        p1_w=w((8, 2)), p1_b=zeros(8),
        p2_w=w((16, 8)), p2_b=zeros(16),
        p3_w=w((d_model, 16)), p3_b=zeros(d_model),
        pos_emb=w((m, d_model)),
        bn1_g=ones(d_model), bn1_b=zeros(d_model),
        bn2_g=ones(d_model), bn2_b=zeros(d_model),
        bn3_g=ones(d_model), bn3_b=zeros(d_model),
        bn4_g=ones(d_model), bn4_b=zeros(d_model),
        exp_w=w((out_length, m)), exp_b=zeros(out_length),
        o_w=w((2, d_model)), o_b=zeros(2),
        layers=layers,
    )


# ----------------------------------------------------------------------------
if __name__ == "__main__":
    # small config consistent with the module:
    #   d_model=32, n_head=2, ff=64, n_layers=2, dropout=0.0, M=8, out_length=16
    d_model, n_head, ff, n_layers, M, out_length = 32, 2, 64, 2, 8, 16
    B = 2

    key = jax.random.PRNGKey(0)
    kx, kp = jax.random.split(key)
    src = jax.random.normal(kx, (B, M, 2), jnp.float32)   # (batch, seq=M, feat=2)
    params = init_params(kp, d_model, n_head, ff, n_layers, M, out_length)

    prep = prepare_params(params, n_head)                  # one-time weight prep
    out = transformer_forward(src, prep, n_head)
    out = jax.block_until_ready(out)
    assert out.shape == (B, out_length, 2), out.shape
    assert bool(jnp.all(jnp.isfinite(out)))
    print("KERNEL_OK")
</pallas_src>

<mosaic_0001>
module attributes {stable_mosaic.version = 11 : i64} {
  func.func @_fused_forward_kernel(%arg0: memref<16x2xf32, #tpu.memory_space<vmem>>, %arg1: memref<8x32xf32, #tpu.memory_space<vmem>>, %arg2: memref<29x32xf32, #tpu.memory_space<vmem>>, %arg3: memref<2x32x96xf32, #tpu.memory_space<vmem>>, %arg4: memref<2x32x32xf32, #tpu.memory_space<vmem>>, %arg5: memref<2x32x64xf32, #tpu.memory_space<vmem>>, %arg6: memref<2x64x32xf32, #tpu.memory_space<vmem>>, %arg7: memref<24x96xf32, #tpu.memory_space<vmem>>, %arg8: memref<16x9xf32, #tpu.memory_space<vmem>>, %arg9: memref<33x2xf32, #tpu.memory_space<vmem>>, %arg10: memref<32x2xf32, #tpu.memory_space<vmem>>) attributes {dimension_semantics = [], scalar_prefetch = 0 : i64, scratch_operands = 0 : i64, tpu.core_type = #tpu.core_type<tc>} {
    %c0 = arith.constant 0 : index
    %c0_0 = arith.constant 0 : index
    %0 = vector.load %arg7[%c0, %c0_0] : memref<24x96xf32, #tpu.memory_space<vmem>>, vector<24x96xf32>
    %c0_1 = arith.constant 0 : index
    %c0_2 = arith.constant 0 : index
    %1 = vector.load %arg2[%c0_1, %c0_2] : memref<29x32xf32, #tpu.memory_space<vmem>>, vector<29x32xf32>
    %c0_3 = arith.constant 0 : index
    %c0_4 = arith.constant 0 : index
    %2 = vector.load %arg0[%c0_3, %c0_4] : memref<16x2xf32, #tpu.memory_space<vmem>>, vector<16x2xf32>
    %3 = vector.extract_strided_slice %1 {offsets = [0, 0], sizes = [2, 8], strides = [1, 1]} : vector<29x32xf32> to vector<2x8xf32>
    %cst = arith.constant dense<0.000000e+00> : vector<16x8xf32>
    %4 = tpu.matmul %2, %3, %cst {dimension_numbers = #tpu.dot_dimension_numbers<[1], [0], [0], [1], [0, 0, 1, 1], [], []>} : vector<16x2xf32>, vector<2x8xf32>, vector<16x8xf32> -> vector<16x8xf32>
    %5 = vector.extract_strided_slice %1 {offsets = [26, 0], sizes = [1, 8], strides = [1, 1]} : vector<29x32xf32> to vector<1x8xf32>
    %6 = vector.broadcast %5 : vector<1x8xf32> to vector<16x8xf32>
    %7 = arith.addf %4, %6 : vector<16x8xf32>
    %cst_5 = arith.constant 5.000000e-01 : f32
    %8 = vector.broadcast %cst_5 : f32 to vector<16x8xf32>
    %9 = arith.mulf %8, %7 : vector<16x8xf32>
    %cst_6 = arith.constant 0.707106769 : f32
    %10 = vector.broadcast %cst_6 : f32 to vector<16x8xf32>
    %11 = arith.mulf %7, %10 : vector<16x8xf32>
    %12 = math.erf %11 : vector<16x8xf32>
    %cst_7 = arith.constant 1.000000e+00 : f32
    %13 = vector.broadcast %cst_7 : f32 to vector<16x8xf32>
    %14 = arith.addf %13, %12 : vector<16x8xf32>
    %15 = arith.mulf %9, %14 : vector<16x8xf32>
    %16 = vector.extract_strided_slice %1 {offsets = [2, 0], sizes = [8, 16], strides = [1, 1]} : vector<29x32xf32> to vector<8x16xf32>
    %cst_8 = arith.constant dense<0.000000e+00> : vector<16x16xf32>
    %17 = tpu.matmul %15, %16, %cst_8 {dimension_numbers = #tpu.dot_dimension_numbers<[1], [0], [0], [1], [0, 0, 1, 1], [], []>} : vector<16x8xf32>, vector<8x16xf32>, vector<16x16xf32> -> vector<16x16xf32>
    %18 = vector.extract_strided_slice %1 {offsets = [27, 0], sizes = [1, 16], strides = [1, 1]} : vector<29x32xf32> to vector<1x16xf32>
    %19 = vector.broadcast %18 : vector<1x16xf32> to vector<16x16xf32>
    %20 = arith.addf %17, %19 : vector<16x16xf32>
    %cst_9 = arith.constant 5.000000e-01 : f32
    %21 = vector.broadcast %cst_9 : f32 to vector<16x16xf32>
    %22 = arith.mulf %21, %20 : vector<16x16xf32>
    %cst_10 = arith.constant 0.707106769 : f32
    %23 = vector.broadcast %cst_10 : f32 to vector<16x16xf32>
    %24 = arith.mulf %20, %23 : vector<16x16xf32>
    %25 = math.erf %24 : vector<16x16xf32>
    %cst_11 = arith.constant 1.000000e+00 : f32
    %26 = vector.broadcast %cst_11 : f32 to vector<16x16xf32>
    %27 = arith.addf %26, %25 : vector<16x16xf32>
    %28 = arith.mulf %22, %27 : vector<16x16xf32>
    %29 = vector.extract_strided_slice %1 {offsets = [10, 0], sizes = [16, 32], strides = [1, 1]} : vector<29x32xf32> to vector<16x32xf32>
    %cst_12 = arith.constant dense<0.000000e+00> : vector<16x32xf32>
    %30 = tpu.matmul %28, %29, %cst_12 {dimension_numbers = #tpu.dot_dimension_numbers<[1], [0], [0], [1], [0, 0, 1, 1], [], []>} : vector<16x16xf32>, vector<16x32xf32>, vector<16x32xf32> -> vector<16x32xf32>
    %31 = vector.extract_strided_slice %1 {offsets = [28, 0], sizes = [1, 32], strides = [1, 1]} : vector<29x32xf32> to vector<1x32xf32>
    %32 = vector.broadcast %31 : vector<1x32xf32> to vector<16x32xf32>
    %33 = arith.addf %30, %32 : vector<16x32xf32>
    %cst_13 = arith.constant 5.000000e-01 : f32
    %34 = vector.broadcast %cst_13 : f32 to vector<16x32xf32>
    %35 = arith.mulf %34, %33 : vector<16x32xf32>
    %cst_14 = arith.constant 0.707106769 : f32
    %36 = vector.broadcast %cst_14 : f32 to vector<16x32xf32>
    %37 = arith.mulf %33, %36 : vector<16x32xf32>
    %38 = math.erf %37 : vector<16x32xf32>
    %cst_15 = arith.constant 1.000000e+00 : f32
    %39 = vector.broadcast %cst_15 : f32 to vector<16x32xf32>
    %40 = arith.addf %39, %38 : vector<16x32xf32>
    %41 = arith.mulf %35, %40 : vector<16x32xf32>
    %42 = vector.extract_strided_slice %0 {offsets = [0, 0], sizes = [1, 32], strides = [1, 1]} : vector<24x96xf32> to vector<1x32xf32>
    %43 = vector.extract_strided_slice %0 {offsets = [1, 0], sizes = [1, 32], strides = [1, 1]} : vector<24x96xf32> to vector<1x32xf32>
    %cst_16 = arith.constant dense<0.000000e+00> : vector<32xf32>
    %44 = vector.multi_reduction <add>, %41, %cst_16 [0] : vector<16x32xf32> to vector<32xf32>
    %45 = vector.shape_cast %44 : vector<32xf32> to vector<1x32xf32>
    %cst_17 = arith.constant 1.600000e+01 : f32
    %46 = vector.broadcast %cst_17 : f32 to vector<1x32xf32>
    %47 = arith.divf %45, %46 : vector<1x32xf32>
    %48 = vector.broadcast %47 : vector<1x32xf32> to vector<16x32xf32>
    %49 = arith.subf %41, %48 : vector<16x32xf32>
    %50 = arith.mulf %49, %49 : vector<16x32xf32>
    %cst_18 = arith.constant dense<0.000000e+00> : vector<32xf32>
    %51 = vector.multi_reduction <add>, %50, %cst_18 [0] : vector<16x32xf32> to vector<32xf32>
    %52 = vector.shape_cast %51 : vector<32xf32> to vector<1x32xf32>
    %cst_19 = arith.constant 1.600000e+01 : f32
    %53 = vector.broadcast %cst_19 : f32 to vector<1x32xf32>
    %54 = arith.divf %52, %53 : vector<1x32xf32>
    %55 = vector.broadcast %47 : vector<1x32xf32> to vector<16x32xf32>
    %56 = arith.subf %41, %55 : vector<16x32xf32>
    %cst_20 = arith.constant 9.99999974E-6 : f32
    %57 = vector.broadcast %cst_20 : f32 to vector<1x32xf32>
    %58 = arith.addf %54, %57 : vector<1x32xf32>
    %59 = math.rsqrt %58 : vector<1x32xf32>
    %60 = vector.broadcast %59 : vector<1x32xf32> to vector<16x32xf32>
    %61 = arith.mulf %56, %60 : vector<16x32xf32>
    %62 = vector.broadcast %42 : vector<1x32xf32> to vector<16x32xf32>
    %63 = arith.mulf %61, %62 : vector<16x32xf32>
    %64 = vector.broadcast %43 : vector<1x32xf32> to vector<16x32xf32>
    %65 = arith.addf %63, %64 : vector<16x32xf32>
    %c0_21 = arith.constant 0 : index
    %c0_22 = arith.constant 0 : index
    %66 = vector.load %arg1[%c0_21, %c0_22] : memref<8x32xf32, #tpu.memory_space<vmem>>, vector<8x32xf32>
    %67 = tpu.concatenate %66, %66 in 0 : vector<8x32xf32>, vector<8x32xf32> -> vector<16x32xf32>
    %68 = arith.addf %65, %67 : vector<16x32xf32>
    %69 = vector.extract_strided_slice %0 {offsets = [2, 0], sizes = [1, 32], strides = [1, 1]} : vector<24x96xf32> to vector<1x32xf32>
    %70 = vector.extract_strided_slice %0 {offsets = [3, 0], sizes = [1, 32], strides = [1, 1]} : vector<24x96xf32> to vector<1x32xf32>
    %cst_23 = arith.constant dense<0.000000e+00> : vector<32xf32>
    %71 = vector.multi_reduction <add>, %68, %cst_23 [0] : vector<16x32xf32> to vector<32xf32>
    %72 = vector.shape_cast %71 : vector<32xf32> to vector<1x32xf32>
    %cst_24 = arith.constant 1.600000e+01 : f32
    %73 = vector.broadcast %cst_24 : f32 to vector<1x32xf32>
    %74 = arith.divf %72, %73 : vector<1x32xf32>
    %75 = vector.broadcast %74 : vector<1x32xf32> to vector<16x32xf32>
    %76 = arith.subf %68, %75 : vector<16x32xf32>
    %77 = arith.mulf %76, %76 : vector<16x32xf32>
    %cst_25 = arith.constant dense<0.000000e+00> : vector<32xf32>
    %78 = vector.multi_reduction <add>, %77, %cst_25 [0] : vector<16x32xf32> to vector<32xf32>
    %79 = vector.shape_cast %78 : vector<32xf32> to vector<1x32xf32>
    %cst_26 = arith.constant 1.600000e+01 : f32
    %80 = vector.broadcast %cst_26 : f32 to vector<1x32xf32>
    %81 = arith.divf %79, %80 : vector<1x32xf32>
    %82 = vector.broadcast %74 : vector<1x32xf32> to vector<16x32xf32>
    %83 = arith.subf %68, %82 : vector<16x32xf32>
    %cst_27 = arith.constant 9.99999974E-6 : f32
    %84 = vector.broadcast %cst_27 : f32 to vector<1x32xf32>
    %85 = arith.addf %81, %84 : vector<1x32xf32>
    %86 = math.rsqrt %85 : vector<1x32xf32>
    %87 = vector.broadcast %86 : vector<1x32xf32> to vector<16x32xf32>
    %88 = arith.mulf %83, %87 : vector<16x32xf32>
    %89 = vector.broadcast %69 : vector<1x32xf32> to vector<16x32xf32>
    %90 = arith.mulf %88, %89 : vector<16x32xf32>
    %91 = vector.broadcast %70 : vector<1x32xf32> to vector<16x32xf32>
    %92 = arith.addf %90, %91 : vector<16x32xf32>
    %c0_28 = arith.constant 0 : index
    %c0_29 = arith.constant 0 : index
    %c0_30 = arith.constant 0 : index
    %93 = vector.load %arg3[%c0_28, %c0_29, %c0_30] : memref<2x32x96xf32, #tpu.memory_space<vmem>>, vector<1x32x96xf32>
    %94 = vector.shape_cast %93 : vector<1x32x96xf32> to vector<32x96xf32>
    %cst_31 = arith.constant dense<0.000000e+00> : vector<16x96xf32>
    %95 = tpu.matmul %92, %94, %cst_31 {dimension_numbers = #tpu.dot_dimension_numbers<[1], [0], [0], [1], [0, 0, 1, 1], [], []>} : vector<16x32xf32>, vector<32x96xf32>, vector<16x96xf32> -> vector<16x96xf32>
    %96 = vector.extract_strided_slice %0 {offsets = [8, 0], sizes = [1, 96], strides = [1, 1]} : vector<24x96xf32> to vector<1x96xf32>
    %97 = vector.broadcast %96 : vector<1x96xf32> to vector<16x96xf32>
    %98 = arith.addf %95, %97 : vector<16x96xf32>
    %99 = vector.extract_strided_slice %98 {offsets = [0, 0], sizes = [8, 96], strides = [1, 1]} : vector<16x96xf32> to vector<8x96xf32>
    %100 = vector.extract_strided_slice %99 {offsets = [0, 0], sizes = [8, 16], strides = [1, 1]} : vector<8x96xf32> to vector<8x16xf32>
    %101 = vector.extract_strided_slice %99 {offsets = [0, 32], sizes = [8, 16], strides = [1, 1]} : vector<8x96xf32> to vector<8x16xf32>
    %102 = vector.extract_strided_slice %99 {offsets = [0, 64], sizes = [8, 16], strides = [1, 1]} : vector<8x96xf32> to vector<8x16xf32>
    %cst_32 = arith.constant dense<0.000000e+00> : vector<8x8xf32>
    %103 = tpu.matmul %100, %101, %cst_32 {dimension_numbers = #tpu.dot_dimension_numbers<[1], [1], [0], [0], [0, 0, 1, 0], [], []>} : vector<8x16xf32>, vector<8x16xf32>, vector<8x8xf32> -> vector<8x8xf32>
    %cst_33 = arith.constant 2.500000e-01 : f32
    %104 = vector.broadcast %cst_33 : f32 to vector<8x8xf32>
    %105 = arith.mulf %103, %104 : vector<8x8xf32>
    %cst_34 = arith.constant dense<0xFF800000> : vector<8xf32>
    %106 = vector.multi_reduction <maximumf>, %105, %cst_34 [1] : vector<8x8xf32> to vector<8xf32>
    %107 = vector.shape_cast %106 : vector<8xf32> to vector<8x1xf32>
    %108 = vector.broadcast %107 : vector<8x1xf32> to vector<8x8xf32>
    %109 = arith.subf %105, %108 : vector<8x8xf32>
    %110 = math.exp %109 : vector<8x8xf32>
    %cst_35 = arith.constant dense<0.000000e+00> : vector<8xf32>
    %111 = vector.multi_reduction <add>, %110, %cst_35 [1] : vector<8x8xf32> to vector<8xf32>
    %112 = vector.shape_cast %111 : vector<8xf32> to vector<8x1xf32>
    %113 = tpu.reciprocal %112 {approx = true} : vector<8x1xf32> -> vector<8x1xf32>
    %114 = vector.broadcast %113 : vector<8x1xf32> to vector<8x8xf32>
    %115 = arith.mulf %110, %114 : vector<8x8xf32>
    %cst_36 = arith.constant dense<0.000000e+00> : vector<8x16xf32>
    %116 = tpu.matmul %115, %102, %cst_36 {dimension_numbers = #tpu.dot_dimension_numbers<[1], [0], [0], [1], [0, 0, 1, 1], [], []>} : vector<8x8xf32>, vector<8x16xf32>, vector<8x16xf32> -> vector<8x16xf32>
    %117 = vector.extract_strided_slice %99 {offsets = [0, 16], sizes = [8, 16], strides = [1, 1]} : vector<8x96xf32> to vector<8x16xf32>
    %118 = vector.extract_strided_slice %99 {offsets = [0, 48], sizes = [8, 16], strides = [1, 1]} : vector<8x96xf32> to vector<8x16xf32>
    %119 = vector.extract_strided_slice %99 {offsets = [0, 80], sizes = [8, 16], strides = [1, 1]} : vector<8x96xf32> to vector<8x16xf32>
    %cst_37 = arith.constant dense<0.000000e+00> : vector<8x8xf32>
    %120 = tpu.matmul %117, %118, %cst_37 {dimension_numbers = #tpu.dot_dimension_numbers<[1], [1], [0], [0], [0, 0, 1, 0], [], []>} : vector<8x16xf32>, vector<8x16xf32>, vector<8x8xf32> -> vector<8x8xf32>
    %cst_38 = arith.constant 2.500000e-01 : f32
    %121 = vector.broadcast %cst_38 : f32 to vector<8x8xf32>
    %122 = arith.mulf %120, %121 : vector<8x8xf32>
    %cst_39 = arith.constant dense<0xFF800000> : vector<8xf32>
    %123 = vector.multi_reduction <maximumf>, %122, %cst_39 [1] : vector<8x8xf32> to vector<8xf32>
    %124 = vector.shape_cast %123 : vector<8xf32> to vector<8x1xf32>
    %125 = vector.broadcast %124 : vector<8x1xf32> to vector<8x8xf32>
    %126 = arith.subf %122, %125 : vector<8x8xf32>
    %127 = math.exp %126 : vector<8x8xf32>
    %cst_40 = arith.constant dense<0.000000e+00> : vector<8xf32>
    %128 = vector.multi_reduction <add>, %127, %cst_40 [1] : vector<8x8xf32> to vector<8xf32>
    %129 = vector.shape_cast %128 : vector<8xf32> to vector<8x1xf32>
    %130 = tpu.reciprocal %129 {approx = true} : vector<8x1xf32> -> vector<8x1xf32>
    %131 = vector.broadcast %130 : vector<8x1xf32> to vector<8x8xf32>
    %132 = arith.mulf %127, %131 : vector<8x8xf32>
    %cst_41 = arith.constant dense<0.000000e+00> : vector<8x16xf32>
    %133 = tpu.matmul %132, %119, %cst_41 {dimension_numbers = #tpu.dot_dimension_numbers<[1], [0], [0], [1], [0, 0, 1, 1], [], []>} : vector<8x8xf32>, vector<8x16xf32>, vector<8x16xf32> -> vector<8x16xf32>
    %134 = tpu.concatenate %116, %133 in 1 : vector<8x16xf32>, vector<8x16xf32> -> vector<8x32xf32>
    %135 = vector.extract_strided_slice %98 {offsets = [8, 0], sizes = [8, 96], strides = [1, 1]} : vector<16x96xf32> to vector<8x96xf32>
    %136 = vector.extract_strided_slice %135 {offsets = [0, 0], sizes = [8, 16], strides = [1, 1]} : vector<8x96xf32> to vector<8x16xf32>
    %137 = vector.extract_strided_slice %135 {offsets = [0, 32], sizes = [8, 16], strides = [1, 1]} : vector<8x96xf32> to vector<8x16xf32>
    %138 = vector.extract_strided_slice %135 {offsets = [0, 64], sizes = [8, 16], strides = [1, 1]} : vector<8x96xf32> to vector<8x16xf32>
    %cst_42 = arith.constant dense<0.000000e+00> : vector<8x8xf32>
    %139 = tpu.matmul %136, %137, %cst_42 {dimension_numbers = #tpu.dot_dimension_numbers<[1], [1], [0], [0], [0, 0, 1, 0], [], []>} : vector<8x16xf32>, vector<8x16xf32>, vector<8x8xf32> -> vector<8x8xf32>
    %cst_43 = arith.constant 2.500000e-01 : f32
    %140 = vector.broadcast %cst_43 : f32 to vector<8x8xf32>
    %141 = arith.mulf %139, %140 : vector<8x8xf32>
    %cst_44 = arith.constant dense<0xFF800000> : vector<8xf32>
    %142 = vector.multi_reduction <maximumf>, %141, %cst_44 [1] : vector<8x8xf32> to vector<8xf32>
    %143 = vector.shape_cast %142 : vector<8xf32> to vector<8x1xf32>
    %144 = vector.broadcast %143 : vector<8x1xf32> to vector<8x8xf32>
    %145 = arith.subf %141, %144 : vector<8x8xf32>
    %146 = math.exp %145 : vector<8x8xf32>
    %cst_45 = arith.constant dense<0.000000e+00> : vector<8xf32>
    %147 = vector.multi_reduction <add>, %146, %cst_45 [1] : vector<8x8xf32> to vector<8xf32>
    %148 = vector.shape_cast %147 : vector<8xf32> to vector<8x1xf32>
    %149 = tpu.reciprocal %148 {approx = true} : vector<8x1xf32> -> vector<8x1xf32>
    %150 = vector.broadcast %149 : vector<8x1xf32> to vector<8x8xf32>
    %151 = arith.mulf %146, %150 : vector<8x8xf32>
    %cst_46 = arith.constant dense<0.000000e+00> : vector<8x16xf32>
    %152 = tpu.matmul %151, %138, %cst_46 {dimension_numbers = #tpu.dot_dimension_numbers<[1], [0], [0], [1], [0, 0, 1, 1], [], []>} : vector<8x8xf32>, vector<8x16xf32>, vector<8x16xf32> -> vector<8x16xf32>
    %153 = vector.extract_strided_slice %135 {offsets = [0, 16], sizes = [8, 16], strides = [1, 1]} : vector<8x96xf32> to vector<8x16xf32>
    %154 = vector.extract_strided_slice %135 {offsets = [0, 48], sizes = [8, 16], strides = [1, 1]} : vector<8x96xf32> to vector<8x16xf32>
    %155 = vector.extract_strided_slice %135 {offsets = [0, 80], sizes = [8, 16], strides = [1, 1]} : vector<8x96xf32> to vector<8x16xf32>
    %cst_47 = arith.constant dense<0.000000e+00> : vector<8x8xf32>
    %156 = tpu.matmul %153, %154, %cst_47 {dimension_numbers = #tpu.dot_dimension_numbers<[1], [1], [0], [0], [0, 0, 1, 0], [], []>} : vector<8x16xf32>, vector<8x16xf32>, vector<8x8xf32> -> vector<8x8xf32>
    %cst_48 = arith.constant 2.500000e-01 : f32
    %157 = vector.broadcast %cst_48 : f32 to vector<8x8xf32>
    %158 = arith.mulf %156, %157 : vector<8x8xf32>
    %cst_49 = arith.constant dense<0xFF800000> : vector<8xf32>
    %159 = vector.multi_reduction <maximumf>, %158, %cst_49 [1] : vector<8x8xf32> to vector<8xf32>
    %160 = vector.shape_cast %159 : vector<8xf32> to vector<8x1xf32>
    %161 = vector.broadcast %160 : vector<8x1xf32> to vector<8x8xf32>
    %162 = arith.subf %158, %161 : vector<8x8xf32>
    %163 = math.exp %162 : vector<8x8xf32>
    %cst_50 = arith.constant dense<0.000000e+00> : vector<8xf32>
    %164 = vector.multi_reduction <add>, %163, %cst_50 [1] : vector<8x8xf32> to vector<8xf32>
    %165 = vector.shape_cast %164 : vector<8xf32> to vector<8x1xf32>
    %166 = tpu.reciprocal %165 {approx = true} : vector<8x1xf32> -> vector<8x1xf32>
    %167 = vector.broadcast %166 : vector<8x1xf32> to vector<8x8xf32>
    %168 = arith.mulf %163, %167 : vector<8x8xf32>
    %cst_51 = arith.constant dense<0.000000e+00> : vector<8x16xf32>
    %169 = tpu.matmul %168, %155, %cst_51 {dimension_numbers = #tpu.dot_dimension_numbers<[1], [0], [0], [1], [0, 0, 1, 1], [], []>} : vector<8x8xf32>, vector<8x16xf32>, vector<8x16xf32> -> vector<8x16xf32>
    %170 = tpu.concatenate %152, %169 in 1 : vector<8x16xf32>, vector<8x16xf32> -> vector<8x32xf32>
    %171 = tpu.concatenate %134, %170 in 0 : vector<8x32xf32>, vector<8x32xf32> -> vector<16x32xf32>
    %c0_52 = arith.constant 0 : index
    %c0_53 = arith.constant 0 : index
    %c0_54 = arith.constant 0 : index
    %172 = vector.load %arg4[%c0_52, %c0_53, %c0_54] : memref<2x32x32xf32, #tpu.memory_space<vmem>>, vector<1x32x32xf32>
    %173 = vector.shape_cast %172 : vector<1x32x32xf32> to vector<32x32xf32>
    %cst_55 = arith.constant dense<0.000000e+00> : vector<16x32xf32>
    %174 = tpu.matmul %171, %173, %cst_55 {dimension_numbers = #tpu.dot_dimension_numbers<[1], [0], [0], [1], [0, 0, 1, 1], [], []>} : vector<16x32xf32>, vector<32x32xf32>, vector<16x32xf32> -> vector<16x32xf32>
    %175 = vector.extract_strided_slice %0 {offsets = [9, 0], sizes = [1, 32], strides = [1, 1]} : vector<24x96xf32> to vector<1x32xf32>
    %176 = vector.broadcast %175 : vector<1x32xf32> to vector<16x32xf32>
    %177 = arith.addf %174, %176 : vector<16x32xf32>
    %178 = arith.addf %92, %177 : vector<16x32xf32>
    %179 = vector.extract_strided_slice %0 {offsets = [12, 0], sizes = [1, 32], strides = [1, 1]} : vector<24x96xf32> to vector<1x32xf32>
    %180 = vector.extract_strided_slice %0 {offsets = [13, 0], sizes = [1, 32], strides = [1, 1]} : vector<24x96xf32> to vector<1x32xf32>
    %cst_56 = arith.constant dense<0.000000e+00> : vector<16xf32>
    %181 = vector.multi_reduction <add>, %178, %cst_56 [1] : vector<16x32xf32> to vector<16xf32>
    %182 = vector.shape_cast %181 : vector<16xf32> to vector<16x1xf32>
    %cst_57 = arith.constant 3.200000e+01 : f32
    %183 = vector.broadcast %cst_57 : f32 to vector<16x1xf32>
    %184 = arith.divf %182, %183 : vector<16x1xf32>
    %185 = vector.broadcast %184 : vector<16x1xf32> to vector<16x32xf32>
    %186 = arith.subf %178, %185 : vector<16x32xf32>
    %187 = arith.mulf %186, %186 : vector<16x32xf32>
    %cst_58 = arith.constant dense<0.000000e+00> : vector<16xf32>
    %188 = vector.multi_reduction <add>, %187, %cst_58 [1] : vector<16x32xf32> to vector<16xf32>
    %189 = vector.shape_cast %188 : vector<16xf32> to vector<16x1xf32>
    %cst_59 = arith.constant 3.200000e+01 : f32
    %190 = vector.broadcast %cst_59 : f32 to vector<16x1xf32>
    %191 = arith.divf %189, %190 : vector<16x1xf32>
    %192 = vector.broadcast %184 : vector<16x1xf32> to vector<16x32xf32>
    %193 = arith.subf %178, %192 : vector<16x32xf32>
    %cst_60 = arith.constant 9.99999974E-6 : f32
    %194 = vector.broadcast %cst_60 : f32 to vector<16x1xf32>
    %195 = arith.addf %191, %194 : vector<16x1xf32>
    %196 = math.rsqrt %195 : vector<16x1xf32>
    %197 = vector.broadcast %196 : vector<16x1xf32> to vector<16x32xf32>
    %198 = arith.mulf %193, %197 : vector<16x32xf32>
    %199 = vector.broadcast %179 : vector<1x32xf32> to vector<16x32xf32>
    %200 = arith.mulf %198, %199 : vector<16x32xf32>
    %201 = vector.broadcast %180 : vector<1x32xf32> to vector<16x32xf32>
    %202 = arith.addf %200, %201 : vector<16x32xf32>
    %c0_61 = arith.constant 0 : index
    %c0_62 = arith.constant 0 : index
    %c0_63 = arith.constant 0 : index
    %203 = vector.load %arg5[%c0_61, %c0_62, %c0_63] : memref<2x32x64xf32, #tpu.memory_space<vmem>>, vector<1x32x64xf32>
    %204 = vector.shape_cast %203 : vector<1x32x64xf32> to vector<32x64xf32>
    %cst_64 = arith.constant dense<0.000000e+00> : vector<16x64xf32>
    %205 = tpu.matmul %202, %204, %cst_64 {dimension_numbers = #tpu.dot_dimension_numbers<[1], [0], [0], [1], [0, 0, 1, 1], [], []>} : vector<16x32xf32>, vector<32x64xf32>, vector<16x64xf32> -> vector<16x64xf32>
    %206 = vector.extract_strided_slice %0 {offsets = [10, 0], sizes = [1, 64], strides = [1, 1]} : vector<24x96xf32> to vector<1x64xf32>
    %207 = vector.broadcast %206 : vector<1x64xf32> to vector<16x64xf32>
    %208 = arith.addf %205, %207 : vector<16x64xf32>
    %cst_65 = arith.constant 0.000000e+00 : f32
    %209 = vector.broadcast %cst_65 : f32 to vector<16x64xf32>
    %210 = arith.maximumf %208, %209 : vector<16x64xf32>
    %c0_66 = arith.constant 0 : index
    %c0_67 = arith.constant 0 : index
    %c0_68 = arith.constant 0 : index
    %211 = vector.load %arg6[%c0_66, %c0_67, %c0_68] : memref<2x64x32xf32, #tpu.memory_space<vmem>>, vector<1x64x32xf32>
    %212 = vector.shape_cast %211 : vector<1x64x32xf32> to vector<64x32xf32>
    %cst_69 = arith.constant dense<0.000000e+00> : vector<16x32xf32>
    %213 = tpu.matmul %210, %212, %cst_69 {dimension_numbers = #tpu.dot_dimension_numbers<[1], [0], [0], [1], [0, 0, 1, 1], [], []>} : vector<16x64xf32>, vector<64x32xf32>, vector<16x32xf32> -> vector<16x32xf32>
    %214 = vector.extract_strided_slice %0 {offsets = [11, 0], sizes = [1, 32], strides = [1, 1]} : vector<24x96xf32> to vector<1x32xf32>
    %215 = vector.broadcast %214 : vector<1x32xf32> to vector<16x32xf32>
    %216 = arith.addf %213, %215 : vector<16x32xf32>
    %217 = arith.addf %202, %216 : vector<16x32xf32>
    %218 = vector.extract_strided_slice %0 {offsets = [14, 0], sizes = [1, 32], strides = [1, 1]} : vector<24x96xf32> to vector<1x32xf32>
    %219 = vector.extract_strided_slice %0 {offsets = [15, 0], sizes = [1, 32], strides = [1, 1]} : vector<24x96xf32> to vector<1x32xf32>
    %cst_70 = arith.constant dense<0.000000e+00> : vector<16xf32>
    %220 = vector.multi_reduction <add>, %217, %cst_70 [1] : vector<16x32xf32> to vector<16xf32>
    %221 = vector.shape_cast %220 : vector<16xf32> to vector<16x1xf32>
    %cst_71 = arith.constant 3.200000e+01 : f32
    %222 = vector.broadcast %cst_71 : f32 to vector<16x1xf32>
    %223 = arith.divf %221, %222 : vector<16x1xf32>
    %224 = vector.broadcast %223 : vector<16x1xf32> to vector<16x32xf32>
    %225 = arith.subf %217, %224 : vector<16x32xf32>
    %226 = arith.mulf %225, %225 : vector<16x32xf32>
    %cst_72 = arith.constant dense<0.000000e+00> : vector<16xf32>
    %227 = vector.multi_reduction <add>, %226, %cst_72 [1] : vector<16x32xf32> to vector<16xf32>
    %228 = vector.shape_cast %227 : vector<16xf32> to vector<16x1xf32>
    %cst_73 = arith.constant 3.200000e+01 : f32
    %229 = vector.broadcast %cst_73 : f32 to vector<16x1xf32>
    %230 = arith.divf %228, %229 : vector<16x1xf32>
    %231 = vector.broadcast %223 : vector<16x1xf32> to vector<16x32xf32>
    %232 = arith.subf %217, %231 : vector<16x32xf32>
    %cst_74 = arith.constant 9.99999974E-6 : f32
    %233 = vector.broadcast %cst_74 : f32 to vector<16x1xf32>
    %234 = arith.addf %230, %233 : vector<16x1xf32>
    %235 = math.rsqrt %234 : vector<16x1xf32>
    %236 = vector.broadcast %235 : vector<16x1xf32> to vector<16x32xf32>
    %237 = arith.mulf %232, %236 : vector<16x32xf32>
    %238 = vector.broadcast %218 : vector<1x32xf32> to vector<16x32xf32>
    %239 = arith.mulf %237, %238 : vector<16x32xf32>
    %240 = vector.broadcast %219 : vector<1x32xf32> to vector<16x32xf32>
    %241 = arith.addf %239, %240 : vector<16x32xf32>
    %c1 = arith.constant 1 : index
    %c0_75 = arith.constant 0 : index
    %c0_76 = arith.constant 0 : index
    %242 = vector.load %arg3[%c1, %c0_75, %c0_76] : memref<2x32x96xf32, #tpu.memory_space<vmem>>, vector<1x32x96xf32>
    %243 = vector.shape_cast %242 : vector<1x32x96xf32> to vector<32x96xf32>
    %cst_77 = arith.constant dense<0.000000e+00> : vector<16x96xf32>
    %244 = tpu.matmul %241, %243, %cst_77 {dimension_numbers = #tpu.dot_dimension_numbers<[1], [0], [0], [1], [0, 0, 1, 1], [], []>} : vector<16x32xf32>, vector<32x96xf32>, vector<16x96xf32> -> vector<16x96xf32>
    %245 = vector.extract_strided_slice %0 {offsets = [16, 0], sizes = [1, 96], strides = [1, 1]} : vector<24x96xf32> to vector<1x96xf32>
    %246 = vector.broadcast %245 : vector<1x96xf32> to vector<16x96xf32>
    %247 = arith.addf %244, %246 : vector<16x96xf32>
    %248 = vector.extract_strided_slice %247 {offsets = [0, 0], sizes = [8, 96], strides = [1, 1]} : vector<16x96xf32> to vector<8x96xf32>
    %249 = vector.extract_strided_slice %248 {offsets = [0, 0], sizes = [8, 16], strides = [1, 1]} : vector<8x96xf32> to vector<8x16xf32>
    %250 = vector.extract_strided_slice %248 {offsets = [0, 32], sizes = [8, 16], strides = [1, 1]} : vector<8x96xf32> to vector<8x16xf32>
    %251 = vector.extract_strided_slice %248 {offsets = [0, 64], sizes = [8, 16], strides = [1, 1]} : vector<8x96xf32> to vector<8x16xf32>
    %cst_78 = arith.constant dense<0.000000e+00> : vector<8x8xf32>
    %252 = tpu.matmul %249, %250, %cst_78 {dimension_numbers = #tpu.dot_dimension_numbers<[1], [1], [0], [0], [0, 0, 1, 0], [], []>} : vector<8x16xf32>, vector<8x16xf32>, vector<8x8xf32> -> vector<8x8xf32>
    %cst_79 = arith.constant 2.500000e-01 : f32
    %253 = vector.broadcast %cst_79 : f32 to vector<8x8xf32>
    %254 = arith.mulf %252, %253 : vector<8x8xf32>
    %cst_80 = arith.constant dense<0xFF800000> : vector<8xf32>
    %255 = vector.multi_reduction <maximumf>, %254, %cst_80 [1] : vector<8x8xf32> to vector<8xf32>
    %256 = vector.shape_cast %255 : vector<8xf32> to vector<8x1xf32>
    %257 = vector.broadcast %256 : vector<8x1xf32> to vector<8x8xf32>
    %258 = arith.subf %254, %257 : vector<8x8xf32>
    %259 = math.exp %258 : vector<8x8xf32>
    %cst_81 = arith.constant dense<0.000000e+00> : vector<8xf32>
    %260 = vector.multi_reduction <add>, %259, %cst_81 [1] : vector<8x8xf32> to vector<8xf32>
    %261 = vector.shape_cast %260 : vector<8xf32> to vector<8x1xf32>
    %262 = tpu.reciprocal %261 {approx = true} : vector<8x1xf32> -> vector<8x1xf32>
    %263 = vector.broadcast %262 : vector<8x1xf32> to vector<8x8xf32>
    %264 = arith.mulf %259, %263 : vector<8x8xf32>
    %cst_82 = arith.constant dense<0.000000e+00> : vector<8x16xf32>
    %265 = tpu.matmul %264, %251, %cst_82 {dimension_numbers = #tpu.dot_dimension_numbers<[1], [0], [0], [1], [0, 0, 1, 1], [], []>} : vector<8x8xf32>, vector<8x16xf32>, vector<8x16xf32> -> vector<8x16xf32>
    %266 = vector.extract_strided_slice %248 {offsets = [0, 16], sizes = [8, 16], strides = [1, 1]} : vector<8x96xf32> to vector<8x16xf32>
    %267 = vector.extract_strided_slice %248 {offsets = [0, 48], sizes = [8, 16], strides = [1, 1]} : vector<8x96xf32> to vector<8x16xf32>
    %268 = vector.extract_strided_slice %248 {offsets = [0, 80], sizes = [8, 16], strides = [1, 1]} : vector<8x96xf32> to vector<8x16xf32>
    %cst_83 = arith.constant dense<0.000000e+00> : vector<8x8xf32>
    %269 = tpu.matmul %266, %267, %cst_83 {dimension_numbers = #tpu.dot_dimension_numbers<[1], [1], [0], [0], [0, 0, 1, 0], [], []>} : vector<8x16xf32>, vector<8x16xf32>, vector<8x8xf32> -> vector<8x8xf32>
    %cst_84 = arith.constant 2.500000e-01 : f32
    %270 = vector.broadcast %cst_84 : f32 to vector<8x8xf32>
    %271 = arith.mulf %269, %270 : vector<8x8xf32>
    %cst_85 = arith.constant dense<0xFF800000> : vector<8xf32>
    %272 = vector.multi_reduction <maximumf>, %271, %cst_85 [1] : vector<8x8xf32> to vector<8xf32>
    %273 = vector.shape_cast %272 : vector<8xf32> to vector<8x1xf32>
    %274 = vector.broadcast %273 : vector<8x1xf32> to vector<8x8xf32>
    %275 = arith.subf %271, %274 : vector<8x8xf32>
    %276 = math.exp %275 : vector<8x8xf32>
    %cst_86 = arith.constant dense<0.000000e+00> : vector<8xf32>
    %277 = vector.multi_reduction <add>, %276, %cst_86 [1] : vector<8x8xf32> to vector<8xf32>
    %278 = vector.shape_cast %277 : vector<8xf32> to vector<8x1xf32>
    %279 = tpu.reciprocal %278 {approx = true} : vector<8x1xf32> -> vector<8x1xf32>
    %280 = vector.broadcast %279 : vector<8x1xf32> to vector<8x8xf32>
    %281 = arith.mulf %276, %280 : vector<8x8xf32>
    %cst_87 = arith.constant dense<0.000000e+00> : vector<8x16xf32>
    %282 = tpu.matmul %281, %268, %cst_87 {dimension_numbers = #tpu.dot_dimension_numbers<[1], [0], [0], [1], [0, 0, 1, 1], [], []>} : vector<8x8xf32>, vector<8x16xf32>, vector<8x16xf32> -> vector<8x16xf32>
    %283 = tpu.concatenate %265, %282 in 1 : vector<8x16xf32>, vector<8x16xf32> -> vector<8x32xf32>
    %284 = vector.extract_strided_slice %247 {offsets = [8, 0], sizes = [8, 96], strides = [1, 1]} : vector<16x96xf32> to vector<8x96xf32>
    %285 = vector.extract_strided_slice %284 {offsets = [0, 0], sizes = [8, 16], strides = [1, 1]} : vector<8x96xf32> to vector<8x16xf32>
    %286 = vector.extract_strided_slice %284 {offsets = [0, 32], sizes = [8, 16], strides = [1, 1]} : vector<8x96xf32> to vector<8x16xf32>
    %287 = vector.extract_strided_slice %284 {offsets = [0, 64], sizes = [8, 16], strides = [1, 1]} : vector<8x96xf32> to vector<8x16xf32>
    %cst_88 = arith.constant dense<0.000000e+00> : vector<8x8xf32>
    %288 = tpu.matmul %285, %286, %cst_88 {dimension_numbers = #tpu.dot_dimension_numbers<[1], [1], [0], [0], [0, 0, 1, 0], [], []>} : vector<8x16xf32>, vector<8x16xf32>, vector<8x8xf32> -> vector<8x8xf32>
    %cst_89 = arith.constant 2.500000e-01 : f32
    %289 = vector.broadcast %cst_89 : f32 to vector<8x8xf32>
    %290 = arith.mulf %288, %289 : vector<8x8xf32>
    %cst_90 = arith.constant dense<0xFF800000> : vector<8xf32>
    %291 = vector.multi_reduction <maximumf>, %290, %cst_90 [1] : vector<8x8xf32> to vector<8xf32>
    %292 = vector.shape_cast %291 : vector<8xf32> to vector<8x1xf32>
    %293 = vector.broadcast %292 : vector<8x1xf32> to vector<8x8xf32>
    %294 = arith.subf %290, %293 : vector<8x8xf32>
    %295 = math.exp %294 : vector<8x8xf32>
    %cst_91 = arith.constant dense<0.000000e+00> : vector<8xf32>
    %296 = vector.multi_reduction <add>, %295, %cst_91 [1] : vector<8x8xf32> to vector<8xf32>
    %297 = vector.shape_cast %296 : vector<8xf32> to vector<8x1xf32>
    %298 = tpu.reciprocal %297 {approx = true} : vector<8x1xf32> -> vector<8x1xf32>
    %299 = vector.broadcast %298 : vector<8x1xf32> to vector<8x8xf32>
    %300 = arith.mulf %295, %299 : vector<8x8xf32>
    %cst_92 = arith.constant dense<0.000000e+00> : vector<8x16xf32>
    %301 = tpu.matmul %300, %287, %cst_92 {dimension_numbers = #tpu.dot_dimension_numbers<[1], [0], [0], [1], [0, 0, 1, 1], [], []>} : vector<8x8xf32>, vector<8x16xf32>, vector<8x16xf32> -> vector<8x16xf32>
    %302 = vector.extract_strided_slice %284 {offsets = [0, 16], sizes = [8, 16], strides = [1, 1]} : vector<8x96xf32> to vector<8x16xf32>
    %303 = vector.extract_strided_slice %284 {offsets = [0, 48], sizes = [8, 16], strides = [1, 1]} : vector<8x96xf32> to vector<8x16xf32>
    %304 = vector.extract_strided_slice %284 {offsets = [0, 80], sizes = [8, 16], strides = [1, 1]} : vector<8x96xf32> to vector<8x16xf32>
    %cst_93 = arith.constant dense<0.000000e+00> : vector<8x8xf32>
    %305 = tpu.matmul %302, %303, %cst_93 {dimension_numbers = #tpu.dot_dimension_numbers<[1], [1], [0], [0], [0, 0, 1, 0], [], []>} : vector<8x16xf32>, vector<8x16xf32>, vector<8x8xf32> -> vector<8x8xf32>
    %cst_94 = arith.constant 2.500000e-01 : f32
    %306 = vector.broadcast %cst_94 : f32 to vector<8x8xf32>
    %307 = arith.mulf %305, %306 : vector<8x8xf32>
    %cst_95 = arith.constant dense<0xFF800000> : vector<8xf32>
    %308 = vector.multi_reduction <maximumf>, %307, %cst_95 [1] : vector<8x8xf32> to vector<8xf32>
    %309 = vector.shape_cast %308 : vector<8xf32> to vector<8x1xf32>
    %310 = vector.broadcast %309 : vector<8x1xf32> to vector<8x8xf32>
    %311 = arith.subf %307, %310 : vector<8x8xf32>
    %312 = math.exp %311 : vector<8x8xf32>
    %cst_96 = arith.constant dense<0.000000e+00> : vector<8xf32>
    %313 = vector.multi_reduction <add>, %312, %cst_96 [1] : vector<8x8xf32> to vector<8xf32>
    %314 = vector.shape_cast %313 : vector<8xf32> to vector<8x1xf32>
    %315 = tpu.reciprocal %314 {approx = true} : vector<8x1xf32> -> vector<8x1xf32>
    %316 = vector.broadcast %315 : vector<8x1xf32> to vector<8x8xf32>
    %317 = arith.mulf %312, %316 : vector<8x8xf32>
    %cst_97 = arith.constant dense<0.000000e+00> : vector<8x16xf32>
    %318 = tpu.matmul %317, %304, %cst_97 {dimension_numbers = #tpu.dot_dimension_numbers<[1], [0], [0], [1], [0, 0, 1, 1], [], []>} : vector<8x8xf32>, vector<8x16xf32>, vector<8x16xf32> -> vector<8x16xf32>
    %319 = tpu.concatenate %301, %318 in 1 : vector<8x16xf32>, vector<8x16xf32> -> vector<8x32xf32>
    %320 = tpu.concatenate %283, %319 in 0 : vector<8x32xf32>, vector<8x32xf32> -> vector<16x32xf32>
    %c1_98 = arith.constant 1 : index
    %c0_99 = arith.constant 0 : index
    %c0_100 = arith.constant 0 : index
    %321 = vector.load %arg4[%c1_98, %c0_99, %c0_100] : memref<2x32x32xf32, #tpu.memory_space<vmem>>, vector<1x32x32xf32>
    %322 = vector.shape_cast %321 : vector<1x32x32xf32> to vector<32x32xf32>
    %cst_101 = arith.constant dense<0.000000e+00> : vector<16x32xf32>
    %323 = tpu.matmul %320, %322, %cst_101 {dimension_numbers = #tpu.dot_dimension_numbers<[1], [0], [0], [1], [0, 0, 1, 1], [], []>} : vector<16x32xf32>, vector<32x32xf32>, vector<16x32xf32> -> vector<16x32xf32>
    %324 = vector.extract_strided_slice %0 {offsets = [17, 0], sizes = [1, 32], strides = [1, 1]} : vector<24x96xf32> to vector<1x32xf32>
    %325 = vector.broadcast %324 : vector<1x32xf32> to vector<16x32xf32>
    %326 = arith.addf %323, %325 : vector<16x32xf32>
    %327 = arith.addf %241, %326 : vector<16x32xf32>
    %328 = vector.extract_strided_slice %0 {offsets = [20, 0], sizes = [1, 32], strides = [1, 1]} : vector<24x96xf32> to vector<1x32xf32>
    %329 = vector.extract_strided_slice %0 {offsets = [21, 0], sizes = [1, 32], strides = [1, 1]} : vector<24x96xf32> to vector<1x32xf32>
    %cst_102 = arith.constant dense<0.000000e+00> : vector<16xf32>
    %330 = vector.multi_reduction <add>, %327, %cst_102 [1] : vector<16x32xf32> to vector<16xf32>
    %331 = vector.shape_cast %330 : vector<16xf32> to vector<16x1xf32>
    %cst_103 = arith.constant 3.200000e+01 : f32
    %332 = vector.broadcast %cst_103 : f32 to vector<16x1xf32>
    %333 = arith.divf %331, %332 : vector<16x1xf32>
    %334 = vector.broadcast %333 : vector<16x1xf32> to vector<16x32xf32>
    %335 = arith.subf %327, %334 : vector<16x32xf32>
    %336 = arith.mulf %335, %335 : vector<16x32xf32>
    %cst_104 = arith.constant dense<0.000000e+00> : vector<16xf32>
    %337 = vector.multi_reduction <add>, %336, %cst_104 [1] : vector<16x32xf32> to vector<16xf32>
    %338 = vector.shape_cast %337 : vector<16xf32> to vector<16x1xf32>
    %cst_105 = arith.constant 3.200000e+01 : f32
    %339 = vector.broadcast %cst_105 : f32 to vector<16x1xf32>
    %340 = arith.divf %338, %339 : vector<16x1xf32>
    %341 = vector.broadcast %333 : vector<16x1xf32> to vector<16x32xf32>
    %342 = arith.subf %327, %341 : vector<16x32xf32>
    %cst_106 = arith.constant 9.99999974E-6 : f32
    %343 = vector.broadcast %cst_106 : f32 to vector<16x1xf32>
    %344 = arith.addf %340, %343 : vector<16x1xf32>
    %345 = math.rsqrt %344 : vector<16x1xf32>
    %346 = vector.broadcast %345 : vector<16x1xf32> to vector<16x32xf32>
    %347 = arith.mulf %342, %346 : vector<16x32xf32>
    %348 = vector.broadcast %328 : vector<1x32xf32> to vector<16x32xf32>
    %349 = arith.mulf %347, %348 : vector<16x32xf32>
    %350 = vector.broadcast %329 : vector<1x32xf32> to vector<16x32xf32>
    %351 = arith.addf %349, %350 : vector<16x32xf32>
    %c1_107 = arith.constant 1 : index
    %c0_108 = arith.constant 0 : index
    %c0_109 = arith.constant 0 : index
    %352 = vector.load %arg5[%c1_107, %c0_108, %c0_109] : memref<2x32x64xf32, #tpu.memory_space<vmem>>, vector<1x32x64xf32>
    %353 = vector.shape_cast %352 : vector<1x32x64xf32> to vector<32x64xf32>
    %cst_110 = arith.constant dense<0.000000e+00> : vector<16x64xf32>
    %354 = tpu.matmul %351, %353, %cst_110 {dimension_numbers = #tpu.dot_dimension_numbers<[1], [0], [0], [1], [0, 0, 1, 1], [], []>} : vector<16x32xf32>, vector<32x64xf32>, vector<16x64xf32> -> vector<16x64xf32>
    %355 = vector.extract_strided_slice %0 {offsets = [18, 0], sizes = [1, 64], strides = [1, 1]} : vector<24x96xf32> to vector<1x64xf32>
    %356 = vector.broadcast %355 : vector<1x64xf32> to vector<16x64xf32>
    %357 = arith.addf %354, %356 : vector<16x64xf32>
    %cst_111 = arith.constant 0.000000e+00 : f32
    %358 = vector.broadcast %cst_111 : f32 to vector<16x64xf32>
    %359 = arith.maximumf %357, %358 : vector<16x64xf32>
    %c1_112 = arith.constant 1 : index
    %c0_113 = arith.constant 0 : index
    %c0_114 = arith.constant 0 : index
    %360 = vector.load %arg6[%c1_112, %c0_113, %c0_114] : memref<2x64x32xf32, #tpu.memory_space<vmem>>, vector<1x64x32xf32>
    %361 = vector.shape_cast %360 : vector<1x64x32xf32> to vector<64x32xf32>
    %cst_115 = arith.constant dense<0.000000e+00> : vector<16x32xf32>
    %362 = tpu.matmul %359, %361, %cst_115 {dimension_numbers = #tpu.dot_dimension_numbers<[1], [0], [0], [1], [0, 0, 1, 1], [], []>} : vector<16x64xf32>, vector<64x32xf32>, vector<16x32xf32> -> vector<16x32xf32>
    %363 = vector.extract_strided_slice %0 {offsets = [19, 0], sizes = [1, 32], strides = [1, 1]} : vector<24x96xf32> to vector<1x32xf32>
    %364 = vector.broadcast %363 : vector<1x32xf32> to vector<16x32xf32>
    %365 = arith.addf %362, %364 : vector<16x32xf32>
    %366 = arith.addf %351, %365 : vector<16x32xf32>
    %367 = vector.extract_strided_slice %0 {offsets = [22, 0], sizes = [1, 32], strides = [1, 1]} : vector<24x96xf32> to vector<1x32xf32>
    %368 = vector.extract_strided_slice %0 {offsets = [23, 0], sizes = [1, 32], strides = [1, 1]} : vector<24x96xf32> to vector<1x32xf32>
    %cst_116 = arith.constant dense<0.000000e+00> : vector<16xf32>
    %369 = vector.multi_reduction <add>, %366, %cst_116 [1] : vector<16x32xf32> to vector<16xf32>
    %370 = vector.shape_cast %369 : vector<16xf32> to vector<16x1xf32>
    %cst_117 = arith.constant 3.200000e+01 : f32
    %371 = vector.broadcast %cst_117 : f32 to vector<16x1xf32>
    %372 = arith.divf %370, %371 : vector<16x1xf32>
    %373 = vector.broadcast %372 : vector<16x1xf32> to vector<16x32xf32>
    %374 = arith.subf %366, %373 : vector<16x32xf32>
    %375 = arith.mulf %374, %374 : vector<16x32xf32>
    %cst_118 = arith.constant dense<0.000000e+00> : vector<16xf32>
    %376 = vector.multi_reduction <add>, %375, %cst_118 [1] : vector<16x32xf32> to vector<16xf32>
    %377 = vector.shape_cast %376 : vector<16xf32> to vector<16x1xf32>
    %cst_119 = arith.constant 3.200000e+01 : f32
    %378 = vector.broadcast %cst_119 : f32 to vector<16x1xf32>
    %379 = arith.divf %377, %378 : vector<16x1xf32>
    %380 = vector.broadcast %372 : vector<16x1xf32> to vector<16x32xf32>
    %381 = arith.subf %366, %380 : vector<16x32xf32>
    %cst_120 = arith.constant 9.99999974E-6 : f32
    %382 = vector.broadcast %cst_120 : f32 to vector<16x1xf32>
    %383 = arith.addf %379, %382 : vector<16x1xf32>
    %384 = math.rsqrt %383 : vector<16x1xf32>
    %385 = vector.broadcast %384 : vector<16x1xf32> to vector<16x32xf32>
    %386 = arith.mulf %381, %385 : vector<16x32xf32>
    %387 = vector.broadcast %367 : vector<1x32xf32> to vector<16x32xf32>
    %388 = arith.mulf %386, %387 : vector<16x32xf32>
    %389 = vector.broadcast %368 : vector<1x32xf32> to vector<16x32xf32>
    %390 = arith.addf %388, %389 : vector<16x32xf32>
    %391 = vector.extract_strided_slice %0 {offsets = [4, 0], sizes = [1, 32], strides = [1, 1]} : vector<24x96xf32> to vector<1x32xf32>
    %392 = vector.extract_strided_slice %0 {offsets = [5, 0], sizes = [1, 32], strides = [1, 1]} : vector<24x96xf32> to vector<1x32xf32>
    %cst_121 = arith.constant dense<0.000000e+00> : vector<32xf32>
    %393 = vector.multi_reduction <add>, %390, %cst_121 [0] : vector<16x32xf32> to vector<32xf32>
    %394 = vector.shape_cast %393 : vector<32xf32> to vector<1x32xf32>
    %cst_122 = arith.constant 1.600000e+01 : f32
    %395 = vector.broadcast %cst_122 : f32 to vector<1x32xf32>
    %396 = arith.divf %394, %395 : vector<1x32xf32>
    %397 = vector.broadcast %396 : vector<1x32xf32> to vector<16x32xf32>
    %398 = arith.subf %390, %397 : vector<16x32xf32>
    %399 = arith.mulf %398, %398 : vector<16x32xf32>
    %cst_123 = arith.constant dense<0.000000e+00> : vector<32xf32>
    %400 = vector.multi_reduction <add>, %399, %cst_123 [0] : vector<16x32xf32> to vector<32xf32>
    %401 = vector.shape_cast %400 : vector<32xf32> to vector<1x32xf32>
    %cst_124 = arith.constant 1.600000e+01 : f32
    %402 = vector.broadcast %cst_124 : f32 to vector<1x32xf32>
    %403 = arith.divf %401, %402 : vector<1x32xf32>
    %404 = vector.broadcast %396 : vector<1x32xf32> to vector<16x32xf32>
    %405 = arith.subf %390, %404 : vector<16x32xf32>
    %cst_125 = arith.constant 9.99999974E-6 : f32
    %406 = vector.broadcast %cst_125 : f32 to vector<1x32xf32>
    %407 = arith.addf %403, %406 : vector<1x32xf32>
    %408 = math.rsqrt %407 : vector<1x32xf32>
    %409 = vector.broadcast %408 : vector<1x32xf32> to vector<16x32xf32>
    %410 = arith.mulf %405, %409 : vector<16x32xf32>
    %411 = vector.broadcast %391 : vector<1x32xf32> to vector<16x32xf32>
    %412 = arith.mulf %410, %411 : vector<16x32xf32>
    %413 = vector.broadcast %392 : vector<1x32xf32> to vector<16x32xf32>
    %414 = arith.addf %412, %413 : vector<16x32xf32>
    %c0_126 = arith.constant 0 : index
    %c0_127 = arith.constant 0 : index
    %415 = vector.load %arg8[%c0_126, %c0_127] : memref<16x9xf32, #tpu.memory_space<vmem>>, vector<16x9xf32>
    %416 = vector.extract_strided_slice %415 {offsets = [0, 0], sizes = [16, 8], strides = [1, 1]} : vector<16x9xf32> to vector<16x8xf32>
    %417 = vector.extract_strided_slice %415 {offsets = [0, 8], sizes = [16, 1], strides = [1, 1]} : vector<16x9xf32> to vector<16x1xf32>
    %418 = vector.extract_strided_slice %414 {offsets = [0, 0], sizes = [8, 32], strides = [1, 1]} : vector<16x32xf32> to vector<8x32xf32>
    %419 = vector.extract_strided_slice %414 {offsets = [8, 0], sizes = [8, 32], strides = [1, 1]} : vector<16x32xf32> to vector<8x32xf32>
    %420 = tpu.concatenate %418, %419 in 1 : vector<8x32xf32>, vector<8x32xf32> -> vector<8x64xf32>
    %cst_128 = arith.constant dense<0.000000e+00> : vector<16x64xf32>
    %421 = tpu.matmul %416, %420, %cst_128 {dimension_numbers = #tpu.dot_dimension_numbers<[1], [0], [0], [1], [0, 0, 1, 1], [], []>} : vector<16x8xf32>, vector<8x64xf32>, vector<16x64xf32> -> vector<16x64xf32>
    %422 = vector.broadcast %417 : vector<16x1xf32> to vector<16x64xf32>
    %423 = arith.addf %421, %422 : vector<16x64xf32>
    %cst_129 = arith.constant 5.000000e-01 : f32
    %424 = vector.broadcast %cst_129 : f32 to vector<16x64xf32>
    %425 = arith.mulf %424, %423 : vector<16x64xf32>
    %cst_130 = arith.constant 0.707106769 : f32
    %426 = vector.broadcast %cst_130 : f32 to vector<16x64xf32>
    %427 = arith.mulf %423, %426 : vector<16x64xf32>
    %428 = math.erf %427 : vector<16x64xf32>
    %cst_131 = arith.constant 1.000000e+00 : f32
    %429 = vector.broadcast %cst_131 : f32 to vector<16x64xf32>
    %430 = arith.addf %429, %428 : vector<16x64xf32>
    %431 = arith.mulf %425, %430 : vector<16x64xf32>
    %432 = vector.extract_strided_slice %431 {offsets = [0, 0], sizes = [16, 32], strides = [1, 1]} : vector<16x64xf32> to vector<16x32xf32>
    %433 = vector.extract_strided_slice %431 {offsets = [0, 32], sizes = [16, 32], strides = [1, 1]} : vector<16x64xf32> to vector<16x32xf32>
    %434 = tpu.concatenate %432, %433 in 0 : vector<16x32xf32>, vector<16x32xf32> -> vector<32x32xf32>
    %435 = vector.extract_strided_slice %0 {offsets = [6, 0], sizes = [1, 32], strides = [1, 1]} : vector<24x96xf32> to vector<1x32xf32>
    %436 = vector.extract_strided_slice %0 {offsets = [7, 0], sizes = [1, 32], strides = [1, 1]} : vector<24x96xf32> to vector<1x32xf32>
    %cst_132 = arith.constant dense<0.000000e+00> : vector<32xf32>
    %437 = vector.multi_reduction <add>, %434, %cst_132 [0] : vector<32x32xf32> to vector<32xf32>
    %438 = vector.shape_cast %437 : vector<32xf32> to vector<1x32xf32>
    %cst_133 = arith.constant 3.200000e+01 : f32
    %439 = vector.broadcast %cst_133 : f32 to vector<1x32xf32>
    %440 = arith.divf %438, %439 : vector<1x32xf32>
    %441 = vector.broadcast %440 : vector<1x32xf32> to vector<32x32xf32>
    %442 = arith.subf %434, %441 : vector<32x32xf32>
    %443 = arith.mulf %442, %442 : vector<32x32xf32>
    %cst_134 = arith.constant dense<0.000000e+00> : vector<32xf32>
    %444 = vector.multi_reduction <add>, %443, %cst_134 [0] : vector<32x32xf32> to vector<32xf32>
    %445 = vector.shape_cast %444 : vector<32xf32> to vector<1x32xf32>
    %cst_135 = arith.constant 3.200000e+01 : f32
    %446 = vector.broadcast %cst_135 : f32 to vector<1x32xf32>
    %447 = arith.divf %445, %446 : vector<1x32xf32>
    %448 = vector.broadcast %440 : vector<1x32xf32> to vector<32x32xf32>
    %449 = arith.subf %434, %448 : vector<32x32xf32>
    %cst_136 = arith.constant 9.99999974E-6 : f32
    %450 = vector.broadcast %cst_136 : f32 to vector<1x32xf32>
    %451 = arith.addf %447, %450 : vector<1x32xf32>
    %452 = math.rsqrt %451 : vector<1x32xf32>
    %453 = vector.broadcast %452 : vector<1x32xf32> to vector<32x32xf32>
    %454 = arith.mulf %449, %453 : vector<32x32xf32>
    %455 = vector.broadcast %435 : vector<1x32xf32> to vector<32x32xf32>
    %456 = arith.mulf %454, %455 : vector<32x32xf32>
    %457 = vector.broadcast %436 : vector<1x32xf32> to vector<32x32xf32>
    %458 = arith.addf %456, %457 : vector<32x32xf32>
    %c0_137 = arith.constant 0 : index
    %c0_138 = arith.constant 0 : index
    %459 = vector.load %arg9[%c0_137, %c0_138] : memref<33x2xf32, #tpu.memory_space<vmem>>, vector<33x2xf32>
    %460 = vector.extract_strided_slice %459 {offsets = [0, 0], sizes = [32, 2], strides = [1, 1]} : vector<33x2xf32> to vector<32x2xf32>
    %cst_139 = arith.constant dense<0.000000e+00> : vector<32x2xf32>
    %461 = tpu.matmul %458, %460, %cst_139 {dimension_numbers = #tpu.dot_dimension_numbers<[1], [0], [0], [1], [0, 0, 1, 1], [], []>} : vector<32x32xf32>, vector<32x2xf32>, vector<32x2xf32> -> vector<32x2xf32>
    %462 = vector.extract_strided_slice %459 {offsets = [32, 0], sizes = [1, 2], strides = [1, 1]} : vector<33x2xf32> to vector<1x2xf32>
    %463 = vector.broadcast %462 : vector<1x2xf32> to vector<32x2xf32>
    %464 = arith.addf %461, %463 : vector<32x2xf32>
    %c0_140 = arith.constant 0 : index
    %c0_141 = arith.constant 0 : index
    %465 = vector.load %arg10[%c0_140, %c0_141] : memref<32x2xf32, #tpu.memory_space<vmem>>, vector<32x2xf32>
    tpu.vector_store %arg10[%c0_140, %c0_141], %464 {strides = array<i32>} : memref<32x2xf32, #tpu.memory_space<vmem>>, vector<32x2xf32>,
    return
  }
}

</mosaic_0001>

<llo_original>
// kernel: tpu_custom_call.1
$region0: #{tpu_custom_call.1}
  #allocation0 [shape = 'u32[]', space=smem, size = 0x4, offset = 0x4, fixed_abs, tag = 'smem constant byte address 0x4 - core index']
  #allocation1 [shape = 'u32[144,128]{1,0:T(1,128)}', space=vmem, size = 0x12000, scoped, tag = 'internal scratch']
  %s0 = inlined_call_operand.vmem [shape: f32[16,2], index: 0, kind: input, shape index: {}]
  %s1 = inlined_call_operand.hbm [shape: f32[8,32], index: 1, kind: input, shape index: {}]
  %s2 = inlined_call_operand.hbm [shape: f32[29,32], index: 2, kind: input, shape index: {}]
  %s3 = inlined_call_operand.vmem [shape: f32[2,32,96], index: 3, kind: input, shape index: {}]
  %s4 = inlined_call_operand.vmem [shape: f32[2,32,32], index: 4, kind: input, shape index: {}]
  %s5 = inlined_call_operand.vmem [shape: f32[2,32,64], index: 5, kind: input, shape index: {}]
  %s6 = inlined_call_operand.vmem [shape: f32[2,64,32], index: 6, kind: input, shape index: {}]
  %s7 = inlined_call_operand.hbm [shape: f32[24,96], index: 7, kind: input, shape index: {}]
  %s8 = inlined_call_operand.hbm [shape: f32[16,9], index: 8, kind: input, shape index: {}]
  %s9 = inlined_call_operand.vmem [shape: f32[33,2], index: 9, kind: input, shape index: {}]
  %s10 = inlined_call_operand.vmem [shape: f32[32,2], index: 10, kind: output, shape index: {}]
  %s11 = sld [smem:[#allocation0]]
  $region66: #{tpu_custom_call.1} parent=0
    _
  %s13 = ssub.s32 1, %s11
  %s14 = scalar_select 0, %s13, %s11
  $region1: #{tpu_custom_call.1} parent=0
    #allocation2 [shape = 'u8[4096]{0}', space=vmem, size = 0x1000, scoped, tag = 'input window, operand 1, single buffered']
    #allocation3 [shape = 's32[1]{0}', space=sflag, size = 0x4, scoped, tag = 'scoped memory for tpu_custom_call.1']
    #allocation4 [shape = 'u8[16384]{0}', space=vmem, size = 0x4000, scoped, tag = 'input window, operand 2, single buffered']
    #allocation5 [shape = 's32[1]{0}', space=sflag, size = 0x4, scoped, tag = 'scoped memory for tpu_custom_call.1']
    #allocation6 [shape = 'u8[12288]{0}', space=vmem, size = 0x3000, scoped, tag = 'input window, operand 7, single buffered']
    #allocation7 [shape = 'u8[8192]{0}', space=vmem, size = 0x2000, scoped, tag = 'input window, operand 8, single buffered']
    #allocation8 [shape = 's32[1]{0}', space=sflag, size = 0x4, scoped, tag = 'scoped memory for tpu_custom_call.1']
    %15 = vsyncpa [#allocation3], 0
    %16 = vsyncpa [#allocation5], 0
    %17 = vsyncpa [#allocation8], 0
    // Predicated region
    $region2: #{tpu_custom_call.1} parent=1 // pred_check
      _
    $region3: #{tpu_custom_call.1} parent=1 // pred_check_branch
      %19 = sbr.rel (0) target = $region5
    $region4: #{tpu_custom_call.1} parent=1 // pred_region
      _
    $region5: #{tpu_custom_call.1} parent=1 // pred_fallthru
      _
    // Predicated region
    $region6: #{tpu_custom_call.1} parent=1 // pred_check
      _
    $region7: #{tpu_custom_call.1} parent=1 // pred_check_branch
      %21 = sbr.rel (0) target = $region9
    $region8: #{tpu_custom_call.1} parent=1 // pred_region
      %s23 = ssub.s32 128, 128
      %24 = vsyncadd [#allocation3], %s23
      %s26 = sshll.u32 [#allocation2], 4
      %s27 = int_to_ptr.vmem [resolvable:$true] %s26
      %29 = dma.hbm_to_vmem [thread:$0]  %s1, 128, %s27, [#allocation3]
    $region9: #{tpu_custom_call.1} parent=1 // pred_fallthru
      _
    // Predicated region
    $region10: #{tpu_custom_call.1} parent=1 // pred_check
      _
    $region11: #{tpu_custom_call.1} parent=1 // pred_check_branch
      %31 = sbr.rel (0) target = $region13
    $region12: #{tpu_custom_call.1} parent=1 // pred_region
      %s33 = ssub.s32 512, 512
      %34 = vsyncadd [#allocation5], %s33
      %s35 = sshll.u32 [#allocation4], 4
      %s36 = int_to_ptr.vmem [resolvable:$true] %s35
      %41 = dma.hbm_to_vmem [thread:$0]  %s2, 512, %s36, [#allocation5], 128, 128, 8
    $region13: #{tpu_custom_call.1} parent=1 // pred_fallthru
      _
    // Predicated region
    $region14: #{tpu_custom_call.1} parent=1 // pred_check
      _
    $region15: #{tpu_custom_call.1} parent=1 // pred_check_branch
      %43 = sbr.rel (0) target = $region17
    $region16: #{tpu_custom_call.1} parent=1 // pred_region
      _
    $region17: #{tpu_custom_call.1} parent=1 // pred_fallthru
      _
    // Predicated region
    $region18: #{tpu_custom_call.1} parent=1 // pred_check
      _
    $region19: #{tpu_custom_call.1} parent=1 // pred_check_branch
      %45 = sbr.rel (0) target = $region21
    $region20: #{tpu_custom_call.1} parent=1 // pred_region
      _
    $region21: #{tpu_custom_call.1} parent=1 // pred_fallthru
      _
    // Predicated region
    $region22: #{tpu_custom_call.1} parent=1 // pred_check
      _
    $region23: #{tpu_custom_call.1} parent=1 // pred_check_branch
      %47 = sbr.rel (0) target = $region25
    $region24: #{tpu_custom_call.1} parent=1 // pred_region
      _
    $region25: #{tpu_custom_call.1} parent=1 // pred_fallthru
      _
    // Predicated region
    $region26: #{tpu_custom_call.1} parent=1 // pred_check
      _
    $region27: #{tpu_custom_call.1} parent=1 // pred_check_branch
      %49 = sbr.rel (0) target = $region29
    $region28: #{tpu_custom_call.1} parent=1 // pred_region
      _
    $region29: #{tpu_custom_call.1} parent=1 // pred_fallthru
      _
    // Predicated region
    $region30: #{tpu_custom_call.1} parent=1 // pred_check
      _
    $region31: #{tpu_custom_call.1} parent=1 // pred_check_branch
      %51 = sbr.rel (0) target = $region33
    $region32: #{tpu_custom_call.1} parent=1 // pred_region
      %s53 = ssub.s32 384, 384
      %54 = vsyncadd [#allocation5], %s53
      %s55 = sshll.u32 [#allocation6], 4
      %s56 = int_to_ptr.vmem [resolvable:$true] %s55
      %61 = dma.hbm_to_vmem [thread:$0]  %s7, 384, %s56, [#allocation5], 128, 128, 8
    $region33: #{tpu_custom_call.1} parent=1 // pred_fallthru
      _
    // Predicated region
    $region34: #{tpu_custom_call.1} parent=1 // pred_check
      _
    $region35: #{tpu_custom_call.1} parent=1 // pred_check_branch
      %63 = sbr.rel (0) target = $region37
    $region36: #{tpu_custom_call.1} parent=1 // pred_region
      %s65 = ssub.s32 256, 256
      %66 = vsyncadd [#allocation8], %s65
      %s67 = sshll.u32 [#allocation7], 4
      %s68 = int_to_ptr.vmem [resolvable:$true] %s67
      %73 = dma.hbm_to_vmem [thread:$0]  %s8, 256, %s68, [#allocation8], 128, 128, 8
    $region37: #{tpu_custom_call.1} parent=1 // pred_fallthru
      _
    // Predicated region
    $region38: #{tpu_custom_call.1} parent=1 // pred_check
      _
    $region39: #{tpu_custom_call.1} parent=1 // pred_check_branch
      %75 = sbr.rel (0) target = $region41
    $region40: #{tpu_custom_call.1} parent=1 // pred_region
      _
    $region41: #{tpu_custom_call.1} parent=1 // pred_fallthru
      _
    // Predicated region
    $region42: #{tpu_custom_call.1} parent=1 // pred_check
      _
    $region43: #{tpu_custom_call.1} parent=1 // pred_check_branch
      %77 = sbr.rel (0) target = $region45
    $region44: #{tpu_custom_call.1} parent=1 // pred_region
      %78 = dma.done [#allocation3], 128
    $region45: #{tpu_custom_call.1} parent=1 // pred_fallthru
      _
    // Predicated region
    $region46: #{tpu_custom_call.1} parent=1 // pred_check
      _
    $region47: #{tpu_custom_call.1} parent=1 // pred_check_branch
      %80 = sbr.rel (0) target = $region49
    $region48: #{tpu_custom_call.1} parent=1 // pred_region
      %81 = dma.done [#allocation5], 512
    $region49: #{tpu_custom_call.1} parent=1 // pred_fallthru
      _
    // Predicated region
    $region50: #{tpu_custom_call.1} parent=1 // pred_check
      _
    $region51: #{tpu_custom_call.1} parent=1 // pred_check_branch
      %83 = sbr.rel (0) target = $region53
    $region52: #{tpu_custom_call.1} parent=1 // pred_region
      %84 = dma.done [#allocation5], 384
    $region53: #{tpu_custom_call.1} parent=1 // pred_fallthru
      _
    // Predicated region
    $region54: #{tpu_custom_call.1} parent=1 // pred_check
      _
    $region55: #{tpu_custom_call.1} parent=1 // pred_check_branch
      %86 = sbr.rel (0) target = $region57
    $region56: #{tpu_custom_call.1} parent=1 // pred_region
      %87 = dma.done [#allocation8], 256
    $region57: #{tpu_custom_call.1} parent=1 // pred_fallthru
      _
    %v88 = vld [vmem:[#allocation6] sm:$0xff]
    %v89 = vld [vmem:[#allocation6 + $0x8] sm:$0xff]
    %v90 = vld [vmem:[#allocation6 + $0x10] sm:$0xff]
    %v91 = vld [vmem:[#allocation4] sm:$0xff]
    %v92 = vld [vmem:[#allocation4 + $0x8] sm:$0xff]
    %v93 = vld [vmem:[#allocation4 + $0x10] sm:$0xff]
    %v94 = vld [vmem:[#allocation4 + $0x18] sm:$0x1f]
    %v95 = vld [vmem:[%s0] sm:$0xff]
    %v96 = vld [vmem:[%s0 + $0x8] sm:$0xff]
    %v97 = vlaneseq
    %v98 = vshrl.u32 %v97, 7
    %v99 = vsub.s32 2, %v98
    %v100 = vrot.slane %v94, %v99
    %vm101 = vcmask 15360
    %v103 = vsel %vm101, %v95, 0
    %v106 = vsel %vm101, %v96, 0
    %vm108 = vcmask 1041408
    %v110 = vsel %vm108, %v91, 0
    %112 = vmatprep.subr.mxu0 0.0
    %113 = vmatpush1.msra.mxu0 0.0
    %114 = vmatprep.subr.mxu0 0.0
    %115 = vmatpush1.msra.mxu0 0.0
    %116 = vmatprep.subr.mxu0 0.0
    %117 = vmatpush1.msra.mxu0 0.0
    %118 = vmatprep.subr.mxu0 0.0
    %119 = vmatpush1.msra.mxu0 0.0
    %120 = vmatprep.subr.mxu0 0.0
    %121 = vmatpush1.msra.mxu0 0.0
    %122 = vmatprep.subr.mxu0 0.0
    %123 = vmatpush1.msra.mxu0 0.0
    %124 = vmatprep.subr.mxu0 0.0
    %125 = vmatpush1.msra.mxu0 0.0
    %126 = vmatprep.subr.mxu0 0.0
    %127 = vmatpush1.msra.mxu0 0.0
    %128 = vmatprep.subr.mxu0 0.0
    %129 = vmatpush1.msra.mxu0 0.0
    %130 = vmatprep.subr.mxu0 0.0
    %131 = vmatpush1.msra.mxu0 0.0
    %132 = vmatprep.subr.mxu0 0.0
    %133 = vmatpush1.msra.mxu0 0.0
    %134 = vmatprep.subr.mxu0 0.0
    %135 = vmatpush1.msra.mxu0 0.0
    %136 = vmatprep.subr.mxu0 0.0
    %137 = vmatpush1.msra.mxu0 0.0
    %138 = vmatprep.subr.mxu0 0.0
    %139 = vmatpush1.msra.mxu0 0.0
    %140 = vmatprep.subr.mxu0 0.0
    %141 = vmatpush1.msra.mxu0 0.0
    %142 = vmatprep.subr.mxu0 0.0
    %143 = vmatpush1.msra.mxu0 %v110
    %144 = vmatprep.subr.mxu0 0.0
    %145 = vmatpush2.msra.mxu0 0.0
    %146 = vmatprep.subr.mxu0 0.0
    %147 = vmatpush2.msra.mxu0 0.0
    %148 = vmatprep.subr.mxu0 0.0
    %149 = vmatpush2.msra.mxu0 0.0
    %150 = vmatprep.subr.mxu0 0.0
    %151 = vmatpush2.msra.mxu0 0.0
    %152 = vmatprep.subr.mxu0 0.0
    %153 = vmatpush2.msra.mxu0 0.0
    %154 = vmatprep.subr.mxu0 0.0
    %155 = vmatpush2.msra.mxu0 0.0
    %156 = vmatprep.subr.mxu0 0.0
    %157 = vmatpush2.msra.mxu0 0.0
    %158 = vmatprep.subr.mxu0 0.0
    %159 = vmatpush2.msra.mxu0 0.0
    %160 = vmatprep.subr.mxu0 0.0
    %161 = vmatpush2.msra.mxu0 0.0
    %162 = vmatprep.subr.mxu0 0.0
    %163 = vmatpush2.msra.mxu0 0.0
    %164 = vmatprep.subr.mxu0 0.0
    %165 = vmatpush2.msra.mxu0 0.0
    %166 = vmatprep.subr.mxu0 0.0
    %167 = vmatpush2.msra.mxu0 0.0
    %168 = vmatprep.subr.mxu0 0.0
    %169 = vmatpush2.msra.mxu0 0.0
    %170 = vmatprep.subr.mxu0 0.0
    %171 = vmatpush2.msra.mxu0 0.0
    %172 = vmatprep.subr.mxu0 0.0
    %173 = vmatpush2.msra.mxu0 0.0
    %174 = vmatprep.subr.mxu0 0.0
    %175 = vmatpush2.msra.mxu0 0.0
    %176 = vmatprep.mubr.f32.mxu0 0.0
    %177 = vmatmul.mubr.f32.gmra.mxu0 %v103
    %v178 = vpop.f32.mrf.mxu0
    %v179 = vadd.f32 %v100, %v178
    %v180 = vpop.f32.mrf.mxu0
    %181 = vmatprep.mubr.f32.mxu0 0.0
    %182 = vmatmul.mubr.f32.gmra.mxu0 %v106
    %v183 = vpop.f32.mrf.mxu0
    %v184 = vadd.f32 %v100, %v183
    %v185 = vpop.f32.mrf.mxu0
    %186 = vdwg.mxu0
    %v187 = vmul.f32 %v179, 0.5
    %v188 = vmul.f32 %v184, 0.5
    %v189 = vmul.f32 %v179, 0.70710677
    %v190 = vmul.f32 %v184, 0.70710677
    %v191 = verf.f32.pop %v189
    %v192 = verf.f32.pop %v190
    %v193 = vadd.f32 %v191, 1.0
    %v194 = vadd.f32 %v192, 1.0
    %v195 = vmul.f32 %v187, %v193
    %v196 = vmul.f32 %v188, %v194
    %v197 = vlaneseq
    %v198 = vshrl.u32 %v197, 7
    %v199 = vsub.s32 3, %v198
    %v200 = vrot.slane %v94, %v199
    %vm202 = vcmask 1045504
    %v203 = vrot.slane %v91, 2
    %v204 = vrot.slane %v92, 2
    %v205 = vsel %vm202, %v203, %v204
    %vm207 = vcmask 64512
    %v209 = vsel %vm207, %v195, 0
    %v212 = vsel %vm207, %v196, 0
    %214 = vmatprep.subr.mxu0 0.0
    %215 = vmatpush1.msra.mxu0 0.0
    %216 = vmatprep.subr.mxu0 0.0
    %217 = vmatpush1.msra.mxu0 0.0
    %218 = vmatprep.subr.mxu0 0.0
    %219 = vmatpush1.msra.mxu0 0.0
    %220 = vmatprep.subr.mxu0 0.0
    %221 = vmatpush1.msra.mxu0 0.0
    %222 = vmatprep.subr.mxu0 0.0
    %223 = vmatpush1.msra.mxu0 0.0
    %224 = vmatprep.subr.mxu0 0.0
    %225 = vmatpush1.msra.mxu0 0.0
    %226 = vmatprep.subr.mxu0 0.0
    %227 = vmatpush1.msra.mxu0 0.0
    %228 = vmatprep.subr.mxu0 0.0
    %229 = vmatpush1.msra.mxu0 0.0
    %230 = vmatprep.subr.mxu0 0.0
    %231 = vmatpush1.msra.mxu0 0.0
    %232 = vmatprep.subr.mxu0 0.0
    %233 = vmatpush1.msra.mxu0 0.0
    %234 = vmatprep.subr.mxu0 0.0
    %235 = vmatpush1.msra.mxu0 0.0
    %236 = vmatprep.subr.mxu0 0.0
    %237 = vmatpush1.msra.mxu0 0.0
    %238 = vmatprep.subr.mxu0 0.0
    %239 = vmatpush1.msra.mxu0 0.0
    %240 = vmatprep.subr.mxu0 0.0
    %241 = vmatpush1.msra.mxu0 0.0
    %242 = vmatprep.subr.mxu0 0.0
    %243 = vmatpush1.msra.mxu0 0.0
    %244 = vmatprep.subr.mxu0 0.0
    %245 = vmatpush1.msra.mxu0 %v205
    %246 = vmatprep.subr.mxu0 0.0
    %247 = vmatpush2.msra.mxu0 0.0
    %248 = vmatprep.subr.mxu0 0.0
    %249 = vmatpush2.msra.mxu0 0.0
    %250 = vmatprep.subr.mxu0 0.0
    %251 = vmatpush2.msra.mxu0 0.0
    %252 = vmatprep.subr.mxu0 0.0
    %253 = vmatpush2.msra.mxu0 0.0
    %254 = vmatprep.subr.mxu0 0.0
    %255 = vmatpush2.msra.mxu0 0.0
    %256 = vmatprep.subr.mxu0 0.0
    %257 = vmatpush2.msra.mxu0 0.0
    %258 = vmatprep.subr.mxu0 0.0
    %259 = vmatpush2.msra.mxu0 0.0
    %260 = vmatprep.subr.mxu0 0.0
    %261 = vmatpush2.msra.mxu0 0.0
    %262 = vmatprep.subr.mxu0 0.0
    %263 = vmatpush2.msra.mxu0 0.0
    %264 = vmatprep.subr.mxu0 0.0
    %265 = vmatpush2.msra.mxu0 0.0
    %266 = vmatprep.subr.mxu0 0.0
    %267 = vmatpush2.msra.mxu0 0.0
    %268 = vmatprep.subr.mxu0 0.0
    %269 = vmatpush2.msra.mxu0 0.0
    %270 = vmatprep.subr.mxu0 0.0
    %271 = vmatpush2.msra.mxu0 0.0
    %272 = vmatprep.subr.mxu0 0.0
    %273 = vmatpush2.msra.mxu0 0.0
    %274 = vmatprep.subr.mxu0 0.0
    %275 = vmatpush2.msra.mxu0 0.0
    %276 = vmatprep.subr.mxu0 0.0
    %277 = vmatpush2.msra.mxu0 0.0
    %278 = vmatprep.mubr.f32.mxu0 0.0
    %279 = vmatmul.mubr.f32.gmra.mxu0 %v209
    %v280 = vpop.f32.mrf.mxu0
    %v281 = vadd.f32 %v200, %v280
    %v282 = vpop.f32.mrf.mxu0
    %283 = vmatprep.mubr.f32.mxu0 0.0
    %284 = vmatmul.mubr.f32.gmra.mxu0 %v212
    %v285 = vpop.f32.mrf.mxu0
    %v286 = vadd.f32 %v200, %v285
    %v287 = vpop.f32.mrf.mxu0
    %288 = vdwg.mxu0
    %v289 = vmul.f32 %v281, 0.5
    %v290 = vmul.f32 %v286, 0.5
    %v291 = vmul.f32 %v281, 0.70710677
    %v292 = vmul.f32 %v286, 0.70710677
    %v293 = verf.f32.pop %v291
    %v294 = verf.f32.pop %v292
    %v295 = vadd.f32 %v293, 1.0
    %v296 = vadd.f32 %v294, 1.0
    %v297 = vmul.f32 %v289, %v295
    %v298 = vmul.f32 %v290, %v296
    %v299 = vlaneseq
    %v300 = vshrl.u32 %v299, 7
    %v301 = vsub.s32 4, %v300
    %v302 = vrot.slane %v94, %v301
    %v305 = vrot.slane %v93, 2
    %v306 = vsel %vm202, %v204, %v305
    %v307 = vrot.slane %v94, 2
    %v308 = vsel %vm202, %v305, %v307
    %vm311 = vcmask 130048
    %v313 = vsel %vm311, %v297, 0
    %v316 = vsel %vm311, %v298, 0
    %318 = vmatprep.subr.mxu0 0.0
    %319 = vmatpush1.msra.mxu0 0.0
    %320 = vmatprep.subr.mxu0 0.0
    %321 = vmatpush1.msra.mxu0 0.0
    %322 = vmatprep.subr.mxu0 0.0
    %323 = vmatpush1.msra.mxu0 0.0
    %324 = vmatprep.subr.mxu0 0.0
    %325 = vmatpush1.msra.mxu0 0.0
    %326 = vmatprep.subr.mxu0 0.0
    %327 = vmatpush1.msra.mxu0 0.0
    %328 = vmatprep.subr.mxu0 0.0
    %329 = vmatpush1.msra.mxu0 0.0
    %330 = vmatprep.subr.mxu0 0.0
    %331 = vmatpush1.msra.mxu0 0.0
    %332 = vmatprep.subr.mxu0 0.0
    %333 = vmatpush1.msra.mxu0 0.0
    %334 = vmatprep.subr.mxu0 0.0
    %335 = vmatpush1.msra.mxu0 0.0
    %336 = vmatprep.subr.mxu0 0.0
    %337 = vmatpush1.msra.mxu0 0.0
    %338 = vmatprep.subr.mxu0 0.0
    %339 = vmatpush1.msra.mxu0 0.0
    %340 = vmatprep.subr.mxu0 0.0
    %341 = vmatpush1.msra.mxu0 0.0
    %342 = vmatprep.subr.mxu0 0.0
    %343 = vmatpush1.msra.mxu0 0.0
    %344 = vmatprep.subr.mxu0 0.0
    %345 = vmatpush1.msra.mxu0 0.0
    %346 = vmatprep.subr.mxu0 0.0
    %347 = vmatpush1.msra.mxu0 %v308
    %348 = vmatprep.subr.mxu0 0.0
    %349 = vmatpush1.msra.mxu0 %v306
    %350 = vmatprep.subr.mxu0 0.0
    %351 = vmatpush2.msra.mxu0 0.0
    %352 = vmatprep.subr.mxu0 0.0
    %353 = vmatpush2.msra.mxu0 0.0
    %354 = vmatprep.subr.mxu0 0.0
    %355 = vmatpush2.msra.mxu0 0.0
    %356 = vmatprep.subr.mxu0 0.0
    %357 = vmatpush2.msra.mxu0 0.0
    %358 = vmatprep.subr.mxu0 0.0
    %359 = vmatpush2.msra.mxu0 0.0
    %360 = vmatprep.subr.mxu0 0.0
    %361 = vmatpush2.msra.mxu0 0.0
    %362 = vmatprep.subr.mxu0 0.0
    %363 = vmatpush2.msra.mxu0 0.0
    %364 = vmatprep.subr.mxu0 0.0
    %365 = vmatpush2.msra.mxu0 0.0
    %366 = vmatprep.subr.mxu0 0.0
    %367 = vmatpush2.msra.mxu0 0.0
    %368 = vmatprep.subr.mxu0 0.0
    %369 = vmatpush2.msra.mxu0 0.0
    %370 = vmatprep.subr.mxu0 0.0
    %371 = vmatpush2.msra.mxu0 0.0
    %372 = vmatprep.subr.mxu0 0.0
    %373 = vmatpush2.msra.mxu0 0.0
    %374 = vmatprep.subr.mxu0 0.0
    %375 = vmatpush2.msra.mxu0 0.0
    %376 = vmatprep.subr.mxu0 0.0
    %377 = vmatpush2.msra.mxu0 0.0
    %378 = vmatprep.subr.mxu0 0.0
    %379 = vmatpush2.msra.mxu0 0.0
    %380 = vmatprep.subr.mxu0 0.0
    %381 = vmatpush2.msra.mxu0 0.0
    %382 = vmatprep.mubr.f32.mxu0 0.0
    %383 = vmatmul.mubr.f32.gmra.mxu0 %v313
    %v384 = vpop.f32.mrf.mxu0
    %v385 = vadd.f32 %v302, %v384
    %v386 = vpop.f32.mrf.mxu0
    %387 = vmatprep.mubr.f32.mxu0 0.0
    %388 = vmatmul.mubr.f32.gmra.mxu0 %v316
    %v389 = vpop.f32.mrf.mxu0
    %v390 = vadd.f32 %v302, %v389
    %v391 = vpop.f32.mrf.mxu0
    %392 = vdwg.mxu0
    %v393 = vmul.f32 %v385, 0.5
    %v394 = vmul.f32 %v390, 0.5
    %v395 = vmul.f32 %v385, 0.70710677
    %v396 = vmul.f32 %v390, 0.70710677
    %v397 = verf.f32.pop %v395
    %v398 = verf.f32.pop %v396
    %v399 = vadd.f32 %v397, 1.0
    %v400 = vadd.f32 %v398, 1.0
    %v401 = vmul.f32 %v393, %v399
    %v402 = vmul.f32 %v394, %v400
    %vm403 = vcmask 261120
    %v404 = vsel %vm403, %v401, 0.0
    %v405 = vsel %vm403, %v402, 0.0
    %v406 = vadd.f32 %v404, %v405
    %v407 = vrot.slane %v406, 4
    %v408 = vadd.f32 %v406, %v407
    %v409 = vrot.slane %v408, 2
    %v410 = vadd.f32 %v408, %v409
    %v411 = vrot.slane %v410, 1
    %v412 = vadd.f32 %v410, %v411
    %v413 = vrcp.pop 16.0
    %v414 = vmul.f32 %v412, %v413
    %v415 = vsub.f32 %v401, %v414
    %v416 = vsub.f32 %v402, %v414
    %v417 = vmul.f32 %v415, %v415
    %v418 = vmul.f32 %v416, %v416
    %v419 = vsel %vm403, %v417, 0.0
    %v420 = vsel %vm403, %v418, 0.0
    %v421 = vadd.f32 %v419, %v420
    %v422 = vrot.slane %v421, 4
    %v423 = vadd.f32 %v421, %v422
    %v424 = vrot.slane %v423, 2
    %v425 = vadd.f32 %v423, %v424
    %v426 = vrot.slane %v425, 1
    %v427 = vadd.f32 %v425, %v426
    %v428 = vmul.f32 %v427, %v413
    %v429 = vadd.f32 %v428, 1e-05
    %v430 = vrsqrt.pop %v429
    %v431 = vmul.f32 %v415, %v430
    %v432 = vmul.f32 %v416, %v430
    %v433 = vlaneseq
    %v434 = vshrl.u32 %v433, 7
    %v435 = vsub.s32 0, %v434
    %v436 = vrot.slane %v88, %v435
    %v437 = vmul.f32 %v431, %v436
    %v438 = vmul.f32 %v432, %v436
    %v439 = vlaneseq
    %v440 = vshrl.u32 %v439, 7
    %v441 = vsub.s32 1, %v440
    %v442 = vrot.slane %v88, %v441
    %v443 = vadd.f32 %v437, %v442
    %v444 = vadd.f32 %v438, %v442
    %v445 = vld [vmem:[#allocation2] sm:$0xff]
    %v446 = vadd.f32 %v443, %v445
    %v447 = vadd.f32 %v444, %v445
    %v448 = vsel %vm403, %v446, 0.0
    %v449 = vsel %vm403, %v447, 0.0
    %v450 = vadd.f32 %v448, %v449
    %v451 = vrot.slane %v450, 4
    %v452 = vadd.f32 %v450, %v451
    %v453 = vrot.slane %v452, 2
    %v454 = vadd.f32 %v452, %v453
    %v455 = vrot.slane %v454, 1
    %v456 = vadd.f32 %v454, %v455
    %v457 = vmul.f32 %v456, %v413
    %v458 = vsub.f32 %v446, %v457
    %v459 = vsub.f32 %v447, %v457
    %v460 = vmul.f32 %v458, %v458
    %v461 = vmul.f32 %v459, %v459
    %v462 = vsel %vm403, %v460, 0.0
    %v463 = vsel %vm403, %v461, 0.0
    %v464 = vadd.f32 %v462, %v463
    %v465 = vrot.slane %v464, 4
    %v466 = vadd.f32 %v464, %v465
    %v467 = vrot.slane %v466, 2
    %v468 = vadd.f32 %v466, %v467
    %v469 = vrot.slane %v468, 1
    %v470 = vadd.f32 %v468, %v469
    %v471 = vmul.f32 %v470, %v413
    %v472 = vadd.f32 %v471, 1e-05
    %v473 = vrsqrt.pop %v472
    %v474 = vmul.f32 %v458, %v473
    %v475 = vmul.f32 %v459, %v473
    %v476 = vlaneseq
    %v477 = vshrl.u32 %v476, 7
    %v478 = vsub.s32 2, %v477
    %v479 = vrot.slane %v88, %v478
    %v480 = vmul.f32 %v474, %v479
    %v481 = vmul.f32 %v475, %v479
    %v482 = vlaneseq
    %v483 = vshrl.u32 %v482, 7
    %v484 = vsub.s32 3, %v483
    %v485 = vrot.slane %v88, %v484
    %v486 = vadd.f32 %v480, %v485
    %v487 = vadd.f32 %v481, %v485
    %v488 = vld [vmem:[%s3] sm:$0xff]
    %v489 = vld [vmem:[%s3 + $0x8] sm:$0xff]
    %v490 = vld [vmem:[%s3 + $0x10] sm:$0xff]
    %v491 = vld [vmem:[%s3 + $0x18] sm:$0xff]
    %v492 = vlaneseq
    %v493 = vshrl.u32 %v492, 7
    %v494 = vsub.s32 0, %v493
    %v495 = vrot.slane %v89, %v494
    %v497 = vsel %vm403, %v486, 0
    %v500 = vsel %vm403, %v487, 0
    %502 = vmatprep.subr.mxu0 0.0
    %503 = vmatpush1.msra.mxu0 0.0
    %504 = vmatprep.subr.mxu0 0.0
    %505 = vmatpush1.msra.mxu0 0.0
    %506 = vmatprep.subr.mxu0 0.0
    %507 = vmatpush1.msra.mxu0 0.0
    %508 = vmatprep.subr.mxu0 0.0
    %509 = vmatpush1.msra.mxu0 0.0
    %510 = vmatprep.subr.mxu0 0.0
    %511 = vmatpush1.msra.mxu0 0.0
    %512 = vmatprep.subr.mxu0 0.0
    %513 = vmatpush1.msra.mxu0 0.0
    %514 = vmatprep.subr.mxu0 0.0
    %515 = vmatpush1.msra.mxu0 0.0
    %516 = vmatprep.subr.mxu0 0.0
    %517 = vmatpush1.msra.mxu0 0.0
    %518 = vmatprep.subr.mxu0 0.0
    %519 = vmatpush1.msra.mxu0 0.0
    %520 = vmatprep.subr.mxu0 0.0
    %521 = vmatpush1.msra.mxu0 0.0
    %522 = vmatprep.subr.mxu0 0.0
    %523 = vmatpush1.msra.mxu0 0.0
    %524 = vmatprep.subr.mxu0 0.0
    %525 = vmatpush1.msra.mxu0 0.0
    %526 = vmatprep.subr.mxu0 0.0
    %527 = vmatpush1.msra.mxu0 %v491
    %528 = vmatprep.subr.mxu0 0.0
    %529 = vmatpush1.msra.mxu0 %v490
    %530 = vmatprep.subr.mxu0 0.0
    %531 = vmatpush1.msra.mxu0 %v489
    %532 = vmatprep.subr.mxu0 0.0
    %533 = vmatpush1.msra.mxu0 %v488
    %534 = vmatprep.subr.mxu0 0.0
    %535 = vmatpush2.msra.mxu0 0.0
    %536 = vmatprep.subr.mxu0 0.0
    %537 = vmatpush2.msra.mxu0 0.0
    %538 = vmatprep.subr.mxu0 0.0
    %539 = vmatpush2.msra.mxu0 0.0
    %540 = vmatprep.subr.mxu0 0.0
    %541 = vmatpush2.msra.mxu0 0.0
    %542 = vmatprep.subr.mxu0 0.0
    %543 = vmatpush2.msra.mxu0 0.0
    %544 = vmatprep.subr.mxu0 0.0
    %545 = vmatpush2.msra.mxu0 0.0
    %546 = vmatprep.subr.mxu0 0.0
    %547 = vmatpush2.msra.mxu0 0.0
    %548 = vmatprep.subr.mxu0 0.0
    %549 = vmatpush2.msra.mxu0 0.0
    %550 = vmatprep.subr.mxu0 0.0
    %551 = vmatpush2.msra.mxu0 0.0
    %552 = vmatprep.subr.mxu0 0.0
    %553 = vmatpush2.msra.mxu0 0.0
    %554 = vmatprep.subr.mxu0 0.0
    %555 = vmatpush2.msra.mxu0 0.0
    %556 = vmatprep.subr.mxu0 0.0
    %557 = vmatpush2.msra.mxu0 0.0
    %558 = vmatprep.subr.mxu0 0.0
    %559 = vmatpush2.msra.mxu0 0.0
    %560 = vmatprep.subr.mxu0 0.0
    %561 = vmatpush2.msra.mxu0 0.0
    %562 = vmatprep.subr.mxu0 0.0
    %563 = vmatpush2.msra.mxu0 0.0
    %564 = vmatprep.subr.mxu0 0.0
    %565 = vmatpush2.msra.mxu0 0.0
    %566 = vmatprep.mubr.f32.mxu0 0.0
    %567 = vmatmul.mubr.f32.gmra.mxu0 %v497
    %v568 = vpop.f32.mrf.mxu0
    %v569 = vadd.f32 %v495, %v568
    %v570 = vpop.f32.mrf.mxu0
    %571 = vmatprep.mubr.f32.mxu0 0.0
    %572 = vmatmul.mubr.f32.gmra.mxu0 %v500
    %v573 = vpop.f32.mrf.mxu0
    %v574 = vadd.f32 %v495, %v573
    %v575 = vpop.f32.mrf.mxu0
    %576 = vdwg.mxu0
    %578 = vrot.lane.b32.xlu0 %v569, 96
    %v579 = vpop.permute.xlu0 %578
    %v580 = vsel %vm311, %v569, 0
    %v582 = vsel %vm311, %v579, 0
    %584 = vmatprep.subr.mxu0 0.0
    %585 = vmatpush1.xpose.msra.mxu0 0.0
    %586 = vmatprep.subr.mxu0 0.0
    %587 = vmatpush1.xpose.msra.mxu0 0.0
    %588 = vmatprep.subr.mxu0 0.0
    %589 = vmatpush1.xpose.msra.mxu0 0.0
    %590 = vmatprep.subr.mxu0 0.0
    %591 = vmatpush1.xpose.msra.mxu0 0.0
    %592 = vmatprep.subr.mxu0 0.0
    %593 = vmatpush1.xpose.msra.mxu0 0.0
    %594 = vmatprep.subr.mxu0 0.0
    %595 = vmatpush1.xpose.msra.mxu0 0.0
    %596 = vmatprep.subr.mxu0 0.0
    %597 = vmatpush1.xpose.msra.mxu0 0.0
    %598 = vmatprep.subr.mxu0 0.0
    %599 = vmatpush1.xpose.msra.mxu0 0.0
    %600 = vmatprep.subr.mxu0 0.0
    %601 = vmatpush1.xpose.msra.mxu0 0.0
    %602 = vmatprep.subr.mxu0 0.0
    %603 = vmatpush1.xpose.msra.mxu0 0.0
    %604 = vmatprep.subr.mxu0 0.0
    %605 = vmatpush1.xpose.msra.mxu0 0.0
    %606 = vmatprep.subr.mxu0 0.0
    %607 = vmatpush1.xpose.msra.mxu0 0.0
    %608 = vmatprep.subr.mxu0 0.0
    %609 = vmatpush1.xpose.msra.mxu0 0.0
    %610 = vmatprep.subr.mxu0 0.0
    %611 = vmatpush1.xpose.msra.mxu0 0.0
    %612 = vmatprep.subr.mxu0 0.0
    %613 = vmatpush1.xpose.msra.mxu0 0.0
    %614 = vmatprep.subr.mxu0 0.0
    %615 = vmatpush1.xpose.msra.mxu0 %v582
    %616 = vmatprep.subr.mxu0 0.0
    %617 = vmatpush2.xpose.msra.mxu0 0.0
    %618 = vmatprep.subr.mxu0 0.0
    %619 = vmatpush2.xpose.msra.mxu0 0.0
    %620 = vmatprep.subr.mxu0 0.0
    %621 = vmatpush2.xpose.msra.mxu0 0.0
    %622 = vmatprep.subr.mxu0 0.0
    %623 = vmatpush2.xpose.msra.mxu0 0.0
    %624 = vmatprep.subr.mxu0 0.0
    %625 = vmatpush2.xpose.msra.mxu0 0.0
    %626 = vmatprep.subr.mxu0 0.0
    %627 = vmatpush2.xpose.msra.mxu0 0.0
    %628 = vmatprep.subr.mxu0 0.0
    %629 = vmatpush2.xpose.msra.mxu0 0.0
    %630 = vmatprep.subr.mxu0 0.0
    %631 = vmatpush2.xpose.msra.mxu0 0.0
    %632 = vmatprep.subr.mxu0 0.0
    %633 = vmatpush2.xpose.msra.mxu0 0.0
    %634 = vmatprep.subr.mxu0 0.0
    %635 = vmatpush2.xpose.msra.mxu0 0.0
    %636 = vmatprep.subr.mxu0 0.0
    %637 = vmatpush2.xpose.msra.mxu0 0.0
    %638 = vmatprep.subr.mxu0 0.0
    %639 = vmatpush2.xpose.msra.mxu0 0.0
    %640 = vmatprep.subr.mxu0 0.0
    %641 = vmatpush2.xpose.msra.mxu0 0.0
    %642 = vmatprep.subr.mxu0 0.0
    %643 = vmatpush2.xpose.msra.mxu0 0.0
    %644 = vmatprep.subr.mxu0 0.0
    %645 = vmatpush2.xpose.msra.mxu0 0.0
    %646 = vmatprep.subr.mxu0 0.0
    %647 = vmatpush2.xpose.msra.mxu0 0.0
    %648 = vmatprep.mubr.f32.mxu0 0.0
    %649 = vmatmul.mubr.f32.gmra.mxu0 %v580
    %v650 = vpop.f32.mrf.mxu0
    %v651 = vadd.f32 0.0, %v650
    %v652 = vpop.f32.mrf.mxu0
    %653 = vdwg.mxu0
    %v654 = vmul.f32 %v651, 0.25
    %v655 = vsel %vm207, %v654, -inf
    %656 = vmax.xlane.f32.xlu0 %v655
    %v657 = vpop.xlane.xlu0 %656
    %v658 = vsub.f32 %v654, %v657
    %v659 = vmul.f32 %v658, 1.442695
    %v660 = vpow.pop %v659
    %v661 = vsel %vm207, %v660, 0.0
    %662 = vadd.xlane.f32.xlu0 %v661
    %v663 = vpop.xlane.xlu0 %662
    %v664 = vrcp.pop %v663
    %v665 = vmul.f32 %v660, %v664
    %666 = vrot.lane.b32.xlu0 %v569, 64
    %v667 = vpop.permute.xlu0 %666
    %v670 = vsel %vm207, %v665, 0
    %672 = vmatprep.subr.mxu0 0.0
    %673 = vmatpush1.msra.mxu0 0.0
    %674 = vmatprep.subr.mxu0 0.0
    %675 = vmatpush1.msra.mxu0 0.0
    %676 = vmatprep.subr.mxu0 0.0
    %677 = vmatpush1.msra.mxu0 0.0
    %678 = vmatprep.subr.mxu0 0.0
    %679 = vmatpush1.msra.mxu0 0.0
    %680 = vmatprep.subr.mxu0 0.0
    %681 = vmatpush1.msra.mxu0 0.0
    %682 = vmatprep.subr.mxu0 0.0
    %683 = vmatpush1.msra.mxu0 0.0
    %684 = vmatprep.subr.mxu0 0.0
    %685 = vmatpush1.msra.mxu0 0.0
    %686 = vmatprep.subr.mxu0 0.0
    %687 = vmatpush1.msra.mxu0 0.0
    %688 = vmatprep.subr.mxu0 0.0
    %689 = vmatpush1.msra.mxu0 0.0
    %690 = vmatprep.subr.mxu0 0.0
    %691 = vmatpush1.msra.mxu0 0.0
    %692 = vmatprep.subr.mxu0 0.0
    %693 = vmatpush1.msra.mxu0 0.0
    %694 = vmatprep.subr.mxu0 0.0
    %695 = vmatpush1.msra.mxu0 0.0
    %696 = vmatprep.subr.mxu0 0.0
    %697 = vmatpush1.msra.mxu0 0.0
    %698 = vmatprep.subr.mxu0 0.0
    %699 = vmatpush1.msra.mxu0 0.0
    %700 = vmatprep.subr.mxu0 0.0
    %701 = vmatpush1.msra.mxu0 0.0
    %702 = vmatprep.subr.mxu0 0.0
    %703 = vmatpush1.msra.mxu0 %v667
    %704 = vmatprep.subr.mxu0 0.0
    %705 = vmatpush2.msra.mxu0 0.0
    %706 = vmatprep.subr.mxu0 0.0
    %707 = vmatpush2.msra.mxu0 0.0
    %708 = vmatprep.subr.mxu0 0.0
    %709 = vmatpush2.msra.mxu0 0.0
    %710 = vmatprep.subr.mxu0 0.0
    %711 = vmatpush2.msra.mxu0 0.0
    %712 = vmatprep.subr.mxu0 0.0
    %713 = vmatpush2.msra.mxu0 0.0
    %714 = vmatprep.subr.mxu0 0.0
    %715 = vmatpush2.msra.mxu0 0.0
    %716 = vmatprep.subr.mxu0 0.0
    %717 = vmatpush2.msra.mxu0 0.0
    %718 = vmatprep.subr.mxu0 0.0
    %719 = vmatpush2.msra.mxu0 0.0
    %720 = vmatprep.subr.mxu0 0.0
    %721 = vmatpush2.msra.mxu0 0.0
    %722 = vmatprep.subr.mxu0 0.0
    %723 = vmatpush2.msra.mxu0 0.0
    %724 = vmatprep.subr.mxu0 0.0
    %725 = vmatpush2.msra.mxu0 0.0
    %726 = vmatprep.subr.mxu0 0.0
    %727 = vmatpush2.msra.mxu0 0.0
    %728 = vmatprep.subr.mxu0 0.0
    %729 = vmatpush2.msra.mxu0 0.0
    %730 = vmatprep.subr.mxu0 0.0
    %731 = vmatpush2.msra.mxu0 0.0
    %732 = vmatprep.subr.mxu0 0.0
    %733 = vmatpush2.msra.mxu0 0.0
    %734 = vmatprep.subr.mxu0 0.0
    %735 = vmatpush2.msra.mxu0 0.0
    %736 = vmatprep.mubr.f32.mxu0 0.0
    %737 = vmatmul.mubr.f32.gmra.mxu0 %v670
    %v738 = vpop.f32.mrf.mxu0
    %v739 = vadd.f32 0.0, %v738
    %v740 = vpop.f32.mrf.mxu0
    %741 = vdwg.mxu0
    %742 = vrot.lane.b32.xlu0 %v569, 112
    %v743 = vpop.permute.xlu0 %742
    %744 = vrot.lane.b32.xlu0 %v569, 80
    %v745 = vpop.permute.xlu0 %744
    %v746 = vsel %vm311, %v743, 0
    %v748 = vsel %vm311, %v745, 0
    %750 = vmatprep.subr.mxu0 0.0
    %751 = vmatpush1.xpose.msra.mxu0 0.0
    %752 = vmatprep.subr.mxu0 0.0
    %753 = vmatpush1.xpose.msra.mxu0 0.0
    %754 = vmatprep.subr.mxu0 0.0
    %755 = vmatpush1.xpose.msra.mxu0 0.0
    %756 = vmatprep.subr.mxu0 0.0
    %757 = vmatpush1.xpose.msra.mxu0 0.0
    %758 = vmatprep.subr.mxu0 0.0
    %759 = vmatpush1.xpose.msra.mxu0 0.0
    %760 = vmatprep.subr.mxu0 0.0
    %761 = vmatpush1.xpose.msra.mxu0 0.0
    %762 = vmatprep.subr.mxu0 0.0
    %763 = vmatpush1.xpose.msra.mxu0 0.0
    %764 = vmatprep.subr.mxu0 0.0
    %765 = vmatpush1.xpose.msra.mxu0 0.0
    %766 = vmatprep.subr.mxu0 0.0
    %767 = vmatpush1.xpose.msra.mxu0 0.0
    %768 = vmatprep.subr.mxu0 0.0
    %769 = vmatpush1.xpose.msra.mxu0 0.0
    %770 = vmatprep.subr.mxu0 0.0
    %771 = vmatpush1.xpose.msra.mxu0 0.0
    %772 = vmatprep.subr.mxu0 0.0
    %773 = vmatpush1.xpose.msra.mxu0 0.0
    %774 = vmatprep.subr.mxu0 0.0
    %775 = vmatpush1.xpose.msra.mxu0 0.0
    %776 = vmatprep.subr.mxu0 0.0
    %777 = vmatpush1.xpose.msra.mxu0 0.0
    %778 = vmatprep.subr.mxu0 0.0
    %779 = vmatpush1.xpose.msra.mxu0 0.0
    %780 = vmatprep.subr.mxu0 0.0
    %781 = vmatpush1.xpose.msra.mxu0 %v748
    %782 = vmatprep.subr.mxu0 0.0
    %783 = vmatpush2.xpose.msra.mxu0 0.0
    %784 = vmatprep.subr.mxu0 0.0
    %785 = vmatpush2.xpose.msra.mxu0 0.0
    %786 = vmatprep.subr.mxu0 0.0
    %787 = vmatpush2.xpose.msra.mxu0 0.0
    %788 = vmatprep.subr.mxu0 0.0
    %789 = vmatpush2.xpose.msra.mxu0 0.0
    %790 = vmatprep.subr.mxu0 0.0
    %791 = vmatpush2.xpose.msra.mxu0 0.0
    %792 = vmatprep.subr.mxu0 0.0
    %793 = vmatpush2.xpose.msra.mxu0 0.0
    %794 = vmatprep.subr.mxu0 0.0
    %795 = vmatpush2.xpose.msra.mxu0 0.0
    %796 = vmatprep.subr.mxu0 0.0
    %797 = vmatpush2.xpose.msra.mxu0 0.0
    %798 = vmatprep.subr.mxu0 0.0
    %799 = vmatpush2.xpose.msra.mxu0 0.0
    %800 = vmatprep.subr.mxu0 0.0
    %801 = vmatpush2.xpose.msra.mxu0 0.0
    %802 = vmatprep.subr.mxu0 0.0
    %803 = vmatpush2.xpose.msra.mxu0 0.0
    %804 = vmatprep.subr.mxu0 0.0
    %805 = vmatpush2.xpose.msra.mxu0 0.0
    %806 = vmatprep.subr.mxu0 0.0
    %807 = vmatpush2.xpose.msra.mxu0 0.0
    %808 = vmatprep.subr.mxu0 0.0
    %809 = vmatpush2.xpose.msra.mxu0 0.0
    %810 = vmatprep.subr.mxu0 0.0
    %811 = vmatpush2.xpose.msra.mxu0 0.0
    %812 = vmatprep.subr.mxu0 0.0
    %813 = vmatpush2.xpose.msra.mxu0 0.0
    %814 = vmatprep.mubr.f32.mxu0 0.0
    %815 = vmatmul.mubr.f32.gmra.mxu0 %v746
    %v816 = vpop.f32.mrf.mxu0
    %v817 = vadd.f32 0.0, %v816
    %v818 = vpop.f32.mrf.mxu0
    %819 = vdwg.mxu0
    %v820 = vmul.f32 %v817, 0.25
    %v821 = vsel %vm207, %v820, -inf
    %822 = vmax.xlane.f32.xlu0 %v821
    %v823 = vpop.xlane.xlu0 %822
    %v824 = vsub.f32 %v820, %v823
    %v825 = vmul.f32 %v824, 1.442695
    %v826 = vpow.pop %v825
    %v827 = vsel %vm207, %v826, 0.0
    %828 = vadd.xlane.f32.xlu0 %v827
    %v829 = vpop.xlane.xlu0 %828
    %v830 = vrcp.pop %v829
    %v831 = vmul.f32 %v826, %v830
    %832 = vrot.lane.b32.xlu0 %v569, 48
    %v833 = vpop.permute.xlu0 %832
    %v836 = vsel %vm207, %v831, 0
    %838 = vmatprep.subr.mxu0 0.0
    %839 = vmatpush1.msra.mxu0 0.0
    %840 = vmatprep.subr.mxu0 0.0
    %841 = vmatpush1.msra.mxu0 0.0
    %842 = vmatprep.subr.mxu0 0.0
    %843 = vmatpush1.msra.mxu0 0.0
    %844 = vmatprep.subr.mxu0 0.0
    %845 = vmatpush1.msra.mxu0 0.0
    %846 = vmatprep.subr.mxu0 0.0
    %847 = vmatpush1.msra.mxu0 0.0
    %848 = vmatprep.subr.mxu0 0.0
    %849 = vmatpush1.msra.mxu0 0.0
    %850 = vmatprep.subr.mxu0 0.0
    %851 = vmatpush1.msra.mxu0 0.0
    %852 = vmatprep.subr.mxu0 0.0
    %853 = vmatpush1.msra.mxu0 0.0
    %854 = vmatprep.subr.mxu0 0.0
    %855 = vmatpush1.msra.mxu0 0.0
    %856 = vmatprep.subr.mxu0 0.0
    %857 = vmatpush1.msra.mxu0 0.0
    %858 = vmatprep.subr.mxu0 0.0
    %859 = vmatpush1.msra.mxu0 0.0
    %860 = vmatprep.subr.mxu0 0.0
    %861 = vmatpush1.msra.mxu0 0.0
    %862 = vmatprep.subr.mxu0 0.0
    %863 = vmatpush1.msra.mxu0 0.0
    %864 = vmatprep.subr.mxu0 0.0
    %865 = vmatpush1.msra.mxu0 0.0
    %866 = vmatprep.subr.mxu0 0.0
    %867 = vmatpush1.msra.mxu0 0.0
    %868 = vmatprep.subr.mxu0 0.0
    %869 = vmatpush1.msra.mxu0 %v833
    %870 = vmatprep.subr.mxu0 0.0
    %871 = vmatpush2.msra.mxu0 0.0
    %872 = vmatprep.subr.mxu0 0.0
    %873 = vmatpush2.msra.mxu0 0.0
    %874 = vmatprep.subr.mxu0 0.0
    %875 = vmatpush2.msra.mxu0 0.0
    %876 = vmatprep.subr.mxu0 0.0
    %877 = vmatpush2.msra.mxu0 0.0
    %878 = vmatprep.subr.mxu0 0.0
    %879 = vmatpush2.msra.mxu0 0.0
    %880 = vmatprep.subr.mxu0 0.0
    %881 = vmatpush2.msra.mxu0 0.0
    %882 = vmatprep.subr.mxu0 0.0
    %883 = vmatpush2.msra.mxu0 0.0
    %884 = vmatprep.subr.mxu0 0.0
    %885 = vmatpush2.msra.mxu0 0.0
    %886 = vmatprep.subr.mxu0 0.0
    %887 = vmatpush2.msra.mxu0 0.0
    %888 = vmatprep.subr.mxu0 0.0
    %889 = vmatpush2.msra.mxu0 0.0
    %890 = vmatprep.subr.mxu0 0.0
    %891 = vmatpush2.msra.mxu0 0.0
    %892 = vmatprep.subr.mxu0 0.0
    %893 = vmatpush2.msra.mxu0 0.0
    %894 = vmatprep.subr.mxu0 0.0
    %895 = vmatpush2.msra.mxu0 0.0
    %896 = vmatprep.subr.mxu0 0.0
    %897 = vmatpush2.msra.mxu0 0.0
    %898 = vmatprep.subr.mxu0 0.0
    %899 = vmatpush2.msra.mxu0 0.0
    %900 = vmatprep.subr.mxu0 0.0
    %901 = vmatpush2.msra.mxu0 0.0
    %902 = vmatprep.mubr.f32.mxu0 0.0
    %903 = vmatmul.mubr.f32.gmra.mxu0 %v836
    %v904 = vpop.f32.mrf.mxu0
    %v905 = vadd.f32 0.0, %v904
    %v906 = vpop.f32.mrf.mxu0
    %907 = vdwg.mxu0
    %909 = vrot.lane.b32.xlu0 %v905, 16
    %v910 = vpop.permute.xlu0 %909
    %v912 = vsel %vm311, %v739, %v910
    %914 = vrot.lane.b32.xlu0 %v574, 96
    %v915 = vpop.permute.xlu0 %914
    %v916 = vsel %vm311, %v574, 0
    %v918 = vsel %vm311, %v915, 0
    %920 = vmatprep.subr.mxu0 0.0
    %921 = vmatpush1.xpose.msra.mxu0 0.0
    %922 = vmatprep.subr.mxu0 0.0
    %923 = vmatpush1.xpose.msra.mxu0 0.0
    %924 = vmatprep.subr.mxu0 0.0
    %925 = vmatpush1.xpose.msra.mxu0 0.0
    %926 = vmatprep.subr.mxu0 0.0
    %927 = vmatpush1.xpose.msra.mxu0 0.0
    %928 = vmatprep.subr.mxu0 0.0
    %929 = vmatpush1.xpose.msra.mxu0 0.0
    %930 = vmatprep.subr.mxu0 0.0
    %931 = vmatpush1.xpose.msra.mxu0 0.0
    %932 = vmatprep.subr.mxu0 0.0
    %933 = vmatpush1.xpose.msra.mxu0 0.0
    %934 = vmatprep.subr.mxu0 0.0
    %935 = vmatpush1.xpose.msra.mxu0 0.0
    %936 = vmatprep.subr.mxu0 0.0
    %937 = vmatpush1.xpose.msra.mxu0 0.0
    %938 = vmatprep.subr.mxu0 0.0
    %939 = vmatpush1.xpose.msra.mxu0 0.0
    %940 = vmatprep.subr.mxu0 0.0
    %941 = vmatpush1.xpose.msra.mxu0 0.0
    %942 = vmatprep.subr.mxu0 0.0
    %943 = vmatpush1.xpose.msra.mxu0 0.0
    %944 = vmatprep.subr.mxu0 0.0
    %945 = vmatpush1.xpose.msra.mxu0 0.0
    %946 = vmatprep.subr.mxu0 0.0
    %947 = vmatpush1.xpose.msra.mxu0 0.0
    %948 = vmatprep.subr.mxu0 0.0
    %949 = vmatpush1.xpose.msra.mxu0 0.0
    %950 = vmatprep.subr.mxu0 0.0
    %951 = vmatpush1.xpose.msra.mxu0 %v918
    %952 = vmatprep.subr.mxu0 0.0
    %953 = vmatpush2.xpose.msra.mxu0 0.0
    %954 = vmatprep.subr.mxu0 0.0
    %955 = vmatpush2.xpose.msra.mxu0 0.0
    %956 = vmatprep.subr.mxu0 0.0
    %957 = vmatpush2.xpose.msra.mxu0 0.0
    %958 = vmatprep.subr.mxu0 0.0
    %959 = vmatpush2.xpose.msra.mxu0 0.0
    %960 = vmatprep.subr.mxu0 0.0
    %961 = vmatpush2.xpose.msra.mxu0 0.0
    %962 = vmatprep.subr.mxu0 0.0
    %963 = vmatpush2.xpose.msra.mxu0 0.0
    %964 = vmatprep.subr.mxu0 0.0
    %965 = vmatpush2.xpose.msra.mxu0 0.0
    %966 = vmatprep.subr.mxu0 0.0
    %967 = vmatpush2.xpose.msra.mxu0 0.0
    %968 = vmatprep.subr.mxu0 0.0
    %969 = vmatpush2.xpose.msra.mxu0 0.0
    %970 = vmatprep.subr.mxu0 0.0
    %971 = vmatpush2.xpose.msra.mxu0 0.0
    %972 = vmatprep.subr.mxu0 0.0
    %973 = vmatpush2.xpose.msra.mxu0 0.0
    %974 = vmatprep.subr.mxu0 0.0
    %975 = vmatpush2.xpose.msra.mxu0 0.0
    %976 = vmatprep.subr.mxu0 0.0
    %977 = vmatpush2.xpose.msra.mxu0 0.0
    %978 = vmatprep.subr.mxu0 0.0
    %979 = vmatpush2.xpose.msra.mxu0 0.0
    %980 = vmatprep.subr.mxu0 0.0
    %981 = vmatpush2.xpose.msra.mxu0 0.0
    %982 = vmatprep.subr.mxu0 0.0
    %983 = vmatpush2.xpose.msra.mxu0 0.0
    %984 = vmatprep.mubr.f32.mxu0 0.0
    %985 = vmatmul.mubr.f32.gmra.mxu0 %v916
    %v986 = vpop.f32.mrf.mxu0
    %v987 = vadd.f32 0.0, %v986
    %v988 = vpop.f32.mrf.mxu0
    %989 = vdwg.mxu0
    %v990 = vmul.f32 %v987, 0.25
    %v991 = vsel %vm207, %v990, -inf
    %992 = vmax.xlane.f32.xlu0 %v991
    %v993 = vpop.xlane.xlu0 %992
    %v994 = vsub.f32 %v990, %v993
    %v995 = vmul.f32 %v994, 1.442695
    %v996 = vpow.pop %v995
    %v997 = vsel %vm207, %v996, 0.0
    %998 = vadd.xlane.f32.xlu0 %v997
    %v999 = vpop.xlane.xlu0 %998
    %v1000 = vrcp.pop %v999
    %v1001 = vmul.f32 %v996, %v1000
    %1002 = vrot.lane.b32.xlu0 %v574, 64
    %v1003 = vpop.permute.xlu0 %1002
    %v1006 = vsel %vm207, %v1001, 0
    %1008 = vmatprep.subr.mxu0 0.0
    %1009 = vmatpush1.msra.mxu0 0.0
    %1010 = vmatprep.subr.mxu0 0.0
    %1011 = vmatpush1.msra.mxu0 0.0
    %1012 = vmatprep.subr.mxu0 0.0
    %1013 = vmatpush1.msra.mxu0 0.0
    %1014 = vmatprep.subr.mxu0 0.0
    %1015 = vmatpush1.msra.mxu0 0.0
    %1016 = vmatprep.subr.mxu0 0.0
    %1017 = vmatpush1.msra.mxu0 0.0
    %1018 = vmatprep.subr.mxu0 0.0
    %1019 = vmatpush1.msra.mxu0 0.0
    %1020 = vmatprep.subr.mxu0 0.0
    %1021 = vmatpush1.msra.mxu0 0.0
    %1022 = vmatprep.subr.mxu0 0.0
    %1023 = vmatpush1.msra.mxu0 0.0
    %1024 = vmatprep.subr.mxu0 0.0
    %1025 = vmatpush1.msra.mxu0 0.0
    %1026 = vmatprep.subr.mxu0 0.0
    %1027 = vmatpush1.msra.mxu0 0.0
    %1028 = vmatprep.subr.mxu0 0.0
    %1029 = vmatpush1.msra.mxu0 0.0
    %1030 = vmatprep.subr.mxu0 0.0
    %1031 = vmatpush1.msra.mxu0 0.0
    %1032 = vmatprep.subr.mxu0 0.0
    %1033 = vmatpush1.msra.mxu0 0.0
    %1034 = vmatprep.subr.mxu0 0.0
    %1035 = vmatpush1.msra.mxu0 0.0
    %1036 = vmatprep.subr.mxu0 0.0
    %1037 = vmatpush1.msra.mxu0 0.0
    %1038 = vmatprep.subr.mxu0 0.0
    %1039 = vmatpush1.msra.mxu0 %v1003
    %1040 = vmatprep.subr.mxu0 0.0
    %1041 = vmatpush2.msra.mxu0 0.0
    %1042 = vmatprep.subr.mxu0 0.0
    %1043 = vmatpush2.msra.mxu0 0.0
    %1044 = vmatprep.subr.mxu0 0.0
    %1045 = vmatpush2.msra.mxu0 0.0
    %1046 = vmatprep.subr.mxu0 0.0
    %1047 = vmatpush2.msra.mxu0 0.0
    %1048 = vmatprep.subr.mxu0 0.0
    %1049 = vmatpush2.msra.mxu0 0.0
    %1050 = vmatprep.subr.mxu0 0.0
    %1051 = vmatpush2.msra.mxu0 0.0
    %1052 = vmatprep.subr.mxu0 0.0
    %1053 = vmatpush2.msra.mxu0 0.0
    %1054 = vmatprep.subr.mxu0 0.0
    %1055 = vmatpush2.msra.mxu0 0.0
    %1056 = vmatprep.subr.mxu0 0.0
    %1057 = vmatpush2.msra.mxu0 0.0
    %1058 = vmatprep.subr.mxu0 0.0
    %1059 = vmatpush2.msra.mxu0 0.0
    %1060 = vmatprep.subr.mxu0 0.0
    %1061 = vmatpush2.msra.mxu0 0.0
    %1062 = vmatprep.subr.mxu0 0.0
    %1063 = vmatpush2.msra.mxu0 0.0
    %1064 = vmatprep.subr.mxu0 0.0
    %1065 = vmatpush2.msra.mxu0 0.0
    %1066 = vmatprep.subr.mxu0 0.0
    %1067 = vmatpush2.msra.mxu0 0.0
    %1068 = vmatprep.subr.mxu0 0.0
    %1069 = vmatpush2.msra.mxu0 0.0
    %1070 = vmatprep.subr.mxu0 0.0
    %1071 = vmatpush2.msra.mxu0 0.0
    %1072 = vmatprep.mubr.f32.mxu0 0.0
    %1073 = vmatmul.mubr.f32.gmra.mxu0 %v1006
    %v1074 = vpop.f32.mrf.mxu0
    %v1075 = vadd.f32 0.0, %v1074
    %v1076 = vpop.f32.mrf.mxu0
    %1077 = vdwg.mxu0
    %1078 = vrot.lane.b32.xlu0 %v574, 112
    %v1079 = vpop.permute.xlu0 %1078
    %1080 = vrot.lane.b32.xlu0 %v574, 80
    %v1081 = vpop.permute.xlu0 %1080
    %v1082 = vsel %vm311, %v1079, 0
    %v1084 = vsel %vm311, %v1081, 0
    %1086 = vmatprep.subr.mxu0 0.0
    %1087 = vmatpush1.xpose.msra.mxu0 0.0
    %1088 = vmatprep.subr.mxu0 0.0
    %1089 = vmatpush1.xpose.msra.mxu0 0.0
    %1090 = vmatprep.subr.mxu0 0.0
    %1091 = vmatpush1.xpose.msra.mxu0 0.0
    %1092 = vmatprep.subr.mxu0 0.0
    %1093 = vmatpush1.xpose.msra.mxu0 0.0
    %1094 = vmatprep.subr.mxu0 0.0
    %1095 = vmatpush1.xpose.msra.mxu0 0.0
    %1096 = vmatprep.subr.mxu0 0.0
    %1097 = vmatpush1.xpose.msra.mxu0 0.0
    %1098 = vmatprep.subr.mxu0 0.0
    %1099 = vmatpush1.xpose.msra.mxu0 0.0
    %1100 = vmatprep.subr.mxu0 0.0
    %1101 = vmatpush1.xpose.msra.mxu0 0.0
    %1102 = vmatprep.subr.mxu0 0.0
    %1103 = vmatpush1.xpose.msra.mxu0 0.0
    %1104 = vmatprep.subr.mxu0 0.0
    %1105 = vmatpush1.xpose.msra.mxu0 0.0
    %1106 = vmatprep.subr.mxu0 0.0
    %1107 = vmatpush1.xpose.msra.mxu0 0.0
    %1108 = vmatprep.subr.mxu0 0.0
    %1109 = vmatpush1.xpose.msra.mxu0 0.0
    %1110 = vmatprep.subr.mxu0 0.0
    %1111 = vmatpush1.xpose.msra.mxu0 0.0
    %1112 = vmatprep.subr.mxu0 0.0
    %1113 = vmatpush1.xpose.msra.mxu0 0.0
    %1114 = vmatprep.subr.mxu0 0.0
    %1115 = vmatpush1.xpose.msra.mxu0 0.0
    %1116 = vmatprep.subr.mxu0 0.0
    %1117 = vmatpush1.xpose.msra.mxu0 %v1084
    %1118 = vmatprep.subr.mxu0 0.0
    %1119 = vmatpush2.xpose.msra.mxu0 0.0
    %1120 = vmatprep.subr.mxu0 0.0
    %1121 = vmatpush2.xpose.msra.mxu0 0.0
    %1122 = vmatprep.subr.mxu0 0.0
    %1123 = vmatpush2.xpose.msra.mxu0 0.0
    %1124 = vmatprep.subr.mxu0 0.0
    %1125 = vmatpush2.xpose.msra.mxu0 0.0
    %1126 = vmatprep.subr.mxu0 0.0
    %1127 = vmatpush2.xpose.msra.mxu0 0.0
    %1128 = vmatprep.subr.mxu0 0.0
    %1129 = vmatpush2.xpose.msra.mxu0 0.0
    %1130 = vmatprep.subr.mxu0 0.0
    %1131 = vmatpush2.xpose.msra.mxu0 0.0
    %1132 = vmatprep.subr.mxu0 0.0
    %1133 = vmatpush2.xpose.msra.mxu0 0.0
    %1134 = vmatprep.subr.mxu0 0.0
    %1135 = vmatpush2.xpose.msra.mxu0 0.0
    %1136 = vmatprep.subr.mxu0 0.0
    %1137 = vmatpush2.xpose.msra.mxu0 0.0
    %1138 = vmatprep.subr.mxu0 0.0
    %1139 = vmatpush2.xpose.msra.mxu0 0.0
    %1140 = vmatprep.subr.mxu0 0.0
    %1141 = vmatpush2.xpose.msra.mxu0 0.0
    %1142 = vmatprep.subr.mxu0 0.0
    %1143 = vmatpush2.xpose.msra.mxu0 0.0
    %1144 = vmatprep.subr.mxu0 0.0
    %1145 = vmatpush2.xpose.msra.mxu0 0.0
    %1146 = vmatprep.subr.mxu0 0.0
    %1147 = vmatpush2.xpose.msra.mxu0 0.0
    %1148 = vmatprep.subr.mxu0 0.0
    %1149 = vmatpush2.xpose.msra.mxu0 0.0
    %1150 = vmatprep.mubr.f32.mxu0 0.0
    %1151 = vmatmul.mubr.f32.gmra.mxu0 %v1082
    %v1152 = vpop.f32.mrf.mxu0
    %v1153 = vadd.f32 0.0, %v1152
    %v1154 = vpop.f32.mrf.mxu0
    %1155 = vdwg.mxu0
    %v1156 = vmul.f32 %v1153, 0.25
    %v1157 = vsel %vm207, %v1156, -inf
    %1158 = vmax.xlane.f32.xlu0 %v1157
    %v1159 = vpop.xlane.xlu0 %1158
    %v1160 = vsub.f32 %v1156, %v1159
    %v1161 = vmul.f32 %v1160, 1.442695
    %v1162 = vpow.pop %v1161
    %v1163 = vsel %vm207, %v1162, 0.0
    %1164 = vadd.xlane.f32.xlu0 %v1163
    %v1165 = vpop.xlane.xlu0 %1164
    %v1166 = vrcp.pop %v1165
    %v1167 = vmul.f32 %v1162, %v1166
    %1168 = vrot.lane.b32.xlu0 %v574, 48
    %v1169 = vpop.permute.xlu0 %1168
    %v1172 = vsel %vm207, %v1167, 0
    %1174 = vmatprep.subr.mxu0 0.0
    %1175 = vmatpush1.msra.mxu0 0.0
    %1176 = vmatprep.subr.mxu0 0.0
    %1177 = vmatpush1.msra.mxu0 0.0
    %1178 = vmatprep.subr.mxu0 0.0
    %1179 = vmatpush1.msra.mxu0 0.0
    %1180 = vmatprep.subr.mxu0 0.0
    %1181 = vmatpush1.msra.mxu0 0.0
    %1182 = vmatprep.subr.mxu0 0.0
    %1183 = vmatpush1.msra.mxu0 0.0
    %1184 = vmatprep.subr.mxu0 0.0
    %1185 = vmatpush1.msra.mxu0 0.0
    %1186 = vmatprep.subr.mxu0 0.0
    %1187 = vmatpush1.msra.mxu0 0.0
    %1188 = vmatprep.subr.mxu0 0.0
    %1189 = vmatpush1.msra.mxu0 0.0
    %1190 = vmatprep.subr.mxu0 0.0
    %1191 = vmatpush1.msra.mxu0 0.0
    %1192 = vmatprep.subr.mxu0 0.0
    %1193 = vmatpush1.msra.mxu0 0.0
    %1194 = vmatprep.subr.mxu0 0.0
    %1195 = vmatpush1.msra.mxu0 0.0
    %1196 = vmatprep.subr.mxu0 0.0
    %1197 = vmatpush1.msra.mxu0 0.0
    %1198 = vmatprep.subr.mxu0 0.0
    %1199 = vmatpush1.msra.mxu0 0.0
    %1200 = vmatprep.subr.mxu0 0.0
    %1201 = vmatpush1.msra.mxu0 0.0
    %1202 = vmatprep.subr.mxu0 0.0
    %1203 = vmatpush1.msra.mxu0 0.0
    %1204 = vmatprep.subr.mxu0 0.0
    %1205 = vmatpush1.msra.mxu0 %v1169
    %1206 = vmatprep.subr.mxu0 0.0
    %1207 = vmatpush2.msra.mxu0 0.0
    %1208 = vmatprep.subr.mxu0 0.0
    %1209 = vmatpush2.msra.mxu0 0.0
    %1210 = vmatprep.subr.mxu0 0.0
    %1211 = vmatpush2.msra.mxu0 0.0
    %1212 = vmatprep.subr.mxu0 0.0
    %1213 = vmatpush2.msra.mxu0 0.0
    %1214 = vmatprep.subr.mxu0 0.0
    %1215 = vmatpush2.msra.mxu0 0.0
    %1216 = vmatprep.subr.mxu0 0.0
    %1217 = vmatpush2.msra.mxu0 0.0
    %1218 = vmatprep.subr.mxu0 0.0
    %1219 = vmatpush2.msra.mxu0 0.0
    %1220 = vmatprep.subr.mxu0 0.0
    %1221 = vmatpush2.msra.mxu0 0.0
    %1222 = vmatprep.subr.mxu0 0.0
    %1223 = vmatpush2.msra.mxu0 0.0
    %1224 = vmatprep.subr.mxu0 0.0
    %1225 = vmatpush2.msra.mxu0 0.0
    %1226 = vmatprep.subr.mxu0 0.0
    %1227 = vmatpush2.msra.mxu0 0.0
    %1228 = vmatprep.subr.mxu0 0.0
    %1229 = vmatpush2.msra.mxu0 0.0
    %1230 = vmatprep.subr.mxu0 0.0
    %1231 = vmatpush2.msra.mxu0 0.0
    %1232 = vmatprep.subr.mxu0 0.0
    %1233 = vmatpush2.msra.mxu0 0.0
    %1234 = vmatprep.subr.mxu0 0.0
    %1235 = vmatpush2.msra.mxu0 0.0
    %1236 = vmatprep.subr.mxu0 0.0
    %1237 = vmatpush2.msra.mxu0 0.0
    %1238 = vmatprep.mubr.f32.mxu0 0.0
    %1239 = vmatmul.mubr.f32.gmra.mxu0 %v1172
    %v1240 = vpop.f32.mrf.mxu0
    %v1241 = vadd.f32 0.0, %v1240
    %v1242 = vpop.f32.mrf.mxu0
    %1243 = vdwg.mxu0
    %1245 = vrot.lane.b32.xlu0 %v1241, 16
    %v1246 = vpop.permute.xlu0 %1245
    %v1248 = vsel %vm311, %v1075, %v1246
    %v1249 = vld [vmem:[%s4] sm:$0xff]
    %v1250 = vld [vmem:[%s4 + $0x8] sm:$0xff]
    %v1251 = vld [vmem:[%s4 + $0x10] sm:$0xff]
    %v1252 = vld [vmem:[%s4 + $0x18] sm:$0xff]
    %v1253 = vlaneseq
    %v1254 = vshrl.u32 %v1253, 7
    %v1255 = vsub.s32 1, %v1254
    %v1256 = vrot.slane %v89, %v1255
    %v1258 = vsel %vm403, %v912, 0
    %v1261 = vsel %vm403, %v1248, 0
    %1263 = vmatprep.subr.mxu0 0.0
    %1264 = vmatpush1.msra.mxu0 0.0
    %1265 = vmatprep.subr.mxu0 0.0
    %1266 = vmatpush1.msra.mxu0 0.0
    %1267 = vmatprep.subr.mxu0 0.0
    %1268 = vmatpush1.msra.mxu0 0.0
    %1269 = vmatprep.subr.mxu0 0.0
    %1270 = vmatpush1.msra.mxu0 0.0
    %1271 = vmatprep.subr.mxu0 0.0
    %1272 = vmatpush1.msra.mxu0 0.0
    %1273 = vmatprep.subr.mxu0 0.0
    %1274 = vmatpush1.msra.mxu0 0.0
    %1275 = vmatprep.subr.mxu0 0.0
    %1276 = vmatpush1.msra.mxu0 0.0
    %1277 = vmatprep.subr.mxu0 0.0
    %1278 = vmatpush1.msra.mxu0 0.0
    %1279 = vmatprep.subr.mxu0 0.0
    %1280 = vmatpush1.msra.mxu0 0.0
    %1281 = vmatprep.subr.mxu0 0.0
    %1282 = vmatpush1.msra.mxu0 0.0
    %1283 = vmatprep.subr.mxu0 0.0
    %1284 = vmatpush1.msra.mxu0 0.0
    %1285 = vmatprep.subr.mxu0 0.0
    %1286 = vmatpush1.msra.mxu0 0.0
    %1287 = vmatprep.subr.mxu0 0.0
    %1288 = vmatpush1.msra.mxu0 %v1252
    %1289 = vmatprep.subr.mxu0 0.0
    %1290 = vmatpush1.msra.mxu0 %v1251
    %1291 = vmatprep.subr.mxu0 0.0
    %1292 = vmatpush1.msra.mxu0 %v1250
    %1293 = vmatprep.subr.mxu0 0.0
    %1294 = vmatpush1.msra.mxu0 %v1249
    %1295 = vmatprep.subr.mxu0 0.0
    %1296 = vmatpush2.msra.mxu0 0.0
    %1297 = vmatprep.subr.mxu0 0.0
    %1298 = vmatpush2.msra.mxu0 0.0
    %1299 = vmatprep.subr.mxu0 0.0
    %1300 = vmatpush2.msra.mxu0 0.0
    %1301 = vmatprep.subr.mxu0 0.0
    %1302 = vmatpush2.msra.mxu0 0.0
    %1303 = vmatprep.subr.mxu0 0.0
    %1304 = vmatpush2.msra.mxu0 0.0
    %1305 = vmatprep.subr.mxu0 0.0
    %1306 = vmatpush2.msra.mxu0 0.0
    %1307 = vmatprep.subr.mxu0 0.0
    %1308 = vmatpush2.msra.mxu0 0.0
    %1309 = vmatprep.subr.mxu0 0.0
    %1310 = vmatpush2.msra.mxu0 0.0
    %1311 = vmatprep.subr.mxu0 0.0
    %1312 = vmatpush2.msra.mxu0 0.0
    %1313 = vmatprep.subr.mxu0 0.0
    %1314 = vmatpush2.msra.mxu0 0.0
    %1315 = vmatprep.subr.mxu0 0.0
    %1316 = vmatpush2.msra.mxu0 0.0
    %1317 = vmatprep.subr.mxu0 0.0
    %1318 = vmatpush2.msra.mxu0 0.0
    %1319 = vmatprep.subr.mxu0 0.0
    %1320 = vmatpush2.msra.mxu0 0.0
    %1321 = vmatprep.subr.mxu0 0.0
    %1322 = vmatpush2.msra.mxu0 0.0
    %1323 = vmatprep.subr.mxu0 0.0
    %1324 = vmatpush2.msra.mxu0 0.0
    %1325 = vmatprep.subr.mxu0 0.0
    %1326 = vmatpush2.msra.mxu0 0.0
    %1327 = vmatprep.mubr.f32.mxu0 0.0
    %1328 = vmatmul.mubr.f32.gmra.mxu0 %v1258
    %v1329 = vpop.f32.mrf.mxu0
    %v1330 = vadd.f32 %v1256, %v1329
    %v1331 = vpop.f32.mrf.mxu0
    %1332 = vmatprep.mubr.f32.mxu0 0.0
    %1333 = vmatmul.mubr.f32.gmra.mxu0 %v1261
    %v1334 = vpop.f32.mrf.mxu0
    %v1335 = vadd.f32 %v1256, %v1334
    %v1336 = vpop.f32.mrf.mxu0
    %1337 = vdwg.mxu0
    %v1338 = vadd.f32 %v486, %v1330
    %v1339 = vadd.f32 %v487, %v1335
    %v1340 = vsel %vm403, %v1338, 0.0
    %1341 = vadd.xlane.f32.xlu0 %v1340
    %v1342 = vpop.xlane.xlu0 %1341
    %v1343 = vsel %vm403, %v1339, 0.0
    %1344 = vadd.xlane.f32.xlu0 %v1343
    %v1345 = vpop.xlane.xlu0 %1344
    %v1346 = vrcp.pop 32.0
    %v1347 = vmul.f32 %v1342, %v1346
    %v1348 = vmul.f32 %v1345, %v1346
    %v1349 = vsub.f32 %v1338, %v1347
    %v1350 = vsub.f32 %v1339, %v1348
    %v1351 = vmul.f32 %v1349, %v1349
    %v1352 = vmul.f32 %v1350, %v1350
    %v1353 = vsel %vm403, %v1351, 0.0
    %1354 = vadd.xlane.f32.xlu0 %v1353
    %v1355 = vpop.xlane.xlu0 %1354
    %v1356 = vsel %vm403, %v1352, 0.0
    %1357 = vadd.xlane.f32.xlu0 %v1356
    %v1358 = vpop.xlane.xlu0 %1357
    %v1359 = vmul.f32 %v1355, %v1346
    %v1360 = vmul.f32 %v1358, %v1346
    %v1361 = vadd.f32 %v1359, 1e-05
    %v1362 = vadd.f32 %v1360, 1e-05
    %v1363 = vrsqrt.pop %v1361
    %v1364 = vrsqrt.pop %v1362
    %v1365 = vmul.f32 %v1349, %v1363
    %v1366 = vmul.f32 %v1350, %v1364
    %v1367 = vlaneseq
    %v1368 = vshrl.u32 %v1367, 7
    %v1369 = vsub.s32 4, %v1368
    %v1370 = vrot.slane %v89, %v1369
    %v1371 = vmul.f32 %v1365, %v1370
    %v1372 = vmul.f32 %v1366, %v1370
    %v1373 = vlaneseq
    %v1374 = vshrl.u32 %v1373, 7
    %v1375 = vsub.s32 5, %v1374
    %v1376 = vrot.slane %v89, %v1375
    %v1377 = vadd.f32 %v1371, %v1376
    %v1378 = vadd.f32 %v1372, %v1376
    %v1379 = vld [vmem:[%s5] sm:$0xff]
    %v1380 = vld [vmem:[%s5 + $0x8] sm:$0xff]
    %v1381 = vld [vmem:[%s5 + $0x10] sm:$0xff]
    %v1382 = vld [vmem:[%s5 + $0x18] sm:$0xff]
    %v1383 = vlaneseq
    %v1384 = vshrl.u32 %v1383, 7
    %v1385 = vsub.s32 2, %v1384
    %v1386 = vrot.slane %v89, %v1385
    %v1388 = vsel %vm403, %v1377, 0
    %v1391 = vsel %vm403, %v1378, 0
    %1393 = vmatprep.subr.mxu0 0.0
    %1394 = vmatpush1.msra.mxu0 0.0
    %1395 = vmatprep.subr.mxu0 0.0
    %1396 = vmatpush1.msra.mxu0 0.0
    %1397 = vmatprep.subr.mxu0 0.0
    %1398 = vmatpush1.msra.mxu0 0.0
    %1399 = vmatprep.subr.mxu0 0.0
    %1400 = vmatpush1.msra.mxu0 0.0
    %1401 = vmatprep.subr.mxu0 0.0
    %1402 = vmatpush1.msra.mxu0 0.0
    %1403 = vmatprep.subr.mxu0 0.0
    %1404 = vmatpush1.msra.mxu0 0.0
    %1405 = vmatprep.subr.mxu0 0.0
    %1406 = vmatpush1.msra.mxu0 0.0
    %1407 = vmatprep.subr.mxu0 0.0
    %1408 = vmatpush1.msra.mxu0 0.0
    %1409 = vmatprep.subr.mxu0 0.0
    %1410 = vmatpush1.msra.mxu0 0.0
    %1411 = vmatprep.subr.mxu0 0.0
    %1412 = vmatpush1.msra.mxu0 0.0
    %1413 = vmatprep.subr.mxu0 0.0
    %1414 = vmatpush1.msra.mxu0 0.0
    %1415 = vmatprep.subr.mxu0 0.0
    %1416 = vmatpush1.msra.mxu0 0.0
    %1417 = vmatprep.subr.mxu0 0.0
    %1418 = vmatpush1.msra.mxu0 %v1382
    %1419 = vmatprep.subr.mxu0 0.0
    %1420 = vmatpush1.msra.mxu0 %v1381
    %1421 = vmatprep.subr.mxu0 0.0
    %1422 = vmatpush1.msra.mxu0 %v1380
    %1423 = vmatprep.subr.mxu0 0.0
    %1424 = vmatpush1.msra.mxu0 %v1379
    %1425 = vmatprep.subr.mxu0 0.0
    %1426 = vmatpush2.msra.mxu0 0.0
    %1427 = vmatprep.subr.mxu0 0.0
    %1428 = vmatpush2.msra.mxu0 0.0
    %1429 = vmatprep.subr.mxu0 0.0
    %1430 = vmatpush2.msra.mxu0 0.0
    %1431 = vmatprep.subr.mxu0 0.0
    %1432 = vmatpush2.msra.mxu0 0.0
    %1433 = vmatprep.subr.mxu0 0.0
    %1434 = vmatpush2.msra.mxu0 0.0
    %1435 = vmatprep.subr.mxu0 0.0
    %1436 = vmatpush2.msra.mxu0 0.0
    %1437 = vmatprep.subr.mxu0 0.0
    %1438 = vmatpush2.msra.mxu0 0.0
    %1439 = vmatprep.subr.mxu0 0.0
    %1440 = vmatpush2.msra.mxu0 0.0
    %1441 = vmatprep.subr.mxu0 0.0
    %1442 = vmatpush2.msra.mxu0 0.0
    %1443 = vmatprep.subr.mxu0 0.0
    %1444 = vmatpush2.msra.mxu0 0.0
    %1445 = vmatprep.subr.mxu0 0.0
    %1446 = vmatpush2.msra.mxu0 0.0
    %1447 = vmatprep.subr.mxu0 0.0
    %1448 = vmatpush2.msra.mxu0 0.0
    %1449 = vmatprep.subr.mxu0 0.0
    %1450 = vmatpush2.msra.mxu0 0.0
    %1451 = vmatprep.subr.mxu0 0.0
    %1452 = vmatpush2.msra.mxu0 0.0
    %1453 = vmatprep.subr.mxu0 0.0
    %1454 = vmatpush2.msra.mxu0 0.0
    %1455 = vmatprep.subr.mxu0 0.0
    %1456 = vmatpush2.msra.mxu0 0.0
    %1457 = vmatprep.mubr.f32.mxu0 0.0
    %1458 = vmatmul.mubr.f32.gmra.mxu0 %v1388
    %v1459 = vpop.f32.mrf.mxu0
    %v1460 = vadd.f32 %v1386, %v1459
    %v1461 = vpop.f32.mrf.mxu0
    %1462 = vmatprep.mubr.f32.mxu0 0.0
    %1463 = vmatmul.mubr.f32.gmra.mxu0 %v1391
    %v1464 = vpop.f32.mrf.mxu0
    %v1465 = vadd.f32 %v1386, %v1464
    %v1466 = vpop.f32.mrf.mxu0
    %1467 = vdwg.mxu0
    %v1468 = vmax.f32 %v1460, 0.0
    %v1469 = vmax.f32 %v1465, 0.0
    %v1470 = vld [vmem:[%s6] sm:$0xff]
    %v1471 = vld [vmem:[%s6 + $0x8] sm:$0xff]
    %v1472 = vld [vmem:[%s6 + $0x10] sm:$0xff]
    %v1473 = vld [vmem:[%s6 + $0x18] sm:$0xff]
    %v1474 = vld [vmem:[%s6 + $0x20] sm:$0xff]
    %v1475 = vld [vmem:[%s6 + $0x28] sm:$0xff]
    %v1476 = vld [vmem:[%s6 + $0x30] sm:$0xff]
    %v1477 = vld [vmem:[%s6 + $0x38] sm:$0xff]
    %v1478 = vlaneseq
    %v1479 = vshrl.u32 %v1478, 7
    %v1480 = vsub.s32 3, %v1479
    %v1481 = vrot.slane %v89, %v1480
    %vm1482 = vcmask 523264
    %v1484 = vsel %vm1482, %v1468, 0
    %v1487 = vsel %vm1482, %v1469, 0
    %1489 = vmatprep.subr.mxu0 0.0
    %1490 = vmatpush1.msra.mxu0 0.0
    %1491 = vmatprep.subr.mxu0 0.0
    %1492 = vmatpush1.msra.mxu0 0.0
    %1493 = vmatprep.subr.mxu0 0.0
    %1494 = vmatpush1.msra.mxu0 0.0
    %1495 = vmatprep.subr.mxu0 0.0
    %1496 = vmatpush1.msra.mxu0 0.0
    %1497 = vmatprep.subr.mxu0 0.0
    %1498 = vmatpush1.msra.mxu0 0.0
    %1499 = vmatprep.subr.mxu0 0.0
    %1500 = vmatpush1.msra.mxu0 0.0
    %1501 = vmatprep.subr.mxu0 0.0
    %1502 = vmatpush1.msra.mxu0 0.0
    %1503 = vmatprep.subr.mxu0 0.0
    %1504 = vmatpush1.msra.mxu0 0.0
    %1505 = vmatprep.subr.mxu0 0.0
    %1506 = vmatpush1.msra.mxu0 %v1477
    %1507 = vmatprep.subr.mxu0 0.0
    %1508 = vmatpush1.msra.mxu0 %v1476
    %1509 = vmatprep.subr.mxu0 0.0
    %1510 = vmatpush1.msra.mxu0 %v1475
    %1511 = vmatprep.subr.mxu0 0.0
    %1512 = vmatpush1.msra.mxu0 %v1474
    %1513 = vmatprep.subr.mxu0 0.0
    %1514 = vmatpush1.msra.mxu0 %v1473
    %1515 = vmatprep.subr.mxu0 0.0
    %1516 = vmatpush1.msra.mxu0 %v1472
    %1517 = vmatprep.subr.mxu0 0.0
    %1518 = vmatpush1.msra.mxu0 %v1471
    %1519 = vmatprep.subr.mxu0 0.0
    %1520 = vmatpush1.msra.mxu0 %v1470
    %1521 = vmatprep.subr.mxu0 0.0
    %1522 = vmatpush2.msra.mxu0 0.0
    %1523 = vmatprep.subr.mxu0 0.0
    %1524 = vmatpush2.msra.mxu0 0.0
    %1525 = vmatprep.subr.mxu0 0.0
    %1526 = vmatpush2.msra.mxu0 0.0
    %1527 = vmatprep.subr.mxu0 0.0
    %1528 = vmatpush2.msra.mxu0 0.0
    %1529 = vmatprep.subr.mxu0 0.0
    %1530 = vmatpush2.msra.mxu0 0.0
    %1531 = vmatprep.subr.mxu0 0.0
    %1532 = vmatpush2.msra.mxu0 0.0
    %1533 = vmatprep.subr.mxu0 0.0
    %1534 = vmatpush2.msra.mxu0 0.0
    %1535 = vmatprep.subr.mxu0 0.0
    %1536 = vmatpush2.msra.mxu0 0.0
    %1537 = vmatprep.subr.mxu0 0.0
    %1538 = vmatpush2.msra.mxu0 0.0
    %1539 = vmatprep.subr.mxu0 0.0
    %1540 = vmatpush2.msra.mxu0 0.0
    %1541 = vmatprep.subr.mxu0 0.0
    %1542 = vmatpush2.msra.mxu0 0.0
    %1543 = vmatprep.subr.mxu0 0.0
    %1544 = vmatpush2.msra.mxu0 0.0
    %1545 = vmatprep.subr.mxu0 0.0
    %1546 = vmatpush2.msra.mxu0 0.0
    %1547 = vmatprep.subr.mxu0 0.0
    %1548 = vmatpush2.msra.mxu0 0.0
    %1549 = vmatprep.subr.mxu0 0.0
    %1550 = vmatpush2.msra.mxu0 0.0
    %1551 = vmatprep.subr.mxu0 0.0
    %1552 = vmatpush2.msra.mxu0 0.0
    %1553 = vmatprep.mubr.f32.mxu0 0.0
    %1554 = vmatmul.mubr.f32.gmra.mxu0 %v1484
    %v1555 = vpop.f32.mrf.mxu0
    %v1556 = vadd.f32 %v1481, %v1555
    %v1557 = vpop.f32.mrf.mxu0
    %1558 = vmatprep.mubr.f32.mxu0 0.0
    %1559 = vmatmul.mubr.f32.gmra.mxu0 %v1487
    %v1560 = vpop.f32.mrf.mxu0
    %v1561 = vadd.f32 %v1481, %v1560
    %v1562 = vpop.f32.mrf.mxu0
    %1563 = vdwg.mxu0
    %v1564 = vadd.f32 %v1377, %v1556
    %v1565 = vadd.f32 %v1378, %v1561
    %v1566 = vsel %vm403, %v1564, 0.0
    %1567 = vadd.xlane.f32.xlu0 %v1566
    %v1568 = vpop.xlane.xlu0 %1567
    %v1569 = vsel %vm403, %v1565, 0.0
    %1570 = vadd.xlane.f32.xlu0 %v1569
    %v1571 = vpop.xlane.xlu0 %1570
    %v1572 = vmul.f32 %v1568, %v1346
    %v1573 = vmul.f32 %v1571, %v1346
    %v1574 = vsub.f32 %v1564, %v1572
    %v1575 = vsub.f32 %v1565, %v1573
    %v1576 = vmul.f32 %v1574, %v1574
    %v1577 = vmul.f32 %v1575, %v1575
    %v1578 = vsel %vm403, %v1576, 0.0
    %1579 = vadd.xlane.f32.xlu0 %v1578
    %v1580 = vpop.xlane.xlu0 %1579
    %v1581 = vsel %vm403, %v1577, 0.0
    %1582 = vadd.xlane.f32.xlu0 %v1581
    %v1583 = vpop.xlane.xlu0 %1582
    %v1584 = vmul.f32 %v1580, %v1346
    %v1585 = vmul.f32 %v1583, %v1346
    %v1586 = vadd.f32 %v1584, 1e-05
    %v1587 = vadd.f32 %v1585, 1e-05
    %v1588 = vrsqrt.pop %v1586
    %v1589 = vrsqrt.pop %v1587
    %v1590 = vmul.f32 %v1574, %v1588
    %v1591 = vmul.f32 %v1575, %v1589
    %v1592 = vlaneseq
    %v1593 = vshrl.u32 %v1592, 7
    %v1594 = vsub.s32 6, %v1593
    %v1595 = vrot.slane %v89, %v1594
    %v1596 = vmul.f32 %v1590, %v1595
    %v1597 = vmul.f32 %v1591, %v1595
    %v1598 = vlaneseq
    %v1599 = vshrl.u32 %v1598, 7
    %v1600 = vsub.s32 7, %v1599
    %v1601 = vrot.slane %v89, %v1600
    %v1602 = vadd.f32 %v1596, %v1601
    %v1603 = vadd.f32 %v1597, %v1601
    %s1604 = scalar_lea.vmem %s3, 32
    %v1605 = vld [vmem:[%s1604] sm:$0xff]
    %v1606 = vld [vmem:[%s1604 + $0x8] sm:$0xff]
    %v1607 = vld [vmem:[%s1604 + $0x10] sm:$0xff]
    %v1608 = vld [vmem:[%s1604 + $0x18] sm:$0xff]
    %v1609 = vlaneseq
    %v1610 = vshrl.u32 %v1609, 7
    %v1611 = vsub.s32 0, %v1610
    %v1612 = vrot.slane %v90, %v1611
    %v1614 = vsel %vm403, %v1602, 0
    %v1617 = vsel %vm403, %v1603, 0
    %1619 = vmatprep.subr.mxu0 0.0
    %1620 = vmatpush1.msra.mxu0 0.0
    %1621 = vmatprep.subr.mxu0 0.0
    %1622 = vmatpush1.msra.mxu0 0.0
    %1623 = vmatprep.subr.mxu0 0.0
    %1624 = vmatpush1.msra.mxu0 0.0
    %1625 = vmatprep.subr.mxu0 0.0
    %1626 = vmatpush1.msra.mxu0 0.0
    %1627 = vmatprep.subr.mxu0 0.0
    %1628 = vmatpush1.msra.mxu0 0.0
    %1629 = vmatprep.subr.mxu0 0.0
    %1630 = vmatpush1.msra.mxu0 0.0
    %1631 = vmatprep.subr.mxu0 0.0
    %1632 = vmatpush1.msra.mxu0 0.0
    %1633 = vmatprep.subr.mxu0 0.0
    %1634 = vmatpush1.msra.mxu0 0.0
    %1635 = vmatprep.subr.mxu0 0.0
    %1636 = vmatpush1.msra.mxu0 0.0
    %1637 = vmatprep.subr.mxu0 0.0
    %1638 = vmatpush1.msra.mxu0 0.0
    %1639 = vmatprep.subr.mxu0 0.0
    %1640 = vmatpush1.msra.mxu0 0.0
    %1641 = vmatprep.subr.mxu0 0.0
    %1642 = vmatpush1.msra.mxu0 0.0
    %1643 = vmatprep.subr.mxu0 0.0
    %1644 = vmatpush1.msra.mxu0 %v1608
    %1645 = vmatprep.subr.mxu0 0.0
    %1646 = vmatpush1.msra.mxu0 %v1607
    %1647 = vmatprep.subr.mxu0 0.0
    %1648 = vmatpush1.msra.mxu0 %v1606
    %1649 = vmatprep.subr.mxu0 0.0
    %1650 = vmatpush1.msra.mxu0 %v1605
    %1651 = vmatprep.subr.mxu0 0.0
    %1652 = vmatpush2.msra.mxu0 0.0
    %1653 = vmatprep.subr.mxu0 0.0
    %1654 = vmatpush2.msra.mxu0 0.0
    %1655 = vmatprep.subr.mxu0 0.0
    %1656 = vmatpush2.msra.mxu0 0.0
    %1657 = vmatprep.subr.mxu0 0.0
    %1658 = vmatpush2.msra.mxu0 0.0
    %1659 = vmatprep.subr.mxu0 0.0
    %1660 = vmatpush2.msra.mxu0 0.0
    %1661 = vmatprep.subr.mxu0 0.0
    %1662 = vmatpush2.msra.mxu0 0.0
    %1663 = vmatprep.subr.mxu0 0.0
    %1664 = vmatpush2.msra.mxu0 0.0
    %1665 = vmatprep.subr.mxu0 0.0
    %1666 = vmatpush2.msra.mxu0 0.0
    %1667 = vmatprep.subr.mxu0 0.0
    %1668 = vmatpush2.msra.mxu0 0.0
    %1669 = vmatprep.subr.mxu0 0.0
    %1670 = vmatpush2.msra.mxu0 0.0
    %1671 = vmatprep.subr.mxu0 0.0
    %1672 = vmatpush2.msra.mxu0 0.0
    %1673 = vmatprep.subr.mxu0 0.0
    %1674 = vmatpush2.msra.mxu0 0.0
    %1675 = vmatprep.subr.mxu0 0.0
    %1676 = vmatpush2.msra.mxu0 0.0
    %1677 = vmatprep.subr.mxu0 0.0
    %1678 = vmatpush2.msra.mxu0 0.0
    %1679 = vmatprep.subr.mxu0 0.0
    %1680 = vmatpush2.msra.mxu0 0.0
    %1681 = vmatprep.subr.mxu0 0.0
    %1682 = vmatpush2.msra.mxu0 0.0
    %1683 = vmatprep.mubr.f32.mxu0 0.0
    %1684 = vmatmul.mubr.f32.gmra.mxu0 %v1614
    %v1685 = vpop.f32.mrf.mxu0
    %v1686 = vadd.f32 %v1612, %v1685
    %v1687 = vpop.f32.mrf.mxu0
    %1688 = vmatprep.mubr.f32.mxu0 0.0
    %1689 = vmatmul.mubr.f32.gmra.mxu0 %v1617
    %v1690 = vpop.f32.mrf.mxu0
    %v1691 = vadd.f32 %v1612, %v1690
    %v1692 = vpop.f32.mrf.mxu0
    %1693 = vdwg.mxu0
    %1695 = vrot.lane.b32.xlu0 %v1686, 96
    %v1696 = vpop.permute.xlu0 %1695
    %v1697 = vsel %vm311, %v1686, 0
    %v1699 = vsel %vm311, %v1696, 0
    %1701 = vmatprep.subr.mxu0 0.0
    %1702 = vmatpush1.xpose.msra.mxu0 0.0
    %1703 = vmatprep.subr.mxu0 0.0
    %1704 = vmatpush1.xpose.msra.mxu0 0.0
    %1705 = vmatprep.subr.mxu0 0.0
    %1706 = vmatpush1.xpose.msra.mxu0 0.0
    %1707 = vmatprep.subr.mxu0 0.0
    %1708 = vmatpush1.xpose.msra.mxu0 0.0
    %1709 = vmatprep.subr.mxu0 0.0
    %1710 = vmatpush1.xpose.msra.mxu0 0.0
    %1711 = vmatprep.subr.mxu0 0.0
    %1712 = vmatpush1.xpose.msra.mxu0 0.0
    %1713 = vmatprep.subr.mxu0 0.0
    %1714 = vmatpush1.xpose.msra.mxu0 0.0
    %1715 = vmatprep.subr.mxu0 0.0
    %1716 = vmatpush1.xpose.msra.mxu0 0.0
    %1717 = vmatprep.subr.mxu0 0.0
    %1718 = vmatpush1.xpose.msra.mxu0 0.0
    %1719 = vmatprep.subr.mxu0 0.0
    %1720 = vmatpush1.xpose.msra.mxu0 0.0
    %1721 = vmatprep.subr.mxu0 0.0
    %1722 = vmatpush1.xpose.msra.mxu0 0.0
    %1723 = vmatprep.subr.mxu0 0.0
    %1724 = vmatpush1.xpose.msra.mxu0 0.0
    %1725 = vmatprep.subr.mxu0 0.0
    %1726 = vmatpush1.xpose.msra.mxu0 0.0
    %1727 = vmatprep.subr.mxu0 0.0
    %1728 = vmatpush1.xpose.msra.mxu0 0.0
    %1729 = vmatprep.subr.mxu0 0.0
    %1730 = vmatpush1.xpose.msra.mxu0 0.0
    %1731 = vmatprep.subr.mxu0 0.0
    %1732 = vmatpush1.xpose.msra.mxu0 %v1699
    %1733 = vmatprep.subr.mxu0 0.0
    %1734 = vmatpush2.xpose.msra.mxu0 0.0
    %1735 = vmatprep.subr.mxu0 0.0
    %1736 = vmatpush2.xpose.msra.mxu0 0.0
    %1737 = vmatprep.subr.mxu0 0.0
    %1738 = vmatpush2.xpose.msra.mxu0 0.0
    %1739 = vmatprep.subr.mxu0 0.0
    %1740 = vmatpush2.xpose.msra.mxu0 0.0
    %1741 = vmatprep.subr.mxu0 0.0
    %1742 = vmatpush2.xpose.msra.mxu0 0.0
    %1743 = vmatprep.subr.mxu0 0.0
    %1744 = vmatpush2.xpose.msra.mxu0 0.0
    %1745 = vmatprep.subr.mxu0 0.0
    %1746 = vmatpush2.xpose.msra.mxu0 0.0
    %1747 = vmatprep.subr.mxu0 0.0
    %1748 = vmatpush2.xpose.msra.mxu0 0.0
    %1749 = vmatprep.subr.mxu0 0.0
    %1750 = vmatpush2.xpose.msra.mxu0 0.0
    %1751 = vmatprep.subr.mxu0 0.0
    %1752 = vmatpush2.xpose.msra.mxu0 0.0
    %1753 = vmatprep.subr.mxu0 0.0
    %1754 = vmatpush2.xpose.msra.mxu0 0.0
    %1755 = vmatprep.subr.mxu0 0.0
    %1756 = vmatpush2.xpose.msra.mxu0 0.0
    %1757 = vmatprep.subr.mxu0 0.0
    %1758 = vmatpush2.xpose.msra.mxu0 0.0
    %1759 = vmatprep.subr.mxu0 0.0
    %1760 = vmatpush2.xpose.msra.mxu0 0.0
    %1761 = vmatprep.subr.mxu0 0.0
    %1762 = vmatpush2.xpose.msra.mxu0 0.0
    %1763 = vmatprep.subr.mxu0 0.0
    %1764 = vmatpush2.xpose.msra.mxu0 0.0
    %1765 = vmatprep.mubr.f32.mxu0 0.0
    %1766 = vmatmul.mubr.f32.gmra.mxu0 %v1697
    %v1767 = vpop.f32.mrf.mxu0
    %v1768 = vadd.f32 0.0, %v1767
    %v1769 = vpop.f32.mrf.mxu0
    %1770 = vdwg.mxu0
    %v1771 = vmul.f32 %v1768, 0.25
    %v1772 = vsel %vm207, %v1771, -inf
    %1773 = vmax.xlane.f32.xlu0 %v1772
    %v1774 = vpop.xlane.xlu0 %1773
    %v1775 = vsub.f32 %v1771, %v1774
    %v1776 = vmul.f32 %v1775, 1.442695
    %v1777 = vpow.pop %v1776
    %v1778 = vsel %vm207, %v1777, 0.0
    %1779 = vadd.xlane.f32.xlu0 %v1778
    %v1780 = vpop.xlane.xlu0 %1779
    %v1781 = vrcp.pop %v1780
    %v1782 = vmul.f32 %v1777, %v1781
    %1783 = vrot.lane.b32.xlu0 %v1686, 64
    %v1784 = vpop.permute.xlu0 %1783
    %v1787 = vsel %vm207, %v1782, 0
    %1789 = vmatprep.subr.mxu0 0.0
    %1790 = vmatpush1.msra.mxu0 0.0
    %1791 = vmatprep.subr.mxu0 0.0
    %1792 = vmatpush1.msra.mxu0 0.0
    %1793 = vmatprep.subr.mxu0 0.0
    %1794 = vmatpush1.msra.mxu0 0.0
    %1795 = vmatprep.subr.mxu0 0.0
    %1796 = vmatpush1.msra.mxu0 0.0
    %1797 = vmatprep.subr.mxu0 0.0
    %1798 = vmatpush1.msra.mxu0 0.0
    %1799 = vmatprep.subr.mxu0 0.0
    %1800 = vmatpush1.msra.mxu0 0.0
    %1801 = vmatprep.subr.mxu0 0.0
    %1802 = vmatpush1.msra.mxu0 0.0
    %1803 = vmatprep.subr.mxu0 0.0
    %1804 = vmatpush1.msra.mxu0 0.0
    %1805 = vmatprep.subr.mxu0 0.0
    %1806 = vmatpush1.msra.mxu0 0.0
    %1807 = vmatprep.subr.mxu0 0.0
    %1808 = vmatpush1.msra.mxu0 0.0
    %1809 = vmatprep.subr.mxu0 0.0
    %1810 = vmatpush1.msra.mxu0 0.0
    %1811 = vmatprep.subr.mxu0 0.0
    %1812 = vmatpush1.msra.mxu0 0.0
    %1813 = vmatprep.subr.mxu0 0.0
    %1814 = vmatpush1.msra.mxu0 0.0
    %1815 = vmatprep.subr.mxu0 0.0
    %1816 = vmatpush1.msra.mxu0 0.0
    %1817 = vmatprep.subr.mxu0 0.0
    %1818 = vmatpush1.msra.mxu0 0.0
    %1819 = vmatprep.subr.mxu0 0.0
    %1820 = vmatpush1.msra.mxu0 %v1784
    %1821 = vmatprep.subr.mxu0 0.0
    %1822 = vmatpush2.msra.mxu0 0.0
    %1823 = vmatprep.subr.mxu0 0.0
    %1824 = vmatpush2.msra.mxu0 0.0
    %1825 = vmatprep.subr.mxu0 0.0
    %1826 = vmatpush2.msra.mxu0 0.0
    %1827 = vmatprep.subr.mxu0 0.0
    %1828 = vmatpush2.msra.mxu0 0.0
    %1829 = vmatprep.subr.mxu0 0.0
    %1830 = vmatpush2.msra.mxu0 0.0
    %1831 = vmatprep.subr.mxu0 0.0
    %1832 = vmatpush2.msra.mxu0 0.0
    %1833 = vmatprep.subr.mxu0 0.0
    %1834 = vmatpush2.msra.mxu0 0.0
    %1835 = vmatprep.subr.mxu0 0.0
    %1836 = vmatpush2.msra.mxu0 0.0
    %1837 = vmatprep.subr.mxu0 0.0
    %1838 = vmatpush2.msra.mxu0 0.0
    %1839 = vmatprep.subr.mxu0 0.0
    %1840 = vmatpush2.msra.mxu0 0.0
    %1841 = vmatprep.subr.mxu0 0.0
    %1842 = vmatpush2.msra.mxu0 0.0
    %1843 = vmatprep.subr.mxu0 0.0
    %1844 = vmatpush2.msra.mxu0 0.0
    %1845 = vmatprep.subr.mxu0 0.0
    %1846 = vmatpush2.msra.mxu0 0.0
    %1847 = vmatprep.subr.mxu0 0.0
    %1848 = vmatpush2.msra.mxu0 0.0
    %1849 = vmatprep.subr.mxu0 0.0
    %1850 = vmatpush2.msra.mxu0 0.0
    %1851 = vmatprep.subr.mxu0 0.0
    %1852 = vmatpush2.msra.mxu0 0.0
    %1853 = vmatprep.mubr.f32.mxu0 0.0
    %1854 = vmatmul.mubr.f32.gmra.mxu0 %v1787
    %v1855 = vpop.f32.mrf.mxu0
    %v1856 = vadd.f32 0.0, %v1855
    %v1857 = vpop.f32.mrf.mxu0
    %1858 = vdwg.mxu0
    %1859 = vrot.lane.b32.xlu0 %v1686, 112
    %v1860 = vpop.permute.xlu0 %1859
    %1861 = vrot.lane.b32.xlu0 %v1686, 80
    %v1862 = vpop.permute.xlu0 %1861
    %v1863 = vsel %vm311, %v1860, 0
    %v1865 = vsel %vm311, %v1862, 0
    %1867 = vmatprep.subr.mxu0 0.0
    %1868 = vmatpush1.xpose.msra.mxu0 0.0
    %1869 = vmatprep.subr.mxu0 0.0
    %1870 = vmatpush1.xpose.msra.mxu0 0.0
    %1871 = vmatprep.subr.mxu0 0.0
    %1872 = vmatpush1.xpose.msra.mxu0 0.0
    %1873 = vmatprep.subr.mxu0 0.0
    %1874 = vmatpush1.xpose.msra.mxu0 0.0
    %1875 = vmatprep.subr.mxu0 0.0
    %1876 = vmatpush1.xpose.msra.mxu0 0.0
    %1877 = vmatprep.subr.mxu0 0.0
    %1878 = vmatpush1.xpose.msra.mxu0 0.0
    %1879 = vmatprep.subr.mxu0 0.0
    %1880 = vmatpush1.xpose.msra.mxu0 0.0
    %1881 = vmatprep.subr.mxu0 0.0
    %1882 = vmatpush1.xpose.msra.mxu0 0.0
    %1883 = vmatprep.subr.mxu0 0.0
    %1884 = vmatpush1.xpose.msra.mxu0 0.0
    %1885 = vmatprep.subr.mxu0 0.0
    %1886 = vmatpush1.xpose.msra.mxu0 0.0
    %1887 = vmatprep.subr.mxu0 0.0
    %1888 = vmatpush1.xpose.msra.mxu0 0.0
    %1889 = vmatprep.subr.mxu0 0.0
    %1890 = vmatpush1.xpose.msra.mxu0 0.0
    %1891 = vmatprep.subr.mxu0 0.0
    %1892 = vmatpush1.xpose.msra.mxu0 0.0
    %1893 = vmatprep.subr.mxu0 0.0
    %1894 = vmatpush1.xpose.msra.mxu0 0.0
    %1895 = vmatprep.subr.mxu0 0.0
    %1896 = vmatpush1.xpose.msra.mxu0 0.0
    %1897 = vmatprep.subr.mxu0 0.0
    %1898 = vmatpush1.xpose.msra.mxu0 %v1865
    %1899 = vmatprep.subr.mxu0 0.0
    %1900 = vmatpush2.xpose.msra.mxu0 0.0
    %1901 = vmatprep.subr.mxu0 0.0
    %1902 = vmatpush2.xpose.msra.mxu0 0.0
    %1903 = vmatprep.subr.mxu0 0.0
    %1904 = vmatpush2.xpose.msra.mxu0 0.0
    %1905 = vmatprep.subr.mxu0 0.0
    %1906 = vmatpush2.xpose.msra.mxu0 0.0
    %1907 = vmatprep.subr.mxu0 0.0
    %1908 = vmatpush2.xpose.msra.mxu0 0.0
    %1909 = vmatprep.subr.mxu0 0.0
    %1910 = vmatpush2.xpose.msra.mxu0 0.0
    %1911 = vmatprep.subr.mxu0 0.0
    %1912 = vmatpush2.xpose.msra.mxu0 0.0
    %1913 = vmatprep.subr.mxu0 0.0
    %1914 = vmatpush2.xpose.msra.mxu0 0.0
    %1915 = vmatprep.subr.mxu0 0.0
    %1916 = vmatpush2.xpose.msra.mxu0 0.0
    %1917 = vmatprep.subr.mxu0 0.0
    %1918 = vmatpush2.xpose.msra.mxu0 0.0
    %1919 = vmatprep.subr.mxu0 0.0
    %1920 = vmatpush2.xpose.msra.mxu0 0.0
    %1921 = vmatprep.subr.mxu0 0.0
    %1922 = vmatpush2.xpose.msra.mxu0 0.0
    %1923 = vmatprep.subr.mxu0 0.0
    %1924 = vmatpush2.xpose.msra.mxu0 0.0
    %1925 = vmatprep.subr.mxu0 0.0
    %1926 = vmatpush2.xpose.msra.mxu0 0.0
    %1927 = vmatprep.subr.mxu0 0.0
    %1928 = vmatpush2.xpose.msra.mxu0 0.0
    %1929 = vmatprep.subr.mxu0 0.0
    %1930 = vmatpush2.xpose.msra.mxu0 0.0
    %1931 = vmatprep.mubr.f32.mxu0 0.0
    %1932 = vmatmul.mubr.f32.gmra.mxu0 %v1863
    %v1933 = vpop.f32.mrf.mxu0
    %v1934 = vadd.f32 0.0, %v1933
    %v1935 = vpop.f32.mrf.mxu0
    %1936 = vdwg.mxu0
    %v1937 = vmul.f32 %v1934, 0.25
    %v1938 = vsel %vm207, %v1937, -inf
    %1939 = vmax.xlane.f32.xlu0 %v1938
    %v1940 = vpop.xlane.xlu0 %1939
    %v1941 = vsub.f32 %v1937, %v1940
    %v1942 = vmul.f32 %v1941, 1.442695
    %v1943 = vpow.pop %v1942
    %v1944 = vsel %vm207, %v1943, 0.0
    %1945 = vadd.xlane.f32.xlu0 %v1944
    %v1946 = vpop.xlane.xlu0 %1945
    %v1947 = vrcp.pop %v1946
    %v1948 = vmul.f32 %v1943, %v1947
    %1949 = vrot.lane.b32.xlu0 %v1686, 48
    %v1950 = vpop.permute.xlu0 %1949
    %v1953 = vsel %vm207, %v1948, 0
    %1955 = vmatprep.subr.mxu0 0.0
    %1956 = vmatpush1.msra.mxu0 0.0
    %1957 = vmatprep.subr.mxu0 0.0
    %1958 = vmatpush1.msra.mxu0 0.0
    %1959 = vmatprep.subr.mxu0 0.0
    %1960 = vmatpush1.msra.mxu0 0.0
    %1961 = vmatprep.subr.mxu0 0.0
    %1962 = vmatpush1.msra.mxu0 0.0
    %1963 = vmatprep.subr.mxu0 0.0
    %1964 = vmatpush1.msra.mxu0 0.0
    %1965 = vmatprep.subr.mxu0 0.0
    %1966 = vmatpush1.msra.mxu0 0.0
    %1967 = vmatprep.subr.mxu0 0.0
    %1968 = vmatpush1.msra.mxu0 0.0
    %1969 = vmatprep.subr.mxu0 0.0
    %1970 = vmatpush1.msra.mxu0 0.0
    %1971 = vmatprep.subr.mxu0 0.0
    %1972 = vmatpush1.msra.mxu0 0.0
    %1973 = vmatprep.subr.mxu0 0.0
    %1974 = vmatpush1.msra.mxu0 0.0
    %1975 = vmatprep.subr.mxu0 0.0
    %1976 = vmatpush1.msra.mxu0 0.0
    %1977 = vmatprep.subr.mxu0 0.0
    %1978 = vmatpush1.msra.mxu0 0.0
    %1979 = vmatprep.subr.mxu0 0.0
    %1980 = vmatpush1.msra.mxu0 0.0
    %1981 = vmatprep.subr.mxu0 0.0
    %1982 = vmatpush1.msra.mxu0 0.0
    %1983 = vmatprep.subr.mxu0 0.0
    %1984 = vmatpush1.msra.mxu0 0.0
    %1985 = vmatprep.subr.mxu0 0.0
    %1986 = vmatpush1.msra.mxu0 %v1950
    %1987 = vmatprep.subr.mxu0 0.0
    %1988 = vmatpush2.msra.mxu0 0.0
    %1989 = vmatprep.subr.mxu0 0.0
    %1990 = vmatpush2.msra.mxu0 0.0
    %1991 = vmatprep.subr.mxu0 0.0
    %1992 = vmatpush2.msra.mxu0 0.0
    %1993 = vmatprep.subr.mxu0 0.0
    %1994 = vmatpush2.msra.mxu0 0.0
    %1995 = vmatprep.subr.mxu0 0.0
    %1996 = vmatpush2.msra.mxu0 0.0
    %1997 = vmatprep.subr.mxu0 0.0
    %1998 = vmatpush2.msra.mxu0 0.0
    %1999 = vmatprep.subr.mxu0 0.0
    %2000 = vmatpush2.msra.mxu0 0.0
    %2001 = vmatprep.subr.mxu0 0.0
    %2002 = vmatpush2.msra.mxu0 0.0
    %2003 = vmatprep.subr.mxu0 0.0
    %2004 = vmatpush2.msra.mxu0 0.0
    %2005 = vmatprep.subr.mxu0 0.0
    %2006 = vmatpush2.msra.mxu0 0.0
    %2007 = vmatprep.subr.mxu0 0.0
    %2008 = vmatpush2.msra.mxu0 0.0
    %2009 = vmatprep.subr.mxu0 0.0
    %2010 = vmatpush2.msra.mxu0 0.0
    %2011 = vmatprep.subr.mxu0 0.0
    %2012 = vmatpush2.msra.mxu0 0.0
    %2013 = vmatprep.subr.mxu0 0.0
    %2014 = vmatpush2.msra.mxu0 0.0
    %2015 = vmatprep.subr.mxu0 0.0
    %2016 = vmatpush2.msra.mxu0 0.0
    %2017 = vmatprep.subr.mxu0 0.0
    %2018 = vmatpush2.msra.mxu0 0.0
    %2019 = vmatprep.mubr.f32.mxu0 0.0
    %2020 = vmatmul.mubr.f32.gmra.mxu0 %v1953
    %v2021 = vpop.f32.mrf.mxu0
    %v2022 = vadd.f32 0.0, %v2021
    %v2023 = vpop.f32.mrf.mxu0
    %2024 = vdwg.mxu0
    %2026 = vrot.lane.b32.xlu0 %v2022, 16
    %v2027 = vpop.permute.xlu0 %2026
    %v2029 = vsel %vm311, %v1856, %v2027
    %2031 = vrot.lane.b32.xlu0 %v1691, 96
    %v2032 = vpop.permute.xlu0 %2031
    %v2033 = vsel %vm311, %v1691, 0
    %v2035 = vsel %vm311, %v2032, 0
    %2037 = vmatprep.subr.mxu0 0.0
    %2038 = vmatpush1.xpose.msra.mxu0 0.0
    %2039 = vmatprep.subr.mxu0 0.0
    %2040 = vmatpush1.xpose.msra.mxu0 0.0
    %2041 = vmatprep.subr.mxu0 0.0
    %2042 = vmatpush1.xpose.msra.mxu0 0.0
    %2043 = vmatprep.subr.mxu0 0.0
    %2044 = vmatpush1.xpose.msra.mxu0 0.0
    %2045 = vmatprep.subr.mxu0 0.0
    %2046 = vmatpush1.xpose.msra.mxu0 0.0
    %2047 = vmatprep.subr.mxu0 0.0
    %2048 = vmatpush1.xpose.msra.mxu0 0.0
    %2049 = vmatprep.subr.mxu0 0.0
    %2050 = vmatpush1.xpose.msra.mxu0 0.0
    %2051 = vmatprep.subr.mxu0 0.0
    %2052 = vmatpush1.xpose.msra.mxu0 0.0
    %2053 = vmatprep.subr.mxu0 0.0
    %2054 = vmatpush1.xpose.msra.mxu0 0.0
    %2055 = vmatprep.subr.mxu0 0.0
    %2056 = vmatpush1.xpose.msra.mxu0 0.0
    %2057 = vmatprep.subr.mxu0 0.0
    %2058 = vmatpush1.xpose.msra.mxu0 0.0
    %2059 = vmatprep.subr.mxu0 0.0
    %2060 = vmatpush1.xpose.msra.mxu0 0.0
    %2061 = vmatprep.subr.mxu0 0.0
    %2062 = vmatpush1.xpose.msra.mxu0 0.0
    %2063 = vmatprep.subr.mxu0 0.0
    %2064 = vmatpush1.xpose.msra.mxu0 0.0
    %2065 = vmatprep.subr.mxu0 0.0
    %2066 = vmatpush1.xpose.msra.mxu0 0.0
    %2067 = vmatprep.subr.mxu0 0.0
    %2068 = vmatpush1.xpose.msra.mxu0 %v2035
    %2069 = vmatprep.subr.mxu0 0.0
    %2070 = vmatpush2.xpose.msra.mxu0 0.0
    %2071 = vmatprep.subr.mxu0 0.0
    %2072 = vmatpush2.xpose.msra.mxu0 0.0
    %2073 = vmatprep.subr.mxu0 0.0
    %2074 = vmatpush2.xpose.msra.mxu0 0.0
    %2075 = vmatprep.subr.mxu0 0.0
    %2076 = vmatpush2.xpose.msra.mxu0 0.0
    %2077 = vmatprep.subr.mxu0 0.0
    %2078 = vmatpush2.xpose.msra.mxu0 0.0
    %2079 = vmatprep.subr.mxu0 0.0
    %2080 = vmatpush2.xpose.msra.mxu0 0.0
    %2081 = vmatprep.subr.mxu0 0.0
    %2082 = vmatpush2.xpose.msra.mxu0 0.0
    %2083 = vmatprep.subr.mxu0 0.0
    %2084 = vmatpush2.xpose.msra.mxu0 0.0
    %2085 = vmatprep.subr.mxu0 0.0
    %2086 = vmatpush2.xpose.msra.mxu0 0.0
    %2087 = vmatprep.subr.mxu0 0.0
    %2088 = vmatpush2.xpose.msra.mxu0 0.0
    %2089 = vmatprep.subr.mxu0 0.0
    %2090 = vmatpush2.xpose.msra.mxu0 0.0
    %2091 = vmatprep.subr.mxu0 0.0
    %2092 = vmatpush2.xpose.msra.mxu0 0.0
    %2093 = vmatprep.subr.mxu0 0.0
    %2094 = vmatpush2.xpose.msra.mxu0 0.0
    %2095 = vmatprep.subr.mxu0 0.0
    %2096 = vmatpush2.xpose.msra.mxu0 0.0
    %2097 = vmatprep.subr.mxu0 0.0
    %2098 = vmatpush2.xpose.msra.mxu0 0.0
    %2099 = vmatprep.subr.mxu0 0.0
    %2100 = vmatpush2.xpose.msra.mxu0 0.0
    %2101 = vmatprep.mubr.f32.mxu0 0.0
    %2102 = vmatmul.mubr.f32.gmra.mxu0 %v2033
    %v2103 = vpop.f32.mrf.mxu0
    %v2104 = vadd.f32 0.0, %v2103
    %v2105 = vpop.f32.mrf.mxu0
    %2106 = vdwg.mxu0
    %v2107 = vmul.f32 %v2104, 0.25
    %v2108 = vsel %vm207, %v2107, -inf
    %2109 = vmax.xlane.f32.xlu0 %v2108
    %v2110 = vpop.xlane.xlu0 %2109
    %v2111 = vsub.f32 %v2107, %v2110
    %v2112 = vmul.f32 %v2111, 1.442695
    %v2113 = vpow.pop %v2112
    %v2114 = vsel %vm207, %v2113, 0.0
    %2115 = vadd.xlane.f32.xlu0 %v2114
    %v2116 = vpop.xlane.xlu0 %2115
    %v2117 = vrcp.pop %v2116
    %v2118 = vmul.f32 %v2113, %v2117
    %2119 = vrot.lane.b32.xlu0 %v1691, 64
    %v2120 = vpop.permute.xlu0 %2119
    %v2123 = vsel %vm207, %v2118, 0
    %2125 = vmatprep.subr.mxu0 0.0
    %2126 = vmatpush1.msra.mxu0 0.0
    %2127 = vmatprep.subr.mxu0 0.0
    %2128 = vmatpush1.msra.mxu0 0.0
    %2129 = vmatprep.subr.mxu0 0.0
    %2130 = vmatpush1.msra.mxu0 0.0
    %2131 = vmatprep.subr.mxu0 0.0
    %2132 = vmatpush1.msra.mxu0 0.0
    %2133 = vmatprep.subr.mxu0 0.0
    %2134 = vmatpush1.msra.mxu0 0.0
    %2135 = vmatprep.subr.mxu0 0.0
    %2136 = vmatpush1.msra.mxu0 0.0
    %2137 = vmatprep.subr.mxu0 0.0
    %2138 = vmatpush1.msra.mxu0 0.0
    %2139 = vmatprep.subr.mxu0 0.0
    %2140 = vmatpush1.msra.mxu0 0.0
    %2141 = vmatprep.subr.mxu0 0.0
    %2142 = vmatpush1.msra.mxu0 0.0
    %2143 = vmatprep.subr.mxu0 0.0
    %2144 = vmatpush1.msra.mxu0 0.0
    %2145 = vmatprep.subr.mxu0 0.0
    %2146 = vmatpush1.msra.mxu0 0.0
    %2147 = vmatprep.subr.mxu0 0.0
    %2148 = vmatpush1.msra.mxu0 0.0
    %2149 = vmatprep.subr.mxu0 0.0
    %2150 = vmatpush1.msra.mxu0 0.0
    %2151 = vmatprep.subr.mxu0 0.0
    %2152 = vmatpush1.msra.mxu0 0.0
    %2153 = vmatprep.subr.mxu0 0.0
    %2154 = vmatpush1.msra.mxu0 0.0
    %2155 = vmatprep.subr.mxu0 0.0
    %2156 = vmatpush1.msra.mxu0 %v2120
    %2157 = vmatprep.subr.mxu0 0.0
    %2158 = vmatpush2.msra.mxu0 0.0
    %2159 = vmatprep.subr.mxu0 0.0
    %2160 = vmatpush2.msra.mxu0 0.0
    %2161 = vmatprep.subr.mxu0 0.0
    %2162 = vmatpush2.msra.mxu0 0.0
    %2163 = vmatprep.subr.mxu0 0.0
    %2164 = vmatpush2.msra.mxu0 0.0
    %2165 = vmatprep.subr.mxu0 0.0
    %2166 = vmatpush2.msra.mxu0 0.0
    %2167 = vmatprep.subr.mxu0 0.0
    %2168 = vmatpush2.msra.mxu0 0.0
    %2169 = vmatprep.subr.mxu0 0.0
    %2170 = vmatpush2.msra.mxu0 0.0
    %2171 = vmatprep.subr.mxu0 0.0
    %2172 = vmatpush2.msra.mxu0 0.0
    %2173 = vmatprep.subr.mxu0 0.0
    %2174 = vmatpush2.msra.mxu0 0.0
    %2175 = vmatprep.subr.mxu0 0.0
    %2176 = vmatpush2.msra.mxu0 0.0
    %2177 = vmatprep.subr.mxu0 0.0
    %2178 = vmatpush2.msra.mxu0 0.0
    %2179 = vmatprep.subr.mxu0 0.0
    %2180 = vmatpush2.msra.mxu0 0.0
    %2181 = vmatprep.subr.mxu0 0.0
    %2182 = vmatpush2.msra.mxu0 0.0
    %2183 = vmatprep.subr.mxu0 0.0
    %2184 = vmatpush2.msra.mxu0 0.0
    %2185 = vmatprep.subr.mxu0 0.0
    %2186 = vmatpush2.msra.mxu0 0.0
    %2187 = vmatprep.subr.mxu0 0.0
    %2188 = vmatpush2.msra.mxu0 0.0
    %2189 = vmatprep.mubr.f32.mxu0 0.0
    %2190 = vmatmul.mubr.f32.gmra.mxu0 %v2123
    %v2191 = vpop.f32.mrf.mxu0
    %v2192 = vadd.f32 0.0, %v2191
    %v2193 = vpop.f32.mrf.mxu0
    %2194 = vdwg.mxu0
    %2195 = vrot.lane.b32.xlu0 %v1691, 112
    %v2196 = vpop.permute.xlu0 %2195
    %2197 = vrot.lane.b32.xlu0 %v1691, 80
    %v2198 = vpop.permute.xlu0 %2197
    %v2199 = vsel %vm311, %v2196, 0
    %v2201 = vsel %vm311, %v2198, 0
    %2203 = vmatprep.subr.mxu0 0.0
    %2204 = vmatpush1.xpose.msra.mxu0 0.0
    %2205 = vmatprep.subr.mxu0 0.0
    %2206 = vmatpush1.xpose.msra.mxu0 0.0
    %2207 = vmatprep.subr.mxu0 0.0
    %2208 = vmatpush1.xpose.msra.mxu0 0.0
    %2209 = vmatprep.subr.mxu0 0.0
    %2210 = vmatpush1.xpose.msra.mxu0 0.0
    %2211 = vmatprep.subr.mxu0 0.0
    %2212 = vmatpush1.xpose.msra.mxu0 0.0
    %2213 = vmatprep.subr.mxu0 0.0
    %2214 = vmatpush1.xpose.msra.mxu0 0.0
    %2215 = vmatprep.subr.mxu0 0.0
    %2216 = vmatpush1.xpose.msra.mxu0 0.0
    %2217 = vmatprep.subr.mxu0 0.0
    %2218 = vmatpush1.xpose.msra.mxu0 0.0
    %2219 = vmatprep.subr.mxu0 0.0
    %2220 = vmatpush1.xpose.msra.mxu0 0.0
    %2221 = vmatprep.subr.mxu0 0.0
    %2222 = vmatpush1.xpose.msra.mxu0 0.0
    %2223 = vmatprep.subr.mxu0 0.0
    %2224 = vmatpush1.xpose.msra.mxu0 0.0
    %2225 = vmatprep.subr.mxu0 0.0
    %2226 = vmatpush1.xpose.msra.mxu0 0.0
    %2227 = vmatprep.subr.mxu0 0.0
    %2228 = vmatpush1.xpose.msra.mxu0 0.0
    %2229 = vmatprep.subr.mxu0 0.0
    %2230 = vmatpush1.xpose.msra.mxu0 0.0
    %2231 = vmatprep.subr.mxu0 0.0
    %2232 = vmatpush1.xpose.msra.mxu0 0.0
    %2233 = vmatprep.subr.mxu0 0.0
    %2234 = vmatpush1.xpose.msra.mxu0 %v2201
    %2235 = vmatprep.subr.mxu0 0.0
    %2236 = vmatpush2.xpose.msra.mxu0 0.0
    %2237 = vmatprep.subr.mxu0 0.0
    %2238 = vmatpush2.xpose.msra.mxu0 0.0
    %2239 = vmatprep.subr.mxu0 0.0
    %2240 = vmatpush2.xpose.msra.mxu0 0.0
    %2241 = vmatprep.subr.mxu0 0.0
    %2242 = vmatpush2.xpose.msra.mxu0 0.0
    %2243 = vmatprep.subr.mxu0 0.0
    %2244 = vmatpush2.xpose.msra.mxu0 0.0
    %2245 = vmatprep.subr.mxu0 0.0
    %2246 = vmatpush2.xpose.msra.mxu0 0.0
    %2247 = vmatprep.subr.mxu0 0.0
    %2248 = vmatpush2.xpose.msra.mxu0 0.0
    %2249 = vmatprep.subr.mxu0 0.0
    %2250 = vmatpush2.xpose.msra.mxu0 0.0
    %2251 = vmatprep.subr.mxu0 0.0
    %2252 = vmatpush2.xpose.msra.mxu0 0.0
    %2253 = vmatprep.subr.mxu0 0.0
    %2254 = vmatpush2.xpose.msra.mxu0 0.0
    %2255 = vmatprep.subr.mxu0 0.0
    %2256 = vmatpush2.xpose.msra.mxu0 0.0
    %2257 = vmatprep.subr.mxu0 0.0
    %2258 = vmatpush2.xpose.msra.mxu0 0.0
    %2259 = vmatprep.subr.mxu0 0.0
    %2260 = vmatpush2.xpose.msra.mxu0 0.0
    %2261 = vmatprep.subr.mxu0 0.0
    %2262 = vmatpush2.xpose.msra.mxu0 0.0
    %2263 = vmatprep.subr.mxu0 0.0
    %2264 = vmatpush2.xpose.msra.mxu0 0.0
    %2265 = vmatprep.subr.mxu0 0.0
    %2266 = vmatpush2.xpose.msra.mxu0 0.0
    %2267 = vmatprep.mubr.f32.mxu0 0.0
    %2268 = vmatmul.mubr.f32.gmra.mxu0 %v2199
    %v2269 = vpop.f32.mrf.mxu0
    %v2270 = vadd.f32 0.0, %v2269
    %v2271 = vpop.f32.mrf.mxu0
    %2272 = vdwg.mxu0
    %v2273 = vmul.f32 %v2270, 0.25
    %v2274 = vsel %vm207, %v2273, -inf
    %2275 = vmax.xlane.f32.xlu0 %v2274
    %v2276 = vpop.xlane.xlu0 %2275
    %v2277 = vsub.f32 %v2273, %v2276
    %v2278 = vmul.f32 %v2277, 1.442695
    %v2279 = vpow.pop %v2278
    %v2280 = vsel %vm207, %v2279, 0.0
    %2281 = vadd.xlane.f32.xlu0 %v2280
    %v2282 = vpop.xlane.xlu0 %2281
    %v2283 = vrcp.pop %v2282
    %v2284 = vmul.f32 %v2279, %v2283
    %2285 = vrot.lane.b32.xlu0 %v1691, 48
    %v2286 = vpop.permute.xlu0 %2285
    %v2289 = vsel %vm207, %v2284, 0
    %2291 = vmatprep.subr.mxu0 0.0
    %2292 = vmatpush1.msra.mxu0 0.0
    %2293 = vmatprep.subr.mxu0 0.0
    %2294 = vmatpush1.msra.mxu0 0.0
    %2295 = vmatprep.subr.mxu0 0.0
    %2296 = vmatpush1.msra.mxu0 0.0
    %2297 = vmatprep.subr.mxu0 0.0
    %2298 = vmatpush1.msra.mxu0 0.0
    %2299 = vmatprep.subr.mxu0 0.0
    %2300 = vmatpush1.msra.mxu0 0.0
    %2301 = vmatprep.subr.mxu0 0.0
    %2302 = vmatpush1.msra.mxu0 0.0
    %2303 = vmatprep.subr.mxu0 0.0
    %2304 = vmatpush1.msra.mxu0 0.0
    %2305 = vmatprep.subr.mxu0 0.0
    %2306 = vmatpush1.msra.mxu0 0.0
    %2307 = vmatprep.subr.mxu0 0.0
    %2308 = vmatpush1.msra.mxu0 0.0
    %2309 = vmatprep.subr.mxu0 0.0
    %2310 = vmatpush1.msra.mxu0 0.0
    %2311 = vmatprep.subr.mxu0 0.0
    %2312 = vmatpush1.msra.mxu0 0.0
    %2313 = vmatprep.subr.mxu0 0.0
    %2314 = vmatpush1.msra.mxu0 0.0
    %2315 = vmatprep.subr.mxu0 0.0
    %2316 = vmatpush1.msra.mxu0 0.0
    %2317 = vmatprep.subr.mxu0 0.0
    %2318 = vmatpush1.msra.mxu0 0.0
    %2319 = vmatprep.subr.mxu0 0.0
    %2320 = vmatpush1.msra.mxu0 0.0
    %2321 = vmatprep.subr.mxu0 0.0
    %2322 = vmatpush1.msra.mxu0 %v2286
    %2323 = vmatprep.subr.mxu0 0.0
    %2324 = vmatpush2.msra.mxu0 0.0
    %2325 = vmatprep.subr.mxu0 0.0
    %2326 = vmatpush2.msra.mxu0 0.0
    %2327 = vmatprep.subr.mxu0 0.0
    %2328 = vmatpush2.msra.mxu0 0.0
    %2329 = vmatprep.subr.mxu0 0.0
    %2330 = vmatpush2.msra.mxu0 0.0
    %2331 = vmatprep.subr.mxu0 0.0
    %2332 = vmatpush2.msra.mxu0 0.0
    %2333 = vmatprep.subr.mxu0 0.0
    %2334 = vmatpush2.msra.mxu0 0.0
    %2335 = vmatprep.subr.mxu0 0.0
    %2336 = vmatpush2.msra.mxu0 0.0
    %2337 = vmatprep.subr.mxu0 0.0
    %2338 = vmatpush2.msra.mxu0 0.0
    %2339 = vmatprep.subr.mxu0 0.0
    %2340 = vmatpush2.msra.mxu0 0.0
    %2341 = vmatprep.subr.mxu0 0.0
    %2342 = vmatpush2.msra.mxu0 0.0
    %2343 = vmatprep.subr.mxu0 0.0
    %2344 = vmatpush2.msra.mxu0 0.0
    %2345 = vmatprep.subr.mxu0 0.0
    %2346 = vmatpush2.msra.mxu0 0.0
    %2347 = vmatprep.subr.mxu0 0.0
    %2348 = vmatpush2.msra.mxu0 0.0
    %2349 = vmatprep.subr.mxu0 0.0
    %2350 = vmatpush2.msra.mxu0 0.0
    %2351 = vmatprep.subr.mxu0 0.0
    %2352 = vmatpush2.msra.mxu0 0.0
    %2353 = vmatprep.subr.mxu0 0.0
    %2354 = vmatpush2.msra.mxu0 0.0
    %2355 = vmatprep.mubr.f32.mxu0 0.0
    %2356 = vmatmul.mubr.f32.gmra.mxu0 %v2289
    %v2357 = vpop.f32.mrf.mxu0
    %v2358 = vadd.f32 0.0, %v2357
    %v2359 = vpop.f32.mrf.mxu0
    %2360 = vdwg.mxu0
    %2362 = vrot.lane.b32.xlu0 %v2358, 16
    %v2363 = vpop.permute.xlu0 %2362
    %v2365 = vsel %vm311, %v2192, %v2363
    %s2366 = scalar_lea.vmem %s4, 32
    %v2367 = vld [vmem:[%s2366] sm:$0xff]
    %v2368 = vld [vmem:[%s2366 + $0x8] sm:$0xff]
    %v2369 = vld [vmem:[%s2366 + $0x10] sm:$0xff]
    %v2370 = vld [vmem:[%s2366 + $0x18] sm:$0xff]
    %v2371 = vlaneseq
    %v2372 = vshrl.u32 %v2371, 7
    %v2373 = vsub.s32 1, %v2372
    %v2374 = vrot.slane %v90, %v2373
    %v2376 = vsel %vm403, %v2029, 0
    %v2379 = vsel %vm403, %v2365, 0
    %2381 = vmatprep.subr.mxu0 0.0
    %2382 = vmatpush1.msra.mxu0 0.0
    %2383 = vmatprep.subr.mxu0 0.0
    %2384 = vmatpush1.msra.mxu0 0.0
    %2385 = vmatprep.subr.mxu0 0.0
    %2386 = vmatpush1.msra.mxu0 0.0
    %2387 = vmatprep.subr.mxu0 0.0
    %2388 = vmatpush1.msra.mxu0 0.0
    %2389 = vmatprep.subr.mxu0 0.0
    %2390 = vmatpush1.msra.mxu0 0.0
    %2391 = vmatprep.subr.mxu0 0.0
    %2392 = vmatpush1.msra.mxu0 0.0
    %2393 = vmatprep.subr.mxu0 0.0
    %2394 = vmatpush1.msra.mxu0 0.0
    %2395 = vmatprep.subr.mxu0 0.0
    %2396 = vmatpush1.msra.mxu0 0.0
    %2397 = vmatprep.subr.mxu0 0.0
    %2398 = vmatpush1.msra.mxu0 0.0
    %2399 = vmatprep.subr.mxu0 0.0
    %2400 = vmatpush1.msra.mxu0 0.0
    %2401 = vmatprep.subr.mxu0 0.0
    %2402 = vmatpush1.msra.mxu0 0.0
    %2403 = vmatprep.subr.mxu0 0.0
    %2404 = vmatpush1.msra.mxu0 0.0
    %2405 = vmatprep.subr.mxu0 0.0
    %2406 = vmatpush1.msra.mxu0 %v2370
    %2407 = vmatprep.subr.mxu0 0.0
    %2408 = vmatpush1.msra.mxu0 %v2369
    %2409 = vmatprep.subr.mxu0 0.0
    %2410 = vmatpush1.msra.mxu0 %v2368
    %2411 = vmatprep.subr.mxu0 0.0
    %2412 = vmatpush1.msra.mxu0 %v2367
    %2413 = vmatprep.subr.mxu0 0.0
    %2414 = vmatpush2.msra.mxu0 0.0
    %2415 = vmatprep.subr.mxu0 0.0
    %2416 = vmatpush2.msra.mxu0 0.0
    %2417 = vmatprep.subr.mxu0 0.0
    %2418 = vmatpush2.msra.mxu0 0.0
    %2419 = vmatprep.subr.mxu0 0.0
    %2420 = vmatpush2.msra.mxu0 0.0
    %2421 = vmatprep.subr.mxu0 0.0
    %2422 = vmatpush2.msra.mxu0 0.0
    %2423 = vmatprep.subr.mxu0 0.0
    %2424 = vmatpush2.msra.mxu0 0.0
    %2425 = vmatprep.subr.mxu0 0.0
    %2426 = vmatpush2.msra.mxu0 0.0
    %2427 = vmatprep.subr.mxu0 0.0
    %2428 = vmatpush2.msra.mxu0 0.0
    %2429 = vmatprep.subr.mxu0 0.0
    %2430 = vmatpush2.msra.mxu0 0.0
    %2431 = vmatprep.subr.mxu0 0.0
    %2432 = vmatpush2.msra.mxu0 0.0
    %2433 = vmatprep.subr.mxu0 0.0
    %2434 = vmatpush2.msra.mxu0 0.0
    %2435 = vmatprep.subr.mxu0 0.0
    %2436 = vmatpush2.msra.mxu0 0.0
    %2437 = vmatprep.subr.mxu0 0.0
    %2438 = vmatpush2.msra.mxu0 0.0
    %2439 = vmatprep.subr.mxu0 0.0
    %2440 = vmatpush2.msra.mxu0 0.0
    %2441 = vmatprep.subr.mxu0 0.0
    %2442 = vmatpush2.msra.mxu0 0.0
    %2443 = vmatprep.subr.mxu0 0.0
    %2444 = vmatpush2.msra.mxu0 0.0
    %2445 = vmatprep.mubr.f32.mxu0 0.0
    %2446 = vmatmul.mubr.f32.gmra.mxu0 %v2376
    %v2447 = vpop.f32.mrf.mxu0
    %v2448 = vadd.f32 %v2374, %v2447
    %v2449 = vpop.f32.mrf.mxu0
    %2450 = vmatprep.mubr.f32.mxu0 0.0
    %2451 = vmatmul.mubr.f32.gmra.mxu0 %v2379
    %v2452 = vpop.f32.mrf.mxu0
    %v2453 = vadd.f32 %v2374, %v2452
    %v2454 = vpop.f32.mrf.mxu0
    %2455 = vdwg.mxu0
    %v2456 = vadd.f32 %v1602, %v2448
    %v2457 = vadd.f32 %v1603, %v2453
    %v2458 = vsel %vm403, %v2456, 0.0
    %2459 = vadd.xlane.f32.xlu0 %v2458
    %v2460 = vpop.xlane.xlu0 %2459
    %v2461 = vsel %vm403, %v2457, 0.0
    %2462 = vadd.xlane.f32.xlu0 %v2461
    %v2463 = vpop.xlane.xlu0 %2462
    %v2464 = vmul.f32 %v2460, %v1346
    %v2465 = vmul.f32 %v2463, %v1346
    %v2466 = vsub.f32 %v2456, %v2464
    %v2467 = vsub.f32 %v2457, %v2465
    %v2468 = vmul.f32 %v2466, %v2466
    %v2469 = vmul.f32 %v2467, %v2467
    %v2470 = vsel %vm403, %v2468, 0.0
    %2471 = vadd.xlane.f32.xlu0 %v2470
    %v2472 = vpop.xlane.xlu0 %2471
    %v2473 = vsel %vm403, %v2469, 0.0
    %2474 = vadd.xlane.f32.xlu0 %v2473
    %v2475 = vpop.xlane.xlu0 %2474
    %v2476 = vmul.f32 %v2472, %v1346
    %v2477 = vmul.f32 %v2475, %v1346
    %v2478 = vadd.f32 %v2476, 1e-05
    %v2479 = vadd.f32 %v2477, 1e-05
    %v2480 = vrsqrt.pop %v2478
    %v2481 = vrsqrt.pop %v2479
    %v2482 = vmul.f32 %v2466, %v2480
    %v2483 = vmul.f32 %v2467, %v2481
    %v2484 = vlaneseq
    %v2485 = vshrl.u32 %v2484, 7
    %v2486 = vsub.s32 4, %v2485
    %v2487 = vrot.slane %v90, %v2486
    %v2488 = vmul.f32 %v2482, %v2487
    %v2489 = vmul.f32 %v2483, %v2487
    %v2490 = vlaneseq
    %v2491 = vshrl.u32 %v2490, 7
    %v2492 = vsub.s32 5, %v2491
    %v2493 = vrot.slane %v90, %v2492
    %v2494 = vadd.f32 %v2488, %v2493
    %v2495 = vadd.f32 %v2489, %v2493
    %s2496 = scalar_lea.vmem %s5, 32
    %v2497 = vld [vmem:[%s2496] sm:$0xff]
    %v2498 = vld [vmem:[%s2496 + $0x8] sm:$0xff]
    %v2499 = vld [vmem:[%s2496 + $0x10] sm:$0xff]
    %v2500 = vld [vmem:[%s2496 + $0x18] sm:$0xff]
    %v2501 = vlaneseq
    %v2502 = vshrl.u32 %v2501, 7
    %v2503 = vsub.s32 2, %v2502
    %v2504 = vrot.slane %v90, %v2503
    %v2506 = vsel %vm403, %v2494, 0
    %v2509 = vsel %vm403, %v2495, 0
    %2511 = vmatprep.subr.mxu0 0.0
    %2512 = vmatpush1.msra.mxu0 0.0
    %2513 = vmatprep.subr.mxu0 0.0
    %2514 = vmatpush1.msra.mxu0 0.0
    %2515 = vmatprep.subr.mxu0 0.0
    %2516 = vmatpush1.msra.mxu0 0.0
    %2517 = vmatprep.subr.mxu0 0.0
    %2518 = vmatpush1.msra.mxu0 0.0
    %2519 = vmatprep.subr.mxu0 0.0
    %2520 = vmatpush1.msra.mxu0 0.0
    %2521 = vmatprep.subr.mxu0 0.0
    %2522 = vmatpush1.msra.mxu0 0.0
    %2523 = vmatprep.subr.mxu0 0.0
    %2524 = vmatpush1.msra.mxu0 0.0
    %2525 = vmatprep.subr.mxu0 0.0
    %2526 = vmatpush1.msra.mxu0 0.0
    %2527 = vmatprep.subr.mxu0 0.0
    %2528 = vmatpush1.msra.mxu0 0.0
    %2529 = vmatprep.subr.mxu0 0.0
    %2530 = vmatpush1.msra.mxu0 0.0
    %2531 = vmatprep.subr.mxu0 0.0
    %2532 = vmatpush1.msra.mxu0 0.0
    %2533 = vmatprep.subr.mxu0 0.0
    %2534 = vmatpush1.msra.mxu0 0.0
    %2535 = vmatprep.subr.mxu0 0.0
    %2536 = vmatpush1.msra.mxu0 %v2500
    %2537 = vmatprep.subr.mxu0 0.0
    %2538 = vmatpush1.msra.mxu0 %v2499
    %2539 = vmatprep.subr.mxu0 0.0
    %2540 = vmatpush1.msra.mxu0 %v2498
    %2541 = vmatprep.subr.mxu0 0.0
    %2542 = vmatpush1.msra.mxu0 %v2497
    %2543 = vmatprep.subr.mxu0 0.0
    %2544 = vmatpush2.msra.mxu0 0.0
    %2545 = vmatprep.subr.mxu0 0.0
    %2546 = vmatpush2.msra.mxu0 0.0
    %2547 = vmatprep.subr.mxu0 0.0
    %2548 = vmatpush2.msra.mxu0 0.0
    %2549 = vmatprep.subr.mxu0 0.0
    %2550 = vmatpush2.msra.mxu0 0.0
    %2551 = vmatprep.subr.mxu0 0.0
    %2552 = vmatpush2.msra.mxu0 0.0
    %2553 = vmatprep.subr.mxu0 0.0
    %2554 = vmatpush2.msra.mxu0 0.0
    %2555 = vmatprep.subr.mxu0 0.0
    %2556 = vmatpush2.msra.mxu0 0.0
    %2557 = vmatprep.subr.mxu0 0.0
    %2558 = vmatpush2.msra.mxu0 0.0
    %2559 = vmatprep.subr.mxu0 0.0
    %2560 = vmatpush2.msra.mxu0 0.0
    %2561 = vmatprep.subr.mxu0 0.0
    %2562 = vmatpush2.msra.mxu0 0.0
    %2563 = vmatprep.subr.mxu0 0.0
    %2564 = vmatpush2.msra.mxu0 0.0
    %2565 = vmatprep.subr.mxu0 0.0
    %2566 = vmatpush2.msra.mxu0 0.0
    %2567 = vmatprep.subr.mxu0 0.0
    %2568 = vmatpush2.msra.mxu0 0.0
    %2569 = vmatprep.subr.mxu0 0.0
    %2570 = vmatpush2.msra.mxu0 0.0
    %2571 = vmatprep.subr.mxu0 0.0
    %2572 = vmatpush2.msra.mxu0 0.0
    %2573 = vmatprep.subr.mxu0 0.0
    %2574 = vmatpush2.msra.mxu0 0.0
    %2575 = vmatprep.mubr.f32.mxu0 0.0
    %2576 = vmatmul.mubr.f32.gmra.mxu0 %v2506
    %v2577 = vpop.f32.mrf.mxu0
    %v2578 = vadd.f32 %v2504, %v2577
    %v2579 = vpop.f32.mrf.mxu0
    %2580 = vmatprep.mubr.f32.mxu0 0.0
    %2581 = vmatmul.mubr.f32.gmra.mxu0 %v2509
    %v2582 = vpop.f32.mrf.mxu0
    %v2583 = vadd.f32 %v2504, %v2582
    %v2584 = vpop.f32.mrf.mxu0
    %2585 = vdwg.mxu0
    %v2586 = vmax.f32 %v2578, 0.0
    %v2587 = vmax.f32 %v2583, 0.0
    %s2588 = scalar_lea.vmem %s6, 64
    %v2589 = vld [vmem:[%s2588] sm:$0xff]
    %v2590 = vld [vmem:[%s2588 + $0x8] sm:$0xff]
    %v2591 = vld [vmem:[%s2588 + $0x10] sm:$0xff]
    %v2592 = vld [vmem:[%s2588 + $0x18] sm:$0xff]
    %v2593 = vld [vmem:[%s2588 + $0x20] sm:$0xff]
    %v2594 = vld [vmem:[%s2588 + $0x28] sm:$0xff]
    %v2595 = vld [vmem:[%s2588 + $0x30] sm:$0xff]
    %v2596 = vld [vmem:[%s2588 + $0x38] sm:$0xff]
    %v2597 = vlaneseq
    %v2598 = vshrl.u32 %v2597, 7
    %v2599 = vsub.s32 3, %v2598
    %v2600 = vrot.slane %v90, %v2599
    %v2602 = vsel %vm1482, %v2586, 0
    %v2605 = vsel %vm1482, %v2587, 0
    %2607 = vmatprep.subr.mxu0 0.0
    %2608 = vmatpush1.msra.mxu0 0.0
    %2609 = vmatprep.subr.mxu0 0.0
    %2610 = vmatpush1.msra.mxu0 0.0
    %2611 = vmatprep.subr.mxu0 0.0
    %2612 = vmatpush1.msra.mxu0 0.0
    %2613 = vmatprep.subr.mxu0 0.0
    %2614 = vmatpush1.msra.mxu0 0.0
    %2615 = vmatprep.subr.mxu0 0.0
    %2616 = vmatpush1.msra.mxu0 0.0
    %2617 = vmatprep.subr.mxu0 0.0
    %2618 = vmatpush1.msra.mxu0 0.0
    %2619 = vmatprep.subr.mxu0 0.0
    %2620 = vmatpush1.msra.mxu0 0.0
    %2621 = vmatprep.subr.mxu0 0.0
    %2622 = vmatpush1.msra.mxu0 0.0
    %2623 = vmatprep.subr.mxu0 0.0
    %2624 = vmatpush1.msra.mxu0 %v2596
    %2625 = vmatprep.subr.mxu0 0.0
    %2626 = vmatpush1.msra.mxu0 %v2595
    %2627 = vmatprep.subr.mxu0 0.0
    %2628 = vmatpush1.msra.mxu0 %v2594
    %2629 = vmatprep.subr.mxu0 0.0
    %2630 = vmatpush1.msra.mxu0 %v2593
    %2631 = vmatprep.subr.mxu0 0.0
    %2632 = vmatpush1.msra.mxu0 %v2592
    %2633 = vmatprep.subr.mxu0 0.0
    %2634 = vmatpush1.msra.mxu0 %v2591
    %2635 = vmatprep.subr.mxu0 0.0
    %2636 = vmatpush1.msra.mxu0 %v2590
    %2637 = vmatprep.subr.mxu0 0.0
    %2638 = vmatpush1.msra.mxu0 %v2589
    %2639 = vmatprep.subr.mxu0 0.0
    %2640 = vmatpush2.msra.mxu0 0.0
    %2641 = vmatprep.subr.mxu0 0.0
    %2642 = vmatpush2.msra.mxu0 0.0
    %2643 = vmatprep.subr.mxu0 0.0
    %2644 = vmatpush2.msra.mxu0 0.0
    %2645 = vmatprep.subr.mxu0 0.0
    %2646 = vmatpush2.msra.mxu0 0.0
    %2647 = vmatprep.subr.mxu0 0.0
    %2648 = vmatpush2.msra.mxu0 0.0
    %2649 = vmatprep.subr.mxu0 0.0
    %2650 = vmatpush2.msra.mxu0 0.0
    %2651 = vmatprep.subr.mxu0 0.0
    %2652 = vmatpush2.msra.mxu0 0.0
    %2653 = vmatprep.subr.mxu0 0.0
    %2654 = vmatpush2.msra.mxu0 0.0
    %2655 = vmatprep.subr.mxu0 0.0
    %2656 = vmatpush2.msra.mxu0 0.0
    %2657 = vmatprep.subr.mxu0 0.0
    %2658 = vmatpush2.msra.mxu0 0.0
    %2659 = vmatprep.subr.mxu0 0.0
    %2660 = vmatpush2.msra.mxu0 0.0
    %2661 = vmatprep.subr.mxu0 0.0
    %2662 = vmatpush2.msra.mxu0 0.0
    %2663 = vmatprep.subr.mxu0 0.0
    %2664 = vmatpush2.msra.mxu0 0.0
    %2665 = vmatprep.subr.mxu0 0.0
    %2666 = vmatpush2.msra.mxu0 0.0
    %2667 = vmatprep.subr.mxu0 0.0
    %2668 = vmatpush2.msra.mxu0 0.0
    %2669 = vmatprep.subr.mxu0 0.0
    %2670 = vmatpush2.msra.mxu0 0.0
    %2671 = vmatprep.mubr.f32.mxu0 0.0
    %2672 = vmatmul.mubr.f32.gmra.mxu0 %v2602
    %v2673 = vpop.f32.mrf.mxu0
    %v2674 = vadd.f32 %v2600, %v2673
    %v2675 = vpop.f32.mrf.mxu0
    %2676 = vmatprep.mubr.f32.mxu0 0.0
    %2677 = vmatmul.mubr.f32.gmra.mxu0 %v2605
    %v2678 = vpop.f32.mrf.mxu0
    %v2679 = vadd.f32 %v2600, %v2678
    %v2680 = vpop.f32.mrf.mxu0
    %2681 = vdwg.mxu0
    %v2682 = vadd.f32 %v2494, %v2674
    %v2683 = vadd.f32 %v2495, %v2679
    %v2684 = vsel %vm403, %v2682, 0.0
    %2685 = vadd.xlane.f32.xlu0 %v2684
    %v2686 = vpop.xlane.xlu0 %2685
    %v2687 = vsel %vm403, %v2683, 0.0
    %2688 = vadd.xlane.f32.xlu0 %v2687
    %v2689 = vpop.xlane.xlu0 %2688
    %v2690 = vmul.f32 %v2686, %v1346
    %v2691 = vmul.f32 %v2689, %v1346
    %v2692 = vsub.f32 %v2682, %v2690
    %v2693 = vsub.f32 %v2683, %v2691
    %v2694 = vmul.f32 %v2692, %v2692
    %v2695 = vmul.f32 %v2693, %v2693
    %v2696 = vsel %vm403, %v2694, 0.0
    %2697 = vadd.xlane.f32.xlu0 %v2696
    %v2698 = vpop.xlane.xlu0 %2697
    %v2699 = vsel %vm403, %v2695, 0.0
    %2700 = vadd.xlane.f32.xlu0 %v2699
    %v2701 = vpop.xlane.xlu0 %2700
    %v2702 = vmul.f32 %v2698, %v1346
    %v2703 = vmul.f32 %v2701, %v1346
    %v2704 = vadd.f32 %v2702, 1e-05
    %v2705 = vadd.f32 %v2703, 1e-05
    %v2706 = vrsqrt.pop %v2704
    %v2707 = vrsqrt.pop %v2705
    %v2708 = vmul.f32 %v2692, %v2706
    %v2709 = vmul.f32 %v2693, %v2707
    %v2710 = vlaneseq
    %v2711 = vshrl.u32 %v2710, 7
    %v2712 = vsub.s32 6, %v2711
    %v2713 = vrot.slane %v90, %v2712
    %v2714 = vmul.f32 %v2708, %v2713
    %v2715 = vmul.f32 %v2709, %v2713
    %v2716 = vlaneseq
    %v2717 = vshrl.u32 %v2716, 7
    %v2718 = vsub.s32 7, %v2717
    %v2719 = vrot.slane %v90, %v2718
    %v2720 = vadd.f32 %v2714, %v2719
    %v2721 = vadd.f32 %v2715, %v2719
    %v2722 = vsel %vm403, %v2720, 0.0
    %v2723 = vsel %vm403, %v2721, 0.0
    %v2724 = vadd.f32 %v2722, %v2723
    %v2725 = vrot.slane %v2724, 4
    %v2726 = vadd.f32 %v2724, %v2725
    %v2727 = vrot.slane %v2726, 2
    %v2728 = vadd.f32 %v2726, %v2727
    %v2729 = vrot.slane %v2728, 1
    %v2730 = vadd.f32 %v2728, %v2729
    %v2731 = vmul.f32 %v2730, %v413
    %v2732 = vsub.f32 %v2720, %v2731
    %v2733 = vsub.f32 %v2721, %v2731
    %v2734 = vmul.f32 %v2732, %v2732
    %v2735 = vmul.f32 %v2733, %v2733
    %v2736 = vsel %vm403, %v2734, 0.0
    %v2737 = vsel %vm403, %v2735, 0.0
    %v2738 = vadd.f32 %v2736, %v2737
    %v2739 = vrot.slane %v2738, 4
    %v2740 = vadd.f32 %v2738, %v2739
    %v2741 = vrot.slane %v2740, 2
    %v2742 = vadd.f32 %v2740, %v2741
    %v2743 = vrot.slane %v2742, 1
    %v2744 = vadd.f32 %v2742, %v2743
    %v2745 = vmul.f32 %v2744, %v413
    %v2746 = vadd.f32 %v2745, 1e-05
    %v2747 = vrsqrt.pop %v2746
    %v2748 = vmul.f32 %v2732, %v2747
    %v2749 = vmul.f32 %v2733, %v2747
    %v2750 = vlaneseq
    %v2751 = vshrl.u32 %v2750, 7
    %v2752 = vsub.s32 4, %v2751
    %v2753 = vrot.slane %v88, %v2752
    %v2754 = vmul.f32 %v2748, %v2753
    %v2755 = vmul.f32 %v2749, %v2753
    %v2756 = vlaneseq
    %v2757 = vshrl.u32 %v2756, 7
    %v2758 = vsub.s32 5, %v2757
    %v2759 = vrot.slane %v88, %v2758
    %v2760 = vadd.f32 %v2754, %v2759
    %v2761 = vadd.f32 %v2755, %v2759
    %v2762 = vld [vmem:[#allocation7] sm:$0xff]
    %v2763 = vld [vmem:[#allocation7 + $0x8] sm:$0xff]
    %2765 = vrot.lane.b32.xlu0 %v2761, 32
    %v2766 = vpop.permute.xlu0 %2765
    %v2768 = vsel %vm403, %v2760, %v2766
    %2770 = vset.pattern.permute.xlu0 8
    %2771 = vperm.xlu0 %2770, %v2762
    %v2772 = vpop.permute.xlu0 %2771
    %2775 = vset.pattern.permute.xlu0 8
    %2776 = vperm.xlu0 %2775, %v2763
    %v2777 = vpop.permute.xlu0 %2776
    %v2779 = vsel %vm207, %v2762, 0
    %v2781 = vsel %vm207, %v2763, 0
    %2783 = vmatprep.subr.mxu0 0.0
    %2784 = vmatpush1.msra.mxu0 0.0
    %2785 = vmatprep.subr.mxu0 0.0
    %2786 = vmatpush1.msra.mxu0 0.0
    %2787 = vmatprep.subr.mxu0 0.0
    %2788 = vmatpush1.msra.mxu0 0.0
    %2789 = vmatprep.subr.mxu0 0.0
    %2790 = vmatpush1.msra.mxu0 0.0
    %2791 = vmatprep.subr.mxu0 0.0
    %2792 = vmatpush1.msra.mxu0 0.0
    %2793 = vmatprep.subr.mxu0 0.0
    %2794 = vmatpush1.msra.mxu0 0.0
    %2795 = vmatprep.subr.mxu0 0.0
    %2796 = vmatpush1.msra.mxu0 0.0
    %2797 = vmatprep.subr.mxu0 0.0
    %2798 = vmatpush1.msra.mxu0 0.0
    %2799 = vmatprep.subr.mxu0 0.0
    %2800 = vmatpush1.msra.mxu0 0.0
    %2801 = vmatprep.subr.mxu0 0.0
    %2802 = vmatpush1.msra.mxu0 0.0
    %2803 = vmatprep.subr.mxu0 0.0
    %2804 = vmatpush1.msra.mxu0 0.0
    %2805 = vmatprep.subr.mxu0 0.0
    %2806 = vmatpush1.msra.mxu0 0.0
    %2807 = vmatprep.subr.mxu0 0.0
    %2808 = vmatpush1.msra.mxu0 0.0
    %2809 = vmatprep.subr.mxu0 0.0
    %2810 = vmatpush1.msra.mxu0 0.0
    %2811 = vmatprep.subr.mxu0 0.0
    %2812 = vmatpush1.msra.mxu0 0.0
    %2813 = vmatprep.subr.mxu0 0.0
    %2814 = vmatpush1.msra.mxu0 %v2768
    %2815 = vmatprep.subr.mxu0 0.0
    %2816 = vmatpush2.msra.mxu0 0.0
    %2817 = vmatprep.subr.mxu0 0.0
    %2818 = vmatpush2.msra.mxu0 0.0
    %2819 = vmatprep.subr.mxu0 0.0
    %2820 = vmatpush2.msra.mxu0 0.0
    %2821 = vmatprep.subr.mxu0 0.0
    %2822 = vmatpush2.msra.mxu0 0.0
    %2823 = vmatprep.subr.mxu0 0.0
    %2824 = vmatpush2.msra.mxu0 0.0
    %2825 = vmatprep.subr.mxu0 0.0
    %2826 = vmatpush2.msra.mxu0 0.0
    %2827 = vmatprep.subr.mxu0 0.0
    %2828 = vmatpush2.msra.mxu0 0.0
    %2829 = vmatprep.subr.mxu0 0.0
    %2830 = vmatpush2.msra.mxu0 0.0
    %2831 = vmatprep.subr.mxu0 0.0
    %2832 = vmatpush2.msra.mxu0 0.0
    %2833 = vmatprep.subr.mxu0 0.0
    %2834 = vmatpush2.msra.mxu0 0.0
    %2835 = vmatprep.subr.mxu0 0.0
    %2836 = vmatpush2.msra.mxu0 0.0
    %2837 = vmatprep.subr.mxu0 0.0
    %2838 = vmatpush2.msra.mxu0 0.0
    %2839 = vmatprep.subr.mxu0 0.0
    %2840 = vmatpush2.msra.mxu0 0.0
    %2841 = vmatprep.subr.mxu0 0.0
    %2842 = vmatpush2.msra.mxu0 0.0
    %2843 = vmatprep.subr.mxu0 0.0
    %2844 = vmatpush2.msra.mxu0 0.0
    %2845 = vmatprep.subr.mxu0 0.0
    %2846 = vmatpush2.msra.mxu0 0.0
    %2847 = vmatprep.mubr.f32.mxu0 0.0
    %2848 = vmatmul.mubr.f32.gmra.mxu0 %v2779
    %v2849 = vpop.f32.mrf.mxu0
    %v2850 = vadd.f32 %v2772, %v2849
    %v2851 = vpop.f32.mrf.mxu0
    %2852 = vmatprep.mubr.f32.mxu0 0.0
    %2853 = vmatmul.mubr.f32.gmra.mxu0 %v2781
    %v2854 = vpop.f32.mrf.mxu0
    %v2855 = vadd.f32 %v2777, %v2854
    %v2856 = vpop.f32.mrf.mxu0
    %2857 = vdwg.mxu0
    %v2858 = vmul.f32 %v2850, 0.5
    %v2859 = vmul.f32 %v2855, 0.5
    %v2860 = vmul.f32 %v2850, 0.70710677
    %v2861 = vmul.f32 %v2855, 0.70710677
    %v2862 = verf.f32.pop %v2860
    %v2863 = verf.f32.pop %v2861
    %v2864 = vadd.f32 %v2862, 1.0
    %v2865 = vadd.f32 %v2863, 1.0
    %v2866 = vmul.f32 %v2858, %v2864
    %v2867 = vmul.f32 %v2859, %v2865
    %2870 = vrot.lane.b32.xlu0 %v2866, 96
    %v2871 = vpop.permute.xlu0 %2870
    %2872 = vrot.lane.b32.xlu0 %v2867, 96
    %v2873 = vpop.permute.xlu0 %2872
    %v2876 = vsel %vm403, %v2866, 0.0
    %v2877 = vsel %vm403, %v2867, 0.0
    %v2878 = vadd.f32 %v2876, %v2877
    %v2879 = vsel %vm403, %v2871, 0.0
    %v2880 = vadd.f32 %v2878, %v2879
    %v2881 = vsel %vm403, %v2873, 0.0
    %v2882 = vadd.f32 %v2880, %v2881
    %v2883 = vrot.slane %v2882, 4
    %v2884 = vadd.f32 %v2882, %v2883
    %v2885 = vrot.slane %v2884, 2
    %v2886 = vadd.f32 %v2884, %v2885
    %v2887 = vrot.slane %v2886, 1
    %v2888 = vadd.f32 %v2886, %v2887
    %v2889 = vmul.f32 %v2888, %v1346
    %v2890 = vsub.f32 %v2866, %v2889
    %v2891 = vsub.f32 %v2867, %v2889
    %v2892 = vsub.f32 %v2871, %v2889
    %v2893 = vsub.f32 %v2873, %v2889
    %v2894 = vmul.f32 %v2890, %v2890
    %v2895 = vmul.f32 %v2891, %v2891
    %v2896 = vmul.f32 %v2892, %v2892
    %v2897 = vmul.f32 %v2893, %v2893
    %v2898 = vsel %vm403, %v2894, 0.0
    %v2899 = vsel %vm403, %v2895, 0.0
    %v2900 = vadd.f32 %v2898, %v2899
    %v2901 = vsel %vm403, %v2896, 0.0
    %v2902 = vadd.f32 %v2900, %v2901
    %v2903 = vsel %vm403, %v2897, 0.0
    %v2904 = vadd.f32 %v2902, %v2903
    %v2905 = vrot.slane %v2904, 4
    %v2906 = vadd.f32 %v2904, %v2905
    %v2907 = vrot.slane %v2906, 2
    %v2908 = vadd.f32 %v2906, %v2907
    %v2909 = vrot.slane %v2908, 1
    %v2910 = vadd.f32 %v2908, %v2909
    %v2911 = vmul.f32 %v2910, %v1346
    %v2912 = vadd.f32 %v2911, 1e-05
    %v2913 = vrsqrt.pop %v2912
    %v2914 = vmul.f32 %v2890, %v2913
    %v2915 = vmul.f32 %v2891, %v2913
    %v2916 = vmul.f32 %v2892, %v2913
    %v2917 = vmul.f32 %v2893, %v2913
    %v2918 = vlaneseq
    %v2919 = vshrl.u32 %v2918, 7
    %v2920 = vsub.s32 6, %v2919
    %v2921 = vrot.slane %v88, %v2920
    %v2922 = vmul.f32 %v2914, %v2921
    %v2923 = vmul.f32 %v2915, %v2921
    %v2924 = vmul.f32 %v2916, %v2921
    %v2925 = vmul.f32 %v2917, %v2921
    %v2926 = vlaneseq
    %v2927 = vshrl.u32 %v2926, 7
    %v2928 = vsub.s32 7, %v2927
    %v2929 = vrot.slane %v88, %v2928
    %v2930 = vadd.f32 %v2922, %v2929
    %v2931 = vadd.f32 %v2923, %v2929
    %v2932 = vadd.f32 %v2924, %v2929
    %v2933 = vadd.f32 %v2925, %v2929
    %v2934 = vld [vmem:[%s9] sm:$0xff]
    %v2935 = vld [vmem:[%s9 + $0x8] sm:$0xff]
    %v2936 = vld [vmem:[%s9 + $0x10] sm:$0xff]
    %v2937 = vld [vmem:[%s9 + $0x18] sm:$0xff]
    %v2938 = vld [vmem:[%s9 + $0x20] sm:$0x1]
    %v2939 = vlaneseq
    %v2940 = vshrl.u32 %v2939, 7
    %v2941 = vsub.s32 0, %v2940
    %v2942 = vrot.slane %v2938, %v2941
    %v2944 = vsel %vm403, %v2930, 0
    %v2947 = vsel %vm403, %v2931, 0
    %v2950 = vsel %vm403, %v2932, 0
    %v2953 = vsel %vm403, %v2933, 0
    %2955 = vmatprep.subr.mxu0 0.0
    %2956 = vmatpush1.msra.mxu0 0.0
    %2957 = vmatprep.subr.mxu0 0.0
    %2958 = vmatpush1.msra.mxu0 0.0
    %2959 = vmatprep.subr.mxu0 0.0
    %2960 = vmatpush1.msra.mxu0 0.0
    %2961 = vmatprep.subr.mxu0 0.0
    %2962 = vmatpush1.msra.mxu0 0.0
    %2963 = vmatprep.subr.mxu0 0.0
    %2964 = vmatpush1.msra.mxu0 0.0
    %2965 = vmatprep.subr.mxu0 0.0
    %2966 = vmatpush1.msra.mxu0 0.0
    %2967 = vmatprep.subr.mxu0 0.0
    %2968 = vmatpush1.msra.mxu0 0.0
    %2969 = vmatprep.subr.mxu0 0.0
    %2970 = vmatpush1.msra.mxu0 0.0
    %2971 = vmatprep.subr.mxu0 0.0
    %2972 = vmatpush1.msra.mxu0 0.0
    %2973 = vmatprep.subr.mxu0 0.0
    %2974 = vmatpush1.msra.mxu0 0.0
    %2975 = vmatprep.subr.mxu0 0.0
    %2976 = vmatpush1.msra.mxu0 0.0
    %2977 = vmatprep.subr.mxu0 0.0
    %2978 = vmatpush1.msra.mxu0 0.0
    %2979 = vmatprep.subr.mxu0 0.0
    %2980 = vmatpush1.msra.mxu0 %v2937
    %2981 = vmatprep.subr.mxu0 0.0
    %2982 = vmatpush1.msra.mxu0 %v2936
    %2983 = vmatprep.subr.mxu0 0.0
    %2984 = vmatpush1.msra.mxu0 %v2935
    %2985 = vmatprep.subr.mxu0 0.0
    %2986 = vmatpush1.msra.mxu0 %v2934
    %2987 = vmatprep.subr.mxu0 0.0
    %2988 = vmatpush2.msra.mxu0 0.0
    %2989 = vmatprep.subr.mxu0 0.0
    %2990 = vmatpush2.msra.mxu0 0.0
    %2991 = vmatprep.subr.mxu0 0.0
    %2992 = vmatpush2.msra.mxu0 0.0
    %2993 = vmatprep.subr.mxu0 0.0
    %2994 = vmatpush2.msra.mxu0 0.0
    %2995 = vmatprep.subr.mxu0 0.0
    %2996 = vmatpush2.msra.mxu0 0.0
    %2997 = vmatprep.subr.mxu0 0.0
    %2998 = vmatpush2.msra.mxu0 0.0
    %2999 = vmatprep.subr.mxu0 0.0
    %3000 = vmatpush2.msra.mxu0 0.0
    %3001 = vmatprep.subr.mxu0 0.0
    %3002 = vmatpush2.msra.mxu0 0.0
    %3003 = vmatprep.subr.mxu0 0.0
    %3004 = vmatpush2.msra.mxu0 0.0
    %3005 = vmatprep.subr.mxu0 0.0
    %3006 = vmatpush2.msra.mxu0 0.0
    %3007 = vmatprep.subr.mxu0 0.0
    %3008 = vmatpush2.msra.mxu0 0.0
    %3009 = vmatprep.subr.mxu0 0.0
    %3010 = vmatpush2.msra.mxu0 0.0
    %3011 = vmatprep.subr.mxu0 0.0
    %3012 = vmatpush2.msra.mxu0 0.0
    %3013 = vmatprep.subr.mxu0 0.0
    %3014 = vmatpush2.msra.mxu0 0.0
    %3015 = vmatprep.subr.mxu0 0.0
    %3016 = vmatpush2.msra.mxu0 0.0
    %3017 = vmatprep.subr.mxu0 0.0
    %3018 = vmatpush2.msra.mxu0 0.0
    %3019 = vmatprep.mubr.f32.mxu0 0.0
    %3020 = vmatmul.mubr.f32.gmra.mxu0 %v2944
    %v3021 = vpop.f32.mrf.mxu0
    %v3022 = vadd.f32 %v2942, %v3021
    %v3023 = vpop.f32.mrf.mxu0
    %3024 = vmatprep.mubr.f32.mxu0 0.0
    %3025 = vmatmul.mubr.f32.gmra.mxu0 %v2947
    %v3026 = vpop.f32.mrf.mxu0
    %v3027 = vadd.f32 %v2942, %v3026
    %v3028 = vpop.f32.mrf.mxu0
    %3029 = vmatprep.mubr.f32.mxu0 0.0
    %3030 = vmatmul.mubr.f32.gmra.mxu0 %v2950
    %v3031 = vpop.f32.mrf.mxu0
    %v3032 = vadd.f32 %v2942, %v3031
    %v3033 = vpop.f32.mrf.mxu0
    %3034 = vmatprep.mubr.f32.mxu0 0.0
    %3035 = vmatmul.mubr.f32.gmra.mxu0 %v2953
    %v3036 = vpop.f32.mrf.mxu0
    %v3037 = vadd.f32 %v2942, %v3036
    %v3038 = vpop.f32.mrf.mxu0
    %3039 = vdwg.mxu0
    %3040 = vst.msk [vmem:[%s10] sm:$0xff] %vm101, %v3022
    %3041 = vst.msk [vmem:[%s10 + $0x8] sm:$0xff] %vm101, %v3027
    %3042 = vst.msk [vmem:[%s10 + $0x10] sm:$0xff] %vm101, %v3032
    %3043 = vst.msk [vmem:[%s10 + $0x18] sm:$0xff] %vm101, %v3037
    // Predicated region
    $region58: #{tpu_custom_call.1} parent=1 // pred_check
      _
    $region59: #{tpu_custom_call.1} parent=1 // pred_check_branch
      %3045 = sbr.rel (0) target = $region61
    $region60: #{tpu_custom_call.1} parent=1 // pred_region
      _
    $region61: #{tpu_custom_call.1} parent=1 // pred_fallthru
      _
    // Predicated region
    $region62: #{tpu_custom_call.1} parent=1 // pred_check
      _
    $region63: #{tpu_custom_call.1} parent=1 // pred_check_branch
      %3047 = sbr.rel (0) target = $region65
    $region64: #{tpu_custom_call.1} parent=1 // pred_region
      _
    $region65: #{tpu_custom_call.1} parent=1 // pred_fallthru
      _
    %3048 = vsyncpa [#allocation3], 1
    %3049 = vsyncpa [#allocation5], 1
    %3050 = vsyncpa [#allocation8], 1

</llo_original>
